<compile_context>
chip_gen: v6e
topology: v6e:2x2x1
jax: 0.10.0
libtpu: 0.0.40
codegen_flags: <defaults>
</compile_context>

<pallas_src>
import functools
from dataclasses import dataclass

import numpy as np

import jax
import jax.numpy as jnp
from jax.experimental import pallas as pl
from jax.experimental.pallas import tpu as pltpu  # noqa: F401  (kept for TPU-specific extensions)


@dataclass
class Config:
    hidden_size: int = 32
    num_attention_heads: int = 4
    intermediate_size: int = 64
    num_hidden_layers: int = 2
    image_size: int = 16
    patch_size: int = 4
    num_channels: int = 3
    layer_norm_eps: float = 1e-5
    # hidden_act = "quick_gelu" (CLIP default)


NEG_INF = -1e30


def _round_up(x, m):
    return ((x + m - 1) // m) * m


# ----------------------- fused Pallas kernel -----------------------

def _fused_vit_kernel(patches_ref, attn_bias_ref, base_ref, w_patch_ref,
                      pre_g_ref, pre_b_ref,
                      ln1g_ref, ln1b_ref, wqkv_ref, bqkv_ref, wo_ref, bo_ref,
                      ln2g_ref, ln2b_ref, w1_ref, b1_ref, w2_ref, b2_ref,
                      post_g_ref, post_b_ref,
                      o_ref, pooled_ref,
                      *, num_layers, num_heads, head_dim, hidden, batch, sp,
                      eps, approx_recip):
    R, Dp = o_ref.shape            # R = batch * sp (padded rows), Dp = padded hidden
    D = hidden

    # Hoisted constants.
    lane_ids = jax.lax.broadcasted_iota(jnp.int32, (1, Dp), 1)
    lane_mask = (lane_ids < D).astype(jnp.float32)          # (1, Dp)
    inv_d = 1.0 / D
    attn_bias = attn_bias_ref[...]                           # (R, R) block-diag + key-pad mask

    def layernorm(v, g, b):
        # Padded lanes of v are exactly zero (zero-padded weights/gammas), so
        # dividing the sums by the real hidden size and masking the variance
        # gives the exact LayerNorm over the first D lanes.
        mu = jnp.sum(v, axis=-1, keepdims=True) * inv_d
        d = (v - mu) * lane_mask
        var = jnp.sum(d * d, axis=-1, keepdims=True) * inv_d
        return d * jax.lax.rsqrt(var + eps) * g + b

    def softmax_den_inv(den):
        if approx_recip:
            return pl.reciprocal(den, approx=True)
        return 1.0 / den

    # ---- patch embedding + class/position embedding (fused) ----
    # The class-token rows of `patches` are zero, so the matmul leaves them zero
    # and `base` (class_emb + pos_emb, tiled over the folded batch) fills them.
    base = base_ref[...]
    if batch > 1:
        base = jnp.concatenate([base] * batch, axis=0)       # (R, Dp)
    x = jnp.dot(patches_ref[...], w_patch_ref[...],
                preferred_element_type=jnp.float32) + base

    # ---- pre-LayerNorm ----
    x = layernorm(x, pre_g_ref[...], pre_b_ref[...])

    # ---- encoder layers (statically unrolled, weights VMEM-resident) ----
    for li in range(num_layers):
        # -- self-attention (pre-LN) --
        h = layernorm(x, ln1g_ref[li], ln1b_ref[li])
        # Single lane-dense QKV matmul; attention scale pre-folded into q cols.
        qkv = jnp.dot(h, wqkv_ref[li],
                      preferred_element_type=jnp.float32) + bqkv_ref[li]  # (R, 3D pad)

        ctx_heads = []
        for hd in range(num_heads):
            q_h = qkv[:, hd * head_dim:(hd + 1) * head_dim]                 # (R, Dh)
            k_h = qkv[:, D + hd * head_dim:D + (hd + 1) * head_dim]
            v_h = qkv[:, 2 * D + hd * head_dim:2 * D + (hd + 1) * head_dim]

            # scores = q @ k^T (contract head dim), batch/key padding masked.
            s = jax.lax.dot_general(q_h, k_h, (((1,), (1,)), ((), ())),
                                    preferred_element_type=jnp.float32)
            s = s + attn_bias                                               # (R, R)
            m = jnp.max(s, axis=-1, keepdims=True)
            p = jnp.exp(s - m)
            den = jnp.sum(p, axis=-1, keepdims=True)
            p = p * softmax_den_inv(den)
            ctx_heads.append(jnp.dot(p, v_h, preferred_element_type=jnp.float32))

        # Concat heads in lanes -> single fused output projection (K = H*Dh).
        ctx = jnp.concatenate(ctx_heads, axis=-1)                           # (R, H*Dh)
        attn = jnp.dot(ctx, wo_ref[li],
                       preferred_element_type=jnp.float32) + bo_ref[li]     # (R, Dp)
        x = x + attn

        # -- MLP (pre-LN), quick_gelu --
        h2 = layernorm(x, ln2g_ref[li], ln2b_ref[li])
        m1 = jnp.dot(h2, w1_ref[li], preferred_element_type=jnp.float32) + b1_ref[li]
        m1 = m1 * jax.nn.sigmoid(1.702 * m1)
        x = x + jnp.dot(m1, w2_ref[li], preferred_element_type=jnp.float32) + b2_ref[li]

    o_ref[...] = x

    # Pooled output: post-LayerNorm of each batch element's CLS row.
    post_g = post_g_ref[...]
    post_b = post_b_ref[...]
    for b in range(batch):
        cls_row = x[b * sp: b * sp + 1, :]
        pooled_ref[b:b + 1, :] = layernorm(cls_row, post_g, post_b)


# ----------------------- one-time weight packing -----------------------

def pack_params(params, config):
    """Pad / stack / fuse all weights once, outside the per-call hot path."""
    D = config.hidden_size
    P = config.patch_size
    C = config.num_channels
    H = config.num_attention_heads
    Dh = D // H
    I = config.intermediate_size
    S = (config.image_size // P) ** 2 + 1

    SpP = max(8, _round_up(S, 8))
    Dp = _round_up(D, 128)
    Ip = _round_up(I, 128)
    CPP = C * P * P
    CPPp = _round_up(CPP, 128)
    QKVp = _round_up(3 * D, 128)
    scale = Dh ** -0.5

    def pad_vec(v, n):
        return jnp.pad(v, (0, n - v.shape[0])).reshape(1, n)

    # Patch-embedding weight (D, C, P, P) -> (C*P*P, D), zero-padded.
    w_patch = params['patch_w'].reshape(D, CPP).T
    w_patch = jnp.pad(w_patch, ((0, CPPp - CPP), (0, Dp - D)))

    # Class + position embeddings folded into one additive base (per batch block).
    base = params['pos_emb'].at[0].add(params['class_emb'])
    base = jnp.pad(base, ((0, SpP - S), (0, Dp - D)))

    def pack_layer(lp):
        # Fused QKV weight, attention scale folded into the q columns.
        wqkv = jnp.concatenate([lp['wq'] * scale, lp['wk'], lp['wv']], axis=1)  # (D, 3D)
        wqkv = jnp.pad(wqkv, ((0, Dp - D), (0, QKVp - 3 * D)))
        bqkv = jnp.concatenate([lp['bq'] * scale, lp['bk'], lp['bv']])
        return dict(
            ln1g=pad_vec(lp['ln1_g'], Dp), ln1b=pad_vec(lp['ln1_b'], Dp),
            wqkv=wqkv, bqkv=pad_vec(bqkv, QKVp),
            wo=jnp.pad(lp['wo'], ((0, 0), (0, Dp - D))),          # (H*Dh, Dp)
            bo=pad_vec(lp['bo'], Dp),
            ln2g=pad_vec(lp['ln2_g'], Dp), ln2b=pad_vec(lp['ln2_b'], Dp),
            w1=jnp.pad(lp['w1'], ((0, Dp - D), (0, Ip - I))),
            b1=pad_vec(lp['b1'], Ip),
            w2=jnp.pad(lp['w2'], ((0, Ip - I), (0, Dp - D))),
            b2=pad_vec(lp['b2'], Dp))

    layer_dicts = [pack_layer(lp) for lp in params['layers']]

    def stack(key):
        return jnp.stack([ld[key] for ld in layer_dicts], axis=0)

    packed = dict(
        w_patch=w_patch, base=base,
        pre_g=pad_vec(params['pre_ln_g'], Dp), pre_b=pad_vec(params['pre_ln_b'], Dp),
        post_g=pad_vec(params['post_ln_g'], Dp), post_b=pad_vec(params['post_ln_b'], Dp),
    )
    for k in ('ln1g', 'ln1b', 'wqkv', 'bqkv', 'wo', 'bo',
              'ln2g', 'ln2b', 'w1', 'b1', 'w2', 'b2'):
        packed[k] = stack(k)
    return packed


# ----------------------- forward (per-call) -----------------------

def clipseg_vision_forward(pixel_values, packed, config, *, approx_recip=True):
    B, C, Himg, Wimg = pixel_values.shape
    D = config.hidden_size
    P = config.patch_size
    H = config.num_attention_heads
    Dh = D // H
    L = config.num_hidden_layers
    eps = config.layer_norm_eps

    Hp, Wp = Himg // P, Wimg // P
    N = Hp * Wp
    S = N + 1
    h0 = config.image_size // P
    if (Hp, Wp) != (h0, h0):
        # TODO(synk): bicubic interpolation of position embeddings for
        #             non-native input resolutions is not implemented.
        raise NotImplementedError("interpolate_pos_encoding for non-native resolution")

    SpP = max(8, _round_up(S, 8))       # sublane-aligned per-batch sequence block
    Dp = _round_up(D, 128)
    CPP = C * P * P
    CPPp = _round_up(CPP, 128)
    R = B * SpP                         # batch folded into the sublane (row) axis

    # ---- patch extraction: NCHW -> (B*SpP, C*P*P) in Conv2d reduction order ----
    x = pixel_values.reshape(B, C, Hp, P, Wp, P)
    x = x.transpose(0, 2, 4, 1, 3, 5).reshape(B, N, CPP)
    # Row 0 of each batch block is the (zero) class-token slot; pad rows/lanes.
    patches = jnp.pad(x, ((0, 0), (1, SpP - 1 - N), (0, CPPp - CPP))).reshape(R, CPPp)

    # Block-diagonal attention bias (batch separation + padded-key masking).
    # Built with numpy -> embedded as a compile-time constant, no per-call ops.
    ridx = np.arange(R)
    blk = ridx // SpP
    pos = ridx % SpP
    bias_np = np.where((blk[:, None] == blk[None, :]) & (pos[None, :] < S),
                       0.0, NEG_INF).astype(np.float32)
    attn_bias = jnp.asarray(bias_np)

    kernel = functools.partial(
        _fused_vit_kernel, num_layers=L, num_heads=H, head_dim=Dh,
        hidden=D, batch=B, sp=SpP, eps=eps, approx_recip=approx_recip)

    out, pooled = pl.pallas_call(
        kernel,
        out_shape=(jax.ShapeDtypeStruct((R, Dp), jnp.float32),
                   jax.ShapeDtypeStruct((B, Dp), jnp.float32)),
    )(patches, attn_bias, packed['base'], packed['w_patch'],
      packed['pre_g'], packed['pre_b'],
      packed['ln1g'], packed['ln1b'], packed['wqkv'], packed['bqkv'],
      packed['wo'], packed['bo'], packed['ln2g'], packed['ln2b'],
      packed['w1'], packed['b1'], packed['w2'], packed['b2'],
      packed['post_g'], packed['post_b'])

    last_hidden_state = out.reshape(B, SpP, Dp)[:, :S, :D]
    pooled_output = pooled[:, :D]
    return last_hidden_state, pooled_output


# ----------------------- deterministic parameter init -----------------------

def init_params(config, key):
    D = config.hidden_size
    C = config.num_channels
    P = config.patch_size
    I = config.intermediate_size
    npos = (config.image_size // P) ** 2 + 1

    keys = jax.random.split(key, 4 + config.num_hidden_layers)

    def norm(k, shape, s=0.02):
        return jax.random.normal(k, shape, jnp.float32) * s

    params = dict(
        class_emb=jax.random.normal(keys[0], (D,), jnp.float32),
        patch_w=norm(keys[1], (D, C, P, P)),
        pos_emb=norm(keys[2], (npos, D)),
        pre_ln_g=jnp.ones((D,), jnp.float32),
        pre_ln_b=jnp.zeros((D,), jnp.float32),
        post_ln_g=jnp.ones((D,), jnp.float32),
        post_ln_b=jnp.zeros((D,), jnp.float32),
        layers=[],
    )
    for li in range(config.num_hidden_layers):
        lk = jax.random.split(keys[4 + li], 6)
        params['layers'].append(dict(
            ln1_g=jnp.ones((D,), jnp.float32), ln1_b=jnp.zeros((D,), jnp.float32),
            wq=norm(lk[0], (D, D)), bq=jnp.zeros((D,), jnp.float32),
            wk=norm(lk[1], (D, D)), bk=jnp.zeros((D,), jnp.float32),
            wv=norm(lk[2], (D, D)), bv=jnp.zeros((D,), jnp.float32),
            wo=norm(lk[3], (D, D)), bo=jnp.zeros((D,), jnp.float32),
            ln2_g=jnp.ones((D,), jnp.float32), ln2_b=jnp.zeros((D,), jnp.float32),
            w1=norm(lk[4], (D, I)), b1=jnp.zeros((I,), jnp.float32),
            w2=norm(lk[5], (I, D)), b2=jnp.zeros((D,), jnp.float32),
        ))
    return params


if __name__ == "__main__":
    cfg = Config()
    key = jax.random.PRNGKey(0)
    pkey, ikey = jax.random.split(key)
    params = init_params(cfg, pkey)

    # Pack / pad / fuse weights ONCE (outside the per-call jit path).
    packed = pack_params(params, cfg)
    jax.block_until_ready(packed)

    pixel_values = jax.random.normal(
        ikey, (2, cfg.num_channels, cfg.image_size, cfg.image_size), jnp.float32)

    fwd = jax.jit(lambda pv, pk: clipseg_vision_forward(pv, pk, cfg))
    last_hidden_state, pooled_output = fwd(pixel_values, packed)
    jax.block_until_ready((last_hidden_state, pooled_output))

    S = (cfg.image_size // cfg.patch_size) ** 2 + 1
    assert last_hidden_state.shape == (2, S, cfg.hidden_size)
    assert pooled_output.shape == (2, cfg.hidden_size)
    print("KERNEL_OK")
</pallas_src>

<mosaic_0001>
module attributes {stable_mosaic.version = 11 : i64} {
  func.func @_fused_vit_kernel(%arg0: memref<48x128xf32, #tpu.memory_space<vmem>>, %arg1: memref<48x48xf32, #tpu.memory_space<vmem>>, %arg2: memref<24x128xf32, #tpu.memory_space<vmem>>, %arg3: memref<128x128xf32, #tpu.memory_space<vmem>>, %arg4: memref<1x128xf32, #tpu.memory_space<vmem>>, %arg5: memref<1x128xf32, #tpu.memory_space<vmem>>, %arg6: memref<2x1x128xf32, #tpu.memory_space<vmem>>, %arg7: memref<2x1x128xf32, #tpu.memory_space<vmem>>, %arg8: memref<2x128x128xf32, #tpu.memory_space<vmem>>, %arg9: memref<2x1x128xf32, #tpu.memory_space<vmem>>, %arg10: memref<2x32x128xf32, #tpu.memory_space<vmem>>, %arg11: memref<2x1x128xf32, #tpu.memory_space<vmem>>, %arg12: memref<2x1x128xf32, #tpu.memory_space<vmem>>, %arg13: memref<2x1x128xf32, #tpu.memory_space<vmem>>, %arg14: memref<2x128x128xf32, #tpu.memory_space<vmem>>, %arg15: memref<2x1x128xf32, #tpu.memory_space<vmem>>, %arg16: memref<2x128x128xf32, #tpu.memory_space<vmem>>, %arg17: memref<2x1x128xf32, #tpu.memory_space<vmem>>, %arg18: memref<1x128xf32, #tpu.memory_space<vmem>>, %arg19: memref<1x128xf32, #tpu.memory_space<vmem>>, %arg20: memref<48x128xf32, #tpu.memory_space<vmem>>, %arg21: memref<2x128xf32, #tpu.memory_space<vmem>>) attributes {dimension_semantics = [], scalar_prefetch = 0 : i64, scratch_operands = 0 : i64, tpu.core_type = #tpu.core_type<tc>} {
    %0 = tpu.iota {dimensions = array<i32: 1>} : vector<1x128xi32>
    %c32_i32 = arith.constant 32 : i32
    %1 = vector.broadcast %c32_i32 : i32 to vector<1x128xi32>
    %2 = arith.cmpi slt, %0, %1 : vector<1x128xi32>
    %3 = arith.extui %2 : vector<1x128xi1> to vector<1x128xi32>
    %4 = arith.sitofp %3 : vector<1x128xi32> to vector<1x128xf32>
    %c0 = arith.constant 0 : index
    %c0_0 = arith.constant 0 : index
    %5 = vector.load %arg1[%c0, %c0_0] : memref<48x48xf32, #tpu.memory_space<vmem>>, vector<48x48xf32>
    %c0_1 = arith.constant 0 : index
    %c0_2 = arith.constant 0 : index
    %6 = vector.load %arg2[%c0_1, %c0_2] : memref<24x128xf32, #tpu.memory_space<vmem>>, vector<24x128xf32>
    %7 = tpu.concatenate %6, %6 in 0 : vector<24x128xf32>, vector<24x128xf32> -> vector<48x128xf32>
    %c0_3 = arith.constant 0 : index
    %c0_4 = arith.constant 0 : index
    %8 = vector.load %arg0[%c0_3, %c0_4] : memref<48x128xf32, #tpu.memory_space<vmem>>, vector<48x128xf32>
    %c0_5 = arith.constant 0 : index
    %c0_6 = arith.constant 0 : index
    %9 = vector.load %arg3[%c0_5, %c0_6] : memref<128x128xf32, #tpu.memory_space<vmem>>, vector<128x128xf32>
    %cst = arith.constant dense<0.000000e+00> : vector<48x128xf32>
    %10 = tpu.matmul %8, %9, %cst {dimension_numbers = #tpu.dot_dimension_numbers<[1], [0], [0], [1], [0, 0, 1, 1], [], []>} : vector<48x128xf32>, vector<128x128xf32>, vector<48x128xf32> -> vector<48x128xf32>
    %11 = arith.addf %10, %7 : vector<48x128xf32>
    %c0_7 = arith.constant 0 : index
    %c0_8 = arith.constant 0 : index
    %12 = vector.load %arg4[%c0_7, %c0_8] : memref<1x128xf32, #tpu.memory_space<vmem>>, vector<1x128xf32>
    %c0_9 = arith.constant 0 : index
    %c0_10 = arith.constant 0 : index
    %13 = vector.load %arg5[%c0_9, %c0_10] : memref<1x128xf32, #tpu.memory_space<vmem>>, vector<1x128xf32>
    %cst_11 = arith.constant dense<0.000000e+00> : vector<48xf32>
    %14 = vector.multi_reduction <add>, %11, %cst_11 [1] : vector<48x128xf32> to vector<48xf32>
    %15 = vector.shape_cast %14 : vector<48xf32> to vector<48x1xf32>
    %cst_12 = arith.constant 3.125000e-02 : f32
    %16 = vector.broadcast %cst_12 : f32 to vector<48x1xf32>
    %17 = arith.mulf %15, %16 : vector<48x1xf32>
    %18 = vector.broadcast %17 : vector<48x1xf32> to vector<48x128xf32>
    %19 = arith.subf %11, %18 : vector<48x128xf32>
    %20 = vector.broadcast %4 : vector<1x128xf32> to vector<48x128xf32>
    %21 = arith.mulf %19, %20 : vector<48x128xf32>
    %22 = arith.mulf %21, %21 : vector<48x128xf32>
    %cst_13 = arith.constant dense<0.000000e+00> : vector<48xf32>
    %23 = vector.multi_reduction <add>, %22, %cst_13 [1] : vector<48x128xf32> to vector<48xf32>
    %24 = vector.shape_cast %23 : vector<48xf32> to vector<48x1xf32>
    %cst_14 = arith.constant 3.125000e-02 : f32
    %25 = vector.broadcast %cst_14 : f32 to vector<48x1xf32>
    %26 = arith.mulf %24, %25 : vector<48x1xf32>
    %cst_15 = arith.constant 9.99999974E-6 : f32
    %27 = vector.broadcast %cst_15 : f32 to vector<48x1xf32>
    %28 = arith.addf %26, %27 : vector<48x1xf32>
    %29 = math.rsqrt %28 : vector<48x1xf32>
    %30 = vector.broadcast %29 : vector<48x1xf32> to vector<48x128xf32>
    %31 = arith.mulf %21, %30 : vector<48x128xf32>
    %32 = vector.broadcast %12 : vector<1x128xf32> to vector<48x128xf32>
    %33 = arith.mulf %31, %32 : vector<48x128xf32>
    %34 = vector.broadcast %13 : vector<1x128xf32> to vector<48x128xf32>
    %35 = arith.addf %33, %34 : vector<48x128xf32>
    %c0_16 = arith.constant 0 : index
    %c0_17 = arith.constant 0 : index
    %c0_18 = arith.constant 0 : index
    %36 = vector.load %arg6[%c0_16, %c0_17, %c0_18] : memref<2x1x128xf32, #tpu.memory_space<vmem>>, vector<1x1x128xf32>
    %37 = vector.shape_cast %36 : vector<1x1x128xf32> to vector<1x128xf32>
    %c0_19 = arith.constant 0 : index
    %c0_20 = arith.constant 0 : index
    %c0_21 = arith.constant 0 : index
    %38 = vector.load %arg7[%c0_19, %c0_20, %c0_21] : memref<2x1x128xf32, #tpu.memory_space<vmem>>, vector<1x1x128xf32>
    %39 = vector.shape_cast %38 : vector<1x1x128xf32> to vector<1x128xf32>
    %cst_22 = arith.constant dense<0.000000e+00> : vector<48xf32>
    %40 = vector.multi_reduction <add>, %35, %cst_22 [1] : vector<48x128xf32> to vector<48xf32>
    %41 = vector.shape_cast %40 : vector<48xf32> to vector<48x1xf32>
    %cst_23 = arith.constant 3.125000e-02 : f32
    %42 = vector.broadcast %cst_23 : f32 to vector<48x1xf32>
    %43 = arith.mulf %41, %42 : vector<48x1xf32>
    %44 = vector.broadcast %43 : vector<48x1xf32> to vector<48x128xf32>
    %45 = arith.subf %35, %44 : vector<48x128xf32>
    %46 = vector.broadcast %4 : vector<1x128xf32> to vector<48x128xf32>
    %47 = arith.mulf %45, %46 : vector<48x128xf32>
    %48 = arith.mulf %47, %47 : vector<48x128xf32>
    %cst_24 = arith.constant dense<0.000000e+00> : vector<48xf32>
    %49 = vector.multi_reduction <add>, %48, %cst_24 [1] : vector<48x128xf32> to vector<48xf32>
    %50 = vector.shape_cast %49 : vector<48xf32> to vector<48x1xf32>
    %cst_25 = arith.constant 3.125000e-02 : f32
    %51 = vector.broadcast %cst_25 : f32 to vector<48x1xf32>
    %52 = arith.mulf %50, %51 : vector<48x1xf32>
    %cst_26 = arith.constant 9.99999974E-6 : f32
    %53 = vector.broadcast %cst_26 : f32 to vector<48x1xf32>
    %54 = arith.addf %52, %53 : vector<48x1xf32>
    %55 = math.rsqrt %54 : vector<48x1xf32>
    %56 = vector.broadcast %55 : vector<48x1xf32> to vector<48x128xf32>
    %57 = arith.mulf %47, %56 : vector<48x128xf32>
    %58 = vector.broadcast %37 : vector<1x128xf32> to vector<48x128xf32>
    %59 = arith.mulf %57, %58 : vector<48x128xf32>
    %60 = vector.broadcast %39 : vector<1x128xf32> to vector<48x128xf32>
    %61 = arith.addf %59, %60 : vector<48x128xf32>
    %c0_27 = arith.constant 0 : index
    %c0_28 = arith.constant 0 : index
    %c0_29 = arith.constant 0 : index
    %62 = vector.load %arg8[%c0_27, %c0_28, %c0_29] : memref<2x128x128xf32, #tpu.memory_space<vmem>>, vector<1x128x128xf32>
    %63 = vector.shape_cast %62 : vector<1x128x128xf32> to vector<128x128xf32>
    %cst_30 = arith.constant dense<0.000000e+00> : vector<48x128xf32>
    %64 = tpu.matmul %61, %63, %cst_30 {dimension_numbers = #tpu.dot_dimension_numbers<[1], [0], [0], [1], [0, 0, 1, 1], [], []>} : vector<48x128xf32>, vector<128x128xf32>, vector<48x128xf32> -> vector<48x128xf32>
    %c0_31 = arith.constant 0 : index
    %c0_32 = arith.constant 0 : index
    %c0_33 = arith.constant 0 : index
    %65 = vector.load %arg9[%c0_31, %c0_32, %c0_33] : memref<2x1x128xf32, #tpu.memory_space<vmem>>, vector<1x1x128xf32>
    %66 = vector.shape_cast %65 : vector<1x1x128xf32> to vector<1x128xf32>
    %67 = vector.broadcast %66 : vector<1x128xf32> to vector<48x128xf32>
    %68 = arith.addf %64, %67 : vector<48x128xf32>
    %69 = vector.extract_strided_slice %68 {offsets = [0, 0], sizes = [48, 8], strides = [1, 1]} : vector<48x128xf32> to vector<48x8xf32>
    %70 = vector.extract_strided_slice %68 {offsets = [0, 32], sizes = [48, 8], strides = [1, 1]} : vector<48x128xf32> to vector<48x8xf32>
    %71 = vector.extract_strided_slice %68 {offsets = [0, 64], sizes = [48, 8], strides = [1, 1]} : vector<48x128xf32> to vector<48x8xf32>
    %cst_34 = arith.constant dense<0.000000e+00> : vector<48x48xf32>
    %72 = tpu.matmul %69, %70, %cst_34 {dimension_numbers = #tpu.dot_dimension_numbers<[1], [1], [0], [0], [0, 0, 1, 0], [], []>} : vector<48x8xf32>, vector<48x8xf32>, vector<48x48xf32> -> vector<48x48xf32>
    %73 = arith.addf %72, %5 : vector<48x48xf32>
    %cst_35 = arith.constant dense<0xFF800000> : vector<48xf32>
    %74 = vector.multi_reduction <maximumf>, %73, %cst_35 [1] : vector<48x48xf32> to vector<48xf32>
    %75 = vector.shape_cast %74 : vector<48xf32> to vector<48x1xf32>
    %76 = vector.broadcast %75 : vector<48x1xf32> to vector<48x48xf32>
    %77 = arith.subf %73, %76 : vector<48x48xf32>
    %78 = math.exp %77 : vector<48x48xf32>
    %cst_36 = arith.constant dense<0.000000e+00> : vector<48xf32>
    %79 = vector.multi_reduction <add>, %78, %cst_36 [1] : vector<48x48xf32> to vector<48xf32>
    %80 = vector.shape_cast %79 : vector<48xf32> to vector<48x1xf32>
    %81 = tpu.reciprocal %80 {approx = true} : vector<48x1xf32> -> vector<48x1xf32>
    %82 = vector.broadcast %81 : vector<48x1xf32> to vector<48x48xf32>
    %83 = arith.mulf %78, %82 : vector<48x48xf32>
    %cst_37 = arith.constant dense<0.000000e+00> : vector<48x8xf32>
    %84 = tpu.matmul %83, %71, %cst_37 {dimension_numbers = #tpu.dot_dimension_numbers<[1], [0], [0], [1], [0, 0, 1, 1], [], []>} : vector<48x48xf32>, vector<48x8xf32>, vector<48x8xf32> -> vector<48x8xf32>
    %85 = vector.extract_strided_slice %68 {offsets = [0, 8], sizes = [48, 8], strides = [1, 1]} : vector<48x128xf32> to vector<48x8xf32>
    %86 = vector.extract_strided_slice %68 {offsets = [0, 40], sizes = [48, 8], strides = [1, 1]} : vector<48x128xf32> to vector<48x8xf32>
    %87 = vector.extract_strided_slice %68 {offsets = [0, 72], sizes = [48, 8], strides = [1, 1]} : vector<48x128xf32> to vector<48x8xf32>
    %cst_38 = arith.constant dense<0.000000e+00> : vector<48x48xf32>
    %88 = tpu.matmul %85, %86, %cst_38 {dimension_numbers = #tpu.dot_dimension_numbers<[1], [1], [0], [0], [0, 0, 1, 0], [], []>} : vector<48x8xf32>, vector<48x8xf32>, vector<48x48xf32> -> vector<48x48xf32>
    %89 = arith.addf %88, %5 : vector<48x48xf32>
    %cst_39 = arith.constant dense<0xFF800000> : vector<48xf32>
    %90 = vector.multi_reduction <maximumf>, %89, %cst_39 [1] : vector<48x48xf32> to vector<48xf32>
    %91 = vector.shape_cast %90 : vector<48xf32> to vector<48x1xf32>
    %92 = vector.broadcast %91 : vector<48x1xf32> to vector<48x48xf32>
    %93 = arith.subf %89, %92 : vector<48x48xf32>
    %94 = math.exp %93 : vector<48x48xf32>
    %cst_40 = arith.constant dense<0.000000e+00> : vector<48xf32>
    %95 = vector.multi_reduction <add>, %94, %cst_40 [1] : vector<48x48xf32> to vector<48xf32>
    %96 = vector.shape_cast %95 : vector<48xf32> to vector<48x1xf32>
    %97 = tpu.reciprocal %96 {approx = true} : vector<48x1xf32> -> vector<48x1xf32>
    %98 = vector.broadcast %97 : vector<48x1xf32> to vector<48x48xf32>
    %99 = arith.mulf %94, %98 : vector<48x48xf32>
    %cst_41 = arith.constant dense<0.000000e+00> : vector<48x8xf32>
    %100 = tpu.matmul %99, %87, %cst_41 {dimension_numbers = #tpu.dot_dimension_numbers<[1], [0], [0], [1], [0, 0, 1, 1], [], []>} : vector<48x48xf32>, vector<48x8xf32>, vector<48x8xf32> -> vector<48x8xf32>
    %101 = vector.extract_strided_slice %68 {offsets = [0, 16], sizes = [48, 8], strides = [1, 1]} : vector<48x128xf32> to vector<48x8xf32>
    %102 = vector.extract_strided_slice %68 {offsets = [0, 48], sizes = [48, 8], strides = [1, 1]} : vector<48x128xf32> to vector<48x8xf32>
    %103 = vector.extract_strided_slice %68 {offsets = [0, 80], sizes = [48, 8], strides = [1, 1]} : vector<48x128xf32> to vector<48x8xf32>
    %cst_42 = arith.constant dense<0.000000e+00> : vector<48x48xf32>
    %104 = tpu.matmul %101, %102, %cst_42 {dimension_numbers = #tpu.dot_dimension_numbers<[1], [1], [0], [0], [0, 0, 1, 0], [], []>} : vector<48x8xf32>, vector<48x8xf32>, vector<48x48xf32> -> vector<48x48xf32>
    %105 = arith.addf %104, %5 : vector<48x48xf32>
    %cst_43 = arith.constant dense<0xFF800000> : vector<48xf32>
    %106 = vector.multi_reduction <maximumf>, %105, %cst_43 [1] : vector<48x48xf32> to vector<48xf32>
    %107 = vector.shape_cast %106 : vector<48xf32> to vector<48x1xf32>
    %108 = vector.broadcast %107 : vector<48x1xf32> to vector<48x48xf32>
    %109 = arith.subf %105, %108 : vector<48x48xf32>
    %110 = math.exp %109 : vector<48x48xf32>
    %cst_44 = arith.constant dense<0.000000e+00> : vector<48xf32>
    %111 = vector.multi_reduction <add>, %110, %cst_44 [1] : vector<48x48xf32> to vector<48xf32>
    %112 = vector.shape_cast %111 : vector<48xf32> to vector<48x1xf32>
    %113 = tpu.reciprocal %112 {approx = true} : vector<48x1xf32> -> vector<48x1xf32>
    %114 = vector.broadcast %113 : vector<48x1xf32> to vector<48x48xf32>
    %115 = arith.mulf %110, %114 : vector<48x48xf32>
    %cst_45 = arith.constant dense<0.000000e+00> : vector<48x8xf32>
    %116 = tpu.matmul %115, %103, %cst_45 {dimension_numbers = #tpu.dot_dimension_numbers<[1], [0], [0], [1], [0, 0, 1, 1], [], []>} : vector<48x48xf32>, vector<48x8xf32>, vector<48x8xf32> -> vector<48x8xf32>
    %117 = vector.extract_strided_slice %68 {offsets = [0, 24], sizes = [48, 8], strides = [1, 1]} : vector<48x128xf32> to vector<48x8xf32>
    %118 = vector.extract_strided_slice %68 {offsets = [0, 56], sizes = [48, 8], strides = [1, 1]} : vector<48x128xf32> to vector<48x8xf32>
    %119 = vector.extract_strided_slice %68 {offsets = [0, 88], sizes = [48, 8], strides = [1, 1]} : vector<48x128xf32> to vector<48x8xf32>
    %cst_46 = arith.constant dense<0.000000e+00> : vector<48x48xf32>
    %120 = tpu.matmul %117, %118, %cst_46 {dimension_numbers = #tpu.dot_dimension_numbers<[1], [1], [0], [0], [0, 0, 1, 0], [], []>} : vector<48x8xf32>, vector<48x8xf32>, vector<48x48xf32> -> vector<48x48xf32>
    %121 = arith.addf %120, %5 : vector<48x48xf32>
    %cst_47 = arith.constant dense<0xFF800000> : vector<48xf32>
    %122 = vector.multi_reduction <maximumf>, %121, %cst_47 [1] : vector<48x48xf32> to vector<48xf32>
    %123 = vector.shape_cast %122 : vector<48xf32> to vector<48x1xf32>
    %124 = vector.broadcast %123 : vector<48x1xf32> to vector<48x48xf32>
    %125 = arith.subf %121, %124 : vector<48x48xf32>
    %126 = math.exp %125 : vector<48x48xf32>
    %cst_48 = arith.constant dense<0.000000e+00> : vector<48xf32>
    %127 = vector.multi_reduction <add>, %126, %cst_48 [1] : vector<48x48xf32> to vector<48xf32>
    %128 = vector.shape_cast %127 : vector<48xf32> to vector<48x1xf32>
    %129 = tpu.reciprocal %128 {approx = true} : vector<48x1xf32> -> vector<48x1xf32>
    %130 = vector.broadcast %129 : vector<48x1xf32> to vector<48x48xf32>
    %131 = arith.mulf %126, %130 : vector<48x48xf32>
    %cst_49 = arith.constant dense<0.000000e+00> : vector<48x8xf32>
    %132 = tpu.matmul %131, %119, %cst_49 {dimension_numbers = #tpu.dot_dimension_numbers<[1], [0], [0], [1], [0, 0, 1, 1], [], []>} : vector<48x48xf32>, vector<48x8xf32>, vector<48x8xf32> -> vector<48x8xf32>
    %133 = tpu.concatenate %84, %100, %116, %132 in 1 : vector<48x8xf32>, vector<48x8xf32>, vector<48x8xf32>, vector<48x8xf32> -> vector<48x32xf32>
    %c0_50 = arith.constant 0 : index
    %c0_51 = arith.constant 0 : index
    %c0_52 = arith.constant 0 : index
    %134 = vector.load %arg10[%c0_50, %c0_51, %c0_52] : memref<2x32x128xf32, #tpu.memory_space<vmem>>, vector<1x32x128xf32>
    %135 = vector.shape_cast %134 : vector<1x32x128xf32> to vector<32x128xf32>
    %cst_53 = arith.constant dense<0.000000e+00> : vector<48x128xf32>
    %136 = tpu.matmul %133, %135, %cst_53 {dimension_numbers = #tpu.dot_dimension_numbers<[1], [0], [0], [1], [0, 0, 1, 1], [], []>} : vector<48x32xf32>, vector<32x128xf32>, vector<48x128xf32> -> vector<48x128xf32>
    %c0_54 = arith.constant 0 : index
    %c0_55 = arith.constant 0 : index
    %c0_56 = arith.constant 0 : index
    %137 = vector.load %arg11[%c0_54, %c0_55, %c0_56] : memref<2x1x128xf32, #tpu.memory_space<vmem>>, vector<1x1x128xf32>
    %138 = vector.shape_cast %137 : vector<1x1x128xf32> to vector<1x128xf32>
    %139 = vector.broadcast %138 : vector<1x128xf32> to vector<48x128xf32>
    %140 = arith.addf %136, %139 : vector<48x128xf32>
    %141 = arith.addf %35, %140 : vector<48x128xf32>
    %c0_57 = arith.constant 0 : index
    %c0_58 = arith.constant 0 : index
    %c0_59 = arith.constant 0 : index
    %142 = vector.load %arg12[%c0_57, %c0_58, %c0_59] : memref<2x1x128xf32, #tpu.memory_space<vmem>>, vector<1x1x128xf32>
    %143 = vector.shape_cast %142 : vector<1x1x128xf32> to vector<1x128xf32>
    %c0_60 = arith.constant 0 : index
    %c0_61 = arith.constant 0 : index
    %c0_62 = arith.constant 0 : index
    %144 = vector.load %arg13[%c0_60, %c0_61, %c0_62] : memref<2x1x128xf32, #tpu.memory_space<vmem>>, vector<1x1x128xf32>
    %145 = vector.shape_cast %144 : vector<1x1x128xf32> to vector<1x128xf32>
    %cst_63 = arith.constant dense<0.000000e+00> : vector<48xf32>
    %146 = vector.multi_reduction <add>, %141, %cst_63 [1] : vector<48x128xf32> to vector<48xf32>
    %147 = vector.shape_cast %146 : vector<48xf32> to vector<48x1xf32>
    %cst_64 = arith.constant 3.125000e-02 : f32
    %148 = vector.broadcast %cst_64 : f32 to vector<48x1xf32>
    %149 = arith.mulf %147, %148 : vector<48x1xf32>
    %150 = vector.broadcast %149 : vector<48x1xf32> to vector<48x128xf32>
    %151 = arith.subf %141, %150 : vector<48x128xf32>
    %152 = vector.broadcast %4 : vector<1x128xf32> to vector<48x128xf32>
    %153 = arith.mulf %151, %152 : vector<48x128xf32>
    %154 = arith.mulf %153, %153 : vector<48x128xf32>
    %cst_65 = arith.constant dense<0.000000e+00> : vector<48xf32>
    %155 = vector.multi_reduction <add>, %154, %cst_65 [1] : vector<48x128xf32> to vector<48xf32>
    %156 = vector.shape_cast %155 : vector<48xf32> to vector<48x1xf32>
    %cst_66 = arith.constant 3.125000e-02 : f32
    %157 = vector.broadcast %cst_66 : f32 to vector<48x1xf32>
    %158 = arith.mulf %156, %157 : vector<48x1xf32>
    %cst_67 = arith.constant 9.99999974E-6 : f32
    %159 = vector.broadcast %cst_67 : f32 to vector<48x1xf32>
    %160 = arith.addf %158, %159 : vector<48x1xf32>
    %161 = math.rsqrt %160 : vector<48x1xf32>
    %162 = vector.broadcast %161 : vector<48x1xf32> to vector<48x128xf32>
    %163 = arith.mulf %153, %162 : vector<48x128xf32>
    %164 = vector.broadcast %143 : vector<1x128xf32> to vector<48x128xf32>
    %165 = arith.mulf %163, %164 : vector<48x128xf32>
    %166 = vector.broadcast %145 : vector<1x128xf32> to vector<48x128xf32>
    %167 = arith.addf %165, %166 : vector<48x128xf32>
    %c0_68 = arith.constant 0 : index
    %c0_69 = arith.constant 0 : index
    %c0_70 = arith.constant 0 : index
    %168 = vector.load %arg14[%c0_68, %c0_69, %c0_70] : memref<2x128x128xf32, #tpu.memory_space<vmem>>, vector<1x128x128xf32>
    %169 = vector.shape_cast %168 : vector<1x128x128xf32> to vector<128x128xf32>
    %cst_71 = arith.constant dense<0.000000e+00> : vector<48x128xf32>
    %170 = tpu.matmul %167, %169, %cst_71 {dimension_numbers = #tpu.dot_dimension_numbers<[1], [0], [0], [1], [0, 0, 1, 1], [], []>} : vector<48x128xf32>, vector<128x128xf32>, vector<48x128xf32> -> vector<48x128xf32>
    %c0_72 = arith.constant 0 : index
    %c0_73 = arith.constant 0 : index
    %c0_74 = arith.constant 0 : index
    %171 = vector.load %arg15[%c0_72, %c0_73, %c0_74] : memref<2x1x128xf32, #tpu.memory_space<vmem>>, vector<1x1x128xf32>
    %172 = vector.shape_cast %171 : vector<1x1x128xf32> to vector<1x128xf32>
    %173 = vector.broadcast %172 : vector<1x128xf32> to vector<48x128xf32>
    %174 = arith.addf %170, %173 : vector<48x128xf32>
    %cst_75 = arith.constant 1.702000e+00 : f32
    %175 = vector.broadcast %cst_75 : f32 to vector<48x128xf32>
    %176 = arith.mulf %175, %174 : vector<48x128xf32>
    %177 = arith.negf %176 : vector<48x128xf32>
    %178 = math.exp %177 : vector<48x128xf32>
    %cst_76 = arith.constant 1.000000e+00 : f32
    %179 = vector.broadcast %cst_76 : f32 to vector<48x128xf32>
    %180 = arith.addf %179, %178 : vector<48x128xf32>
    %181 = arith.divf %179, %180 : vector<48x128xf32>
    %182 = arith.mulf %174, %181 : vector<48x128xf32>
    %c0_77 = arith.constant 0 : index
    %c0_78 = arith.constant 0 : index
    %c0_79 = arith.constant 0 : index
    %183 = vector.load %arg16[%c0_77, %c0_78, %c0_79] : memref<2x128x128xf32, #tpu.memory_space<vmem>>, vector<1x128x128xf32>
    %184 = vector.shape_cast %183 : vector<1x128x128xf32> to vector<128x128xf32>
    %cst_80 = arith.constant dense<0.000000e+00> : vector<48x128xf32>
    %185 = tpu.matmul %182, %184, %cst_80 {dimension_numbers = #tpu.dot_dimension_numbers<[1], [0], [0], [1], [0, 0, 1, 1], [], []>} : vector<48x128xf32>, vector<128x128xf32>, vector<48x128xf32> -> vector<48x128xf32>
    %186 = arith.addf %141, %185 : vector<48x128xf32>
    %c0_81 = arith.constant 0 : index
    %c0_82 = arith.constant 0 : index
    %c0_83 = arith.constant 0 : index
    %187 = vector.load %arg17[%c0_81, %c0_82, %c0_83] : memref<2x1x128xf32, #tpu.memory_space<vmem>>, vector<1x1x128xf32>
    %188 = vector.shape_cast %187 : vector<1x1x128xf32> to vector<1x128xf32>
    %189 = vector.broadcast %188 : vector<1x128xf32> to vector<48x128xf32>
    %190 = arith.addf %186, %189 : vector<48x128xf32>
    %c1 = arith.constant 1 : index
    %c0_84 = arith.constant 0 : index
    %c0_85 = arith.constant 0 : index
    %191 = vector.load %arg6[%c1, %c0_84, %c0_85] : memref<2x1x128xf32, #tpu.memory_space<vmem>>, vector<1x1x128xf32>
    %192 = vector.shape_cast %191 : vector<1x1x128xf32> to vector<1x128xf32>
    %c1_86 = arith.constant 1 : index
    %c0_87 = arith.constant 0 : index
    %c0_88 = arith.constant 0 : index
    %193 = vector.load %arg7[%c1_86, %c0_87, %c0_88] : memref<2x1x128xf32, #tpu.memory_space<vmem>>, vector<1x1x128xf32>
    %194 = vector.shape_cast %193 : vector<1x1x128xf32> to vector<1x128xf32>
    %cst_89 = arith.constant dense<0.000000e+00> : vector<48xf32>
    %195 = vector.multi_reduction <add>, %190, %cst_89 [1] : vector<48x128xf32> to vector<48xf32>
    %196 = vector.shape_cast %195 : vector<48xf32> to vector<48x1xf32>
    %cst_90 = arith.constant 3.125000e-02 : f32
    %197 = vector.broadcast %cst_90 : f32 to vector<48x1xf32>
    %198 = arith.mulf %196, %197 : vector<48x1xf32>
    %199 = vector.broadcast %198 : vector<48x1xf32> to vector<48x128xf32>
    %200 = arith.subf %190, %199 : vector<48x128xf32>
    %201 = vector.broadcast %4 : vector<1x128xf32> to vector<48x128xf32>
    %202 = arith.mulf %200, %201 : vector<48x128xf32>
    %203 = arith.mulf %202, %202 : vector<48x128xf32>
    %cst_91 = arith.constant dense<0.000000e+00> : vector<48xf32>
    %204 = vector.multi_reduction <add>, %203, %cst_91 [1] : vector<48x128xf32> to vector<48xf32>
    %205 = vector.shape_cast %204 : vector<48xf32> to vector<48x1xf32>
    %cst_92 = arith.constant 3.125000e-02 : f32
    %206 = vector.broadcast %cst_92 : f32 to vector<48x1xf32>
    %207 = arith.mulf %205, %206 : vector<48x1xf32>
    %cst_93 = arith.constant 9.99999974E-6 : f32
    %208 = vector.broadcast %cst_93 : f32 to vector<48x1xf32>
    %209 = arith.addf %207, %208 : vector<48x1xf32>
    %210 = math.rsqrt %209 : vector<48x1xf32>
    %211 = vector.broadcast %210 : vector<48x1xf32> to vector<48x128xf32>
    %212 = arith.mulf %202, %211 : vector<48x128xf32>
    %213 = vector.broadcast %192 : vector<1x128xf32> to vector<48x128xf32>
    %214 = arith.mulf %212, %213 : vector<48x128xf32>
    %215 = vector.broadcast %194 : vector<1x128xf32> to vector<48x128xf32>
    %216 = arith.addf %214, %215 : vector<48x128xf32>
    %c1_94 = arith.constant 1 : index
    %c0_95 = arith.constant 0 : index
    %c0_96 = arith.constant 0 : index
    %217 = vector.load %arg8[%c1_94, %c0_95, %c0_96] : memref<2x128x128xf32, #tpu.memory_space<vmem>>, vector<1x128x128xf32>
    %218 = vector.shape_cast %217 : vector<1x128x128xf32> to vector<128x128xf32>
    %cst_97 = arith.constant dense<0.000000e+00> : vector<48x128xf32>
    %219 = tpu.matmul %216, %218, %cst_97 {dimension_numbers = #tpu.dot_dimension_numbers<[1], [0], [0], [1], [0, 0, 1, 1], [], []>} : vector<48x128xf32>, vector<128x128xf32>, vector<48x128xf32> -> vector<48x128xf32>
    %c1_98 = arith.constant 1 : index
    %c0_99 = arith.constant 0 : index
    %c0_100 = arith.constant 0 : index
    %220 = vector.load %arg9[%c1_98, %c0_99, %c0_100] : memref<2x1x128xf32, #tpu.memory_space<vmem>>, vector<1x1x128xf32>
    %221 = vector.shape_cast %220 : vector<1x1x128xf32> to vector<1x128xf32>
    %222 = vector.broadcast %221 : vector<1x128xf32> to vector<48x128xf32>
    %223 = arith.addf %219, %222 : vector<48x128xf32>
    %224 = vector.extract_strided_slice %223 {offsets = [0, 0], sizes = [48, 8], strides = [1, 1]} : vector<48x128xf32> to vector<48x8xf32>
    %225 = vector.extract_strided_slice %223 {offsets = [0, 32], sizes = [48, 8], strides = [1, 1]} : vector<48x128xf32> to vector<48x8xf32>
    %226 = vector.extract_strided_slice %223 {offsets = [0, 64], sizes = [48, 8], strides = [1, 1]} : vector<48x128xf32> to vector<48x8xf32>
    %cst_101 = arith.constant dense<0.000000e+00> : vector<48x48xf32>
    %227 = tpu.matmul %224, %225, %cst_101 {dimension_numbers = #tpu.dot_dimension_numbers<[1], [1], [0], [0], [0, 0, 1, 0], [], []>} : vector<48x8xf32>, vector<48x8xf32>, vector<48x48xf32> -> vector<48x48xf32>
    %228 = arith.addf %227, %5 : vector<48x48xf32>
    %cst_102 = arith.constant dense<0xFF800000> : vector<48xf32>
    %229 = vector.multi_reduction <maximumf>, %228, %cst_102 [1] : vector<48x48xf32> to vector<48xf32>
    %230 = vector.shape_cast %229 : vector<48xf32> to vector<48x1xf32>
    %231 = vector.broadcast %230 : vector<48x1xf32> to vector<48x48xf32>
    %232 = arith.subf %228, %231 : vector<48x48xf32>
    %233 = math.exp %232 : vector<48x48xf32>
    %cst_103 = arith.constant dense<0.000000e+00> : vector<48xf32>
    %234 = vector.multi_reduction <add>, %233, %cst_103 [1] : vector<48x48xf32> to vector<48xf32>
    %235 = vector.shape_cast %234 : vector<48xf32> to vector<48x1xf32>
    %236 = tpu.reciprocal %235 {approx = true} : vector<48x1xf32> -> vector<48x1xf32>
    %237 = vector.broadcast %236 : vector<48x1xf32> to vector<48x48xf32>
    %238 = arith.mulf %233, %237 : vector<48x48xf32>
    %cst_104 = arith.constant dense<0.000000e+00> : vector<48x8xf32>
    %239 = tpu.matmul %238, %226, %cst_104 {dimension_numbers = #tpu.dot_dimension_numbers<[1], [0], [0], [1], [0, 0, 1, 1], [], []>} : vector<48x48xf32>, vector<48x8xf32>, vector<48x8xf32> -> vector<48x8xf32>
    %240 = vector.extract_strided_slice %223 {offsets = [0, 8], sizes = [48, 8], strides = [1, 1]} : vector<48x128xf32> to vector<48x8xf32>
    %241 = vector.extract_strided_slice %223 {offsets = [0, 40], sizes = [48, 8], strides = [1, 1]} : vector<48x128xf32> to vector<48x8xf32>
    %242 = vector.extract_strided_slice %223 {offsets = [0, 72], sizes = [48, 8], strides = [1, 1]} : vector<48x128xf32> to vector<48x8xf32>
    %cst_105 = arith.constant dense<0.000000e+00> : vector<48x48xf32>
    %243 = tpu.matmul %240, %241, %cst_105 {dimension_numbers = #tpu.dot_dimension_numbers<[1], [1], [0], [0], [0, 0, 1, 0], [], []>} : vector<48x8xf32>, vector<48x8xf32>, vector<48x48xf32> -> vector<48x48xf32>
    %244 = arith.addf %243, %5 : vector<48x48xf32>
    %cst_106 = arith.constant dense<0xFF800000> : vector<48xf32>
    %245 = vector.multi_reduction <maximumf>, %244, %cst_106 [1] : vector<48x48xf32> to vector<48xf32>
    %246 = vector.shape_cast %245 : vector<48xf32> to vector<48x1xf32>
    %247 = vector.broadcast %246 : vector<48x1xf32> to vector<48x48xf32>
    %248 = arith.subf %244, %247 : vector<48x48xf32>
    %249 = math.exp %248 : vector<48x48xf32>
    %cst_107 = arith.constant dense<0.000000e+00> : vector<48xf32>
    %250 = vector.multi_reduction <add>, %249, %cst_107 [1] : vector<48x48xf32> to vector<48xf32>
    %251 = vector.shape_cast %250 : vector<48xf32> to vector<48x1xf32>
    %252 = tpu.reciprocal %251 {approx = true} : vector<48x1xf32> -> vector<48x1xf32>
    %253 = vector.broadcast %252 : vector<48x1xf32> to vector<48x48xf32>
    %254 = arith.mulf %249, %253 : vector<48x48xf32>
    %cst_108 = arith.constant dense<0.000000e+00> : vector<48x8xf32>
    %255 = tpu.matmul %254, %242, %cst_108 {dimension_numbers = #tpu.dot_dimension_numbers<[1], [0], [0], [1], [0, 0, 1, 1], [], []>} : vector<48x48xf32>, vector<48x8xf32>, vector<48x8xf32> -> vector<48x8xf32>
    %256 = vector.extract_strided_slice %223 {offsets = [0, 16], sizes = [48, 8], strides = [1, 1]} : vector<48x128xf32> to vector<48x8xf32>
    %257 = vector.extract_strided_slice %223 {offsets = [0, 48], sizes = [48, 8], strides = [1, 1]} : vector<48x128xf32> to vector<48x8xf32>
    %258 = vector.extract_strided_slice %223 {offsets = [0, 80], sizes = [48, 8], strides = [1, 1]} : vector<48x128xf32> to vector<48x8xf32>
    %cst_109 = arith.constant dense<0.000000e+00> : vector<48x48xf32>
    %259 = tpu.matmul %256, %257, %cst_109 {dimension_numbers = #tpu.dot_dimension_numbers<[1], [1], [0], [0], [0, 0, 1, 0], [], []>} : vector<48x8xf32>, vector<48x8xf32>, vector<48x48xf32> -> vector<48x48xf32>
    %260 = arith.addf %259, %5 : vector<48x48xf32>
    %cst_110 = arith.constant dense<0xFF800000> : vector<48xf32>
    %261 = vector.multi_reduction <maximumf>, %260, %cst_110 [1] : vector<48x48xf32> to vector<48xf32>
    %262 = vector.shape_cast %261 : vector<48xf32> to vector<48x1xf32>
    %263 = vector.broadcast %262 : vector<48x1xf32> to vector<48x48xf32>
    %264 = arith.subf %260, %263 : vector<48x48xf32>
    %265 = math.exp %264 : vector<48x48xf32>
    %cst_111 = arith.constant dense<0.000000e+00> : vector<48xf32>
    %266 = vector.multi_reduction <add>, %265, %cst_111 [1] : vector<48x48xf32> to vector<48xf32>
    %267 = vector.shape_cast %266 : vector<48xf32> to vector<48x1xf32>
    %268 = tpu.reciprocal %267 {approx = true} : vector<48x1xf32> -> vector<48x1xf32>
    %269 = vector.broadcast %268 : vector<48x1xf32> to vector<48x48xf32>
    %270 = arith.mulf %265, %269 : vector<48x48xf32>
    %cst_112 = arith.constant dense<0.000000e+00> : vector<48x8xf32>
    %271 = tpu.matmul %270, %258, %cst_112 {dimension_numbers = #tpu.dot_dimension_numbers<[1], [0], [0], [1], [0, 0, 1, 1], [], []>} : vector<48x48xf32>, vector<48x8xf32>, vector<48x8xf32> -> vector<48x8xf32>
    %272 = vector.extract_strided_slice %223 {offsets = [0, 24], sizes = [48, 8], strides = [1, 1]} : vector<48x128xf32> to vector<48x8xf32>
    %273 = vector.extract_strided_slice %223 {offsets = [0, 56], sizes = [48, 8], strides = [1, 1]} : vector<48x128xf32> to vector<48x8xf32>
    %274 = vector.extract_strided_slice %223 {offsets = [0, 88], sizes = [48, 8], strides = [1, 1]} : vector<48x128xf32> to vector<48x8xf32>
    %cst_113 = arith.constant dense<0.000000e+00> : vector<48x48xf32>
    %275 = tpu.matmul %272, %273, %cst_113 {dimension_numbers = #tpu.dot_dimension_numbers<[1], [1], [0], [0], [0, 0, 1, 0], [], []>} : vector<48x8xf32>, vector<48x8xf32>, vector<48x48xf32> -> vector<48x48xf32>
    %276 = arith.addf %275, %5 : vector<48x48xf32>
    %cst_114 = arith.constant dense<0xFF800000> : vector<48xf32>
    %277 = vector.multi_reduction <maximumf>, %276, %cst_114 [1] : vector<48x48xf32> to vector<48xf32>
    %278 = vector.shape_cast %277 : vector<48xf32> to vector<48x1xf32>
    %279 = vector.broadcast %278 : vector<48x1xf32> to vector<48x48xf32>
    %280 = arith.subf %276, %279 : vector<48x48xf32>
    %281 = math.exp %280 : vector<48x48xf32>
    %cst_115 = arith.constant dense<0.000000e+00> : vector<48xf32>
    %282 = vector.multi_reduction <add>, %281, %cst_115 [1] : vector<48x48xf32> to vector<48xf32>
    %283 = vector.shape_cast %282 : vector<48xf32> to vector<48x1xf32>
    %284 = tpu.reciprocal %283 {approx = true} : vector<48x1xf32> -> vector<48x1xf32>
    %285 = vector.broadcast %284 : vector<48x1xf32> to vector<48x48xf32>
    %286 = arith.mulf %281, %285 : vector<48x48xf32>
    %cst_116 = arith.constant dense<0.000000e+00> : vector<48x8xf32>
    %287 = tpu.matmul %286, %274, %cst_116 {dimension_numbers = #tpu.dot_dimension_numbers<[1], [0], [0], [1], [0, 0, 1, 1], [], []>} : vector<48x48xf32>, vector<48x8xf32>, vector<48x8xf32> -> vector<48x8xf32>
    %288 = tpu.concatenate %239, %255, %271, %287 in 1 : vector<48x8xf32>, vector<48x8xf32>, vector<48x8xf32>, vector<48x8xf32> -> vector<48x32xf32>
    %c1_117 = arith.constant 1 : index
    %c0_118 = arith.constant 0 : index
    %c0_119 = arith.constant 0 : index
    %289 = vector.load %arg10[%c1_117, %c0_118, %c0_119] : memref<2x32x128xf32, #tpu.memory_space<vmem>>, vector<1x32x128xf32>
    %290 = vector.shape_cast %289 : vector<1x32x128xf32> to vector<32x128xf32>
    %cst_120 = arith.constant dense<0.000000e+00> : vector<48x128xf32>
    %291 = tpu.matmul %288, %290, %cst_120 {dimension_numbers = #tpu.dot_dimension_numbers<[1], [0], [0], [1], [0, 0, 1, 1], [], []>} : vector<48x32xf32>, vector<32x128xf32>, vector<48x128xf32> -> vector<48x128xf32>
    %c1_121 = arith.constant 1 : index
    %c0_122 = arith.constant 0 : index
    %c0_123 = arith.constant 0 : index
    %292 = vector.load %arg11[%c1_121, %c0_122, %c0_123] : memref<2x1x128xf32, #tpu.memory_space<vmem>>, vector<1x1x128xf32>
    %293 = vector.shape_cast %292 : vector<1x1x128xf32> to vector<1x128xf32>
    %294 = vector.broadcast %293 : vector<1x128xf32> to vector<48x128xf32>
    %295 = arith.addf %291, %294 : vector<48x128xf32>
    %296 = arith.addf %190, %295 : vector<48x128xf32>
    %c1_124 = arith.constant 1 : index
    %c0_125 = arith.constant 0 : index
    %c0_126 = arith.constant 0 : index
    %297 = vector.load %arg12[%c1_124, %c0_125, %c0_126] : memref<2x1x128xf32, #tpu.memory_space<vmem>>, vector<1x1x128xf32>
    %298 = vector.shape_cast %297 : vector<1x1x128xf32> to vector<1x128xf32>
    %c1_127 = arith.constant 1 : index
    %c0_128 = arith.constant 0 : index
    %c0_129 = arith.constant 0 : index
    %299 = vector.load %arg13[%c1_127, %c0_128, %c0_129] : memref<2x1x128xf32, #tpu.memory_space<vmem>>, vector<1x1x128xf32>
    %300 = vector.shape_cast %299 : vector<1x1x128xf32> to vector<1x128xf32>
    %cst_130 = arith.constant dense<0.000000e+00> : vector<48xf32>
    %301 = vector.multi_reduction <add>, %296, %cst_130 [1] : vector<48x128xf32> to vector<48xf32>
    %302 = vector.shape_cast %301 : vector<48xf32> to vector<48x1xf32>
    %cst_131 = arith.constant 3.125000e-02 : f32
    %303 = vector.broadcast %cst_131 : f32 to vector<48x1xf32>
    %304 = arith.mulf %302, %303 : vector<48x1xf32>
    %305 = vector.broadcast %304 : vector<48x1xf32> to vector<48x128xf32>
    %306 = arith.subf %296, %305 : vector<48x128xf32>
    %307 = vector.broadcast %4 : vector<1x128xf32> to vector<48x128xf32>
    %308 = arith.mulf %306, %307 : vector<48x128xf32>
    %309 = arith.mulf %308, %308 : vector<48x128xf32>
    %cst_132 = arith.constant dense<0.000000e+00> : vector<48xf32>
    %310 = vector.multi_reduction <add>, %309, %cst_132 [1] : vector<48x128xf32> to vector<48xf32>
    %311 = vector.shape_cast %310 : vector<48xf32> to vector<48x1xf32>
    %cst_133 = arith.constant 3.125000e-02 : f32
    %312 = vector.broadcast %cst_133 : f32 to vector<48x1xf32>
    %313 = arith.mulf %311, %312 : vector<48x1xf32>
    %cst_134 = arith.constant 9.99999974E-6 : f32
    %314 = vector.broadcast %cst_134 : f32 to vector<48x1xf32>
    %315 = arith.addf %313, %314 : vector<48x1xf32>
    %316 = math.rsqrt %315 : vector<48x1xf32>
    %317 = vector.broadcast %316 : vector<48x1xf32> to vector<48x128xf32>
    %318 = arith.mulf %308, %317 : vector<48x128xf32>
    %319 = vector.broadcast %298 : vector<1x128xf32> to vector<48x128xf32>
    %320 = arith.mulf %318, %319 : vector<48x128xf32>
    %321 = vector.broadcast %300 : vector<1x128xf32> to vector<48x128xf32>
    %322 = arith.addf %320, %321 : vector<48x128xf32>
    %c1_135 = arith.constant 1 : index
    %c0_136 = arith.constant 0 : index
    %c0_137 = arith.constant 0 : index
    %323 = vector.load %arg14[%c1_135, %c0_136, %c0_137] : memref<2x128x128xf32, #tpu.memory_space<vmem>>, vector<1x128x128xf32>
    %324 = vector.shape_cast %323 : vector<1x128x128xf32> to vector<128x128xf32>
    %cst_138 = arith.constant dense<0.000000e+00> : vector<48x128xf32>
    %325 = tpu.matmul %322, %324, %cst_138 {dimension_numbers = #tpu.dot_dimension_numbers<[1], [0], [0], [1], [0, 0, 1, 1], [], []>} : vector<48x128xf32>, vector<128x128xf32>, vector<48x128xf32> -> vector<48x128xf32>
    %c1_139 = arith.constant 1 : index
    %c0_140 = arith.constant 0 : index
    %c0_141 = arith.constant 0 : index
    %326 = vector.load %arg15[%c1_139, %c0_140, %c0_141] : memref<2x1x128xf32, #tpu.memory_space<vmem>>, vector<1x1x128xf32>
    %327 = vector.shape_cast %326 : vector<1x1x128xf32> to vector<1x128xf32>
    %328 = vector.broadcast %327 : vector<1x128xf32> to vector<48x128xf32>
    %329 = arith.addf %325, %328 : vector<48x128xf32>
    %cst_142 = arith.constant 1.702000e+00 : f32
    %330 = vector.broadcast %cst_142 : f32 to vector<48x128xf32>
    %331 = arith.mulf %330, %329 : vector<48x128xf32>
    %332 = arith.negf %331 : vector<48x128xf32>
    %333 = math.exp %332 : vector<48x128xf32>
    %cst_143 = arith.constant 1.000000e+00 : f32
    %334 = vector.broadcast %cst_143 : f32 to vector<48x128xf32>
    %335 = arith.addf %334, %333 : vector<48x128xf32>
    %336 = arith.divf %334, %335 : vector<48x128xf32>
    %337 = arith.mulf %329, %336 : vector<48x128xf32>
    %c1_144 = arith.constant 1 : index
    %c0_145 = arith.constant 0 : index
    %c0_146 = arith.constant 0 : index
    %338 = vector.load %arg16[%c1_144, %c0_145, %c0_146] : memref<2x128x128xf32, #tpu.memory_space<vmem>>, vector<1x128x128xf32>
    %339 = vector.shape_cast %338 : vector<1x128x128xf32> to vector<128x128xf32>
    %cst_147 = arith.constant dense<0.000000e+00> : vector<48x128xf32>
    %340 = tpu.matmul %337, %339, %cst_147 {dimension_numbers = #tpu.dot_dimension_numbers<[1], [0], [0], [1], [0, 0, 1, 1], [], []>} : vector<48x128xf32>, vector<128x128xf32>, vector<48x128xf32> -> vector<48x128xf32>
    %341 = arith.addf %296, %340 : vector<48x128xf32>
    %c1_148 = arith.constant 1 : index
    %c0_149 = arith.constant 0 : index
    %c0_150 = arith.constant 0 : index
    %342 = vector.load %arg17[%c1_148, %c0_149, %c0_150] : memref<2x1x128xf32, #tpu.memory_space<vmem>>, vector<1x1x128xf32>
    %343 = vector.shape_cast %342 : vector<1x1x128xf32> to vector<1x128xf32>
    %344 = vector.broadcast %343 : vector<1x128xf32> to vector<48x128xf32>
    %345 = arith.addf %341, %344 : vector<48x128xf32>
    %c0_151 = arith.constant 0 : index
    %c0_152 = arith.constant 0 : index
    %346 = vector.load %arg20[%c0_151, %c0_152] : memref<48x128xf32, #tpu.memory_space<vmem>>, vector<48x128xf32>
    tpu.vector_store %arg20[%c0_151, %c0_152], %345 {strides = array<i32>} : memref<48x128xf32, #tpu.memory_space<vmem>>, vector<48x128xf32>,
    %c0_153 = arith.constant 0 : index
    %c0_154 = arith.constant 0 : index
    %347 = vector.load %arg18[%c0_153, %c0_154] : memref<1x128xf32, #tpu.memory_space<vmem>>, vector<1x128xf32>
    %c0_155 = arith.constant 0 : index
    %c0_156 = arith.constant 0 : index
    %348 = vector.load %arg19[%c0_155, %c0_156] : memref<1x128xf32, #tpu.memory_space<vmem>>, vector<1x128xf32>
    %349 = vector.extract_strided_slice %345 {offsets = [0, 0], sizes = [1, 128], strides = [1, 1]} : vector<48x128xf32> to vector<1x128xf32>
    %cst_157 = arith.constant dense<0.000000e+00> : vector<1xf32>
    %350 = vector.multi_reduction <add>, %349, %cst_157 [1] : vector<1x128xf32> to vector<1xf32>
    %351 = vector.shape_cast %350 : vector<1xf32> to vector<1x1xf32>
    %cst_158 = arith.constant 3.125000e-02 : f32
    %352 = vector.broadcast %cst_158 : f32 to vector<1x1xf32>
    %353 = arith.mulf %351, %352 : vector<1x1xf32>
    %354 = vector.broadcast %353 : vector<1x1xf32> to vector<1x128xf32>
    %355 = arith.subf %349, %354 : vector<1x128xf32>
    %356 = arith.mulf %355, %4 : vector<1x128xf32>
    %357 = arith.mulf %356, %356 : vector<1x128xf32>
    %cst_159 = arith.constant dense<0.000000e+00> : vector<1xf32>
    %358 = vector.multi_reduction <add>, %357, %cst_159 [1] : vector<1x128xf32> to vector<1xf32>
    %359 = vector.shape_cast %358 : vector<1xf32> to vector<1x1xf32>
    %cst_160 = arith.constant 3.125000e-02 : f32
    %360 = vector.broadcast %cst_160 : f32 to vector<1x1xf32>
    %361 = arith.mulf %359, %360 : vector<1x1xf32>
    %cst_161 = arith.constant 9.99999974E-6 : f32
    %362 = vector.broadcast %cst_161 : f32 to vector<1x1xf32>
    %363 = arith.addf %361, %362 : vector<1x1xf32>
    %364 = math.rsqrt %363 : vector<1x1xf32>
    %365 = vector.broadcast %364 : vector<1x1xf32> to vector<1x128xf32>
    %366 = arith.mulf %356, %365 : vector<1x128xf32>
    %367 = arith.mulf %366, %347 : vector<1x128xf32>
    %368 = arith.addf %367, %348 : vector<1x128xf32>
    %c0_162 = arith.constant 0 : index
    %c0_163 = arith.constant 0 : index
    %369 = vector.load %arg21[%c0_162, %c0_163] : memref<2x128xf32, #tpu.memory_space<vmem>>, vector<1x128xf32>
    tpu.vector_store %arg21[%c0_162, %c0_163], %368 {strides = array<i32>} : memref<2x128xf32, #tpu.memory_space<vmem>>, vector<1x128xf32>,
    %370 = vector.extract_strided_slice %345 {offsets = [24, 0], sizes = [1, 128], strides = [1, 1]} : vector<48x128xf32> to vector<1x128xf32>
    %cst_164 = arith.constant dense<0.000000e+00> : vector<1xf32>
    %371 = vector.multi_reduction <add>, %370, %cst_164 [1] : vector<1x128xf32> to vector<1xf32>
    %372 = vector.shape_cast %371 : vector<1xf32> to vector<1x1xf32>
    %cst_165 = arith.constant 3.125000e-02 : f32
    %373 = vector.broadcast %cst_165 : f32 to vector<1x1xf32>
    %374 = arith.mulf %372, %373 : vector<1x1xf32>
    %375 = vector.broadcast %374 : vector<1x1xf32> to vector<1x128xf32>
    %376 = arith.subf %370, %375 : vector<1x128xf32>
    %377 = arith.mulf %376, %4 : vector<1x128xf32>
    %378 = arith.mulf %377, %377 : vector<1x128xf32>
    %cst_166 = arith.constant dense<0.000000e+00> : vector<1xf32>
    %379 = vector.multi_reduction <add>, %378, %cst_166 [1] : vector<1x128xf32> to vector<1xf32>
    %380 = vector.shape_cast %379 : vector<1xf32> to vector<1x1xf32>
    %cst_167 = arith.constant 3.125000e-02 : f32
    %381 = vector.broadcast %cst_167 : f32 to vector<1x1xf32>
    %382 = arith.mulf %380, %381 : vector<1x1xf32>
    %cst_168 = arith.constant 9.99999974E-6 : f32
    %383 = vector.broadcast %cst_168 : f32 to vector<1x1xf32>
    %384 = arith.addf %382, %383 : vector<1x1xf32>
    %385 = math.rsqrt %384 : vector<1x1xf32>
    %386 = vector.broadcast %385 : vector<1x1xf32> to vector<1x128xf32>
    %387 = arith.mulf %377, %386 : vector<1x128xf32>
    %388 = arith.mulf %387, %347 : vector<1x128xf32>
    %389 = arith.addf %388, %348 : vector<1x128xf32>
    %c1_169 = arith.constant 1 : index
    %c0_170 = arith.constant 0 : index
    %390 = vector.load %arg21[%c1_169, %c0_170] : memref<2x128xf32, #tpu.memory_space<vmem>>, vector<1x128xf32>
    tpu.vector_store %arg21[%c1_169, %c0_170], %389 {strides = array<i32>} : memref<2x128xf32, #tpu.memory_space<vmem>>, vector<1x128xf32>,
    return
  }
}

</mosaic_0001>

<llo_original>
// kernel: _lambda_.1
$region0: #{_lambda_.1}
  #allocation0 [shape = 'u32[]', space=smem, size = 0x4, offset = 0x4, fixed_abs, tag = 'smem constant byte address 0x4 - core index']
  #allocation1 [shape = 'u32[144,128]{1,0:T(1,128)}', space=vmem, size = 0x12000, scoped, tag = 'internal scratch']
  %s0 = inlined_call_operand.vmem [shape: f32[48,128], index: 0, kind: input, shape index: {}]
  %s1 = inlined_call_operand.vmem [shape: f32[48,48], index: 1, kind: input, shape index: {}]
  %s2 = inlined_call_operand.vmem [shape: f32[24,128], index: 2, kind: input, shape index: {}]
  %s3 = inlined_call_operand.vmem [shape: f32[128,128], index: 3, kind: input, shape index: {}]
  %s4 = inlined_call_operand.vmem [shape: f32[1,128], index: 4, kind: input, shape index: {}]
  %s5 = inlined_call_operand.vmem [shape: f32[1,128], index: 5, kind: input, shape index: {}]
  %s6 = inlined_call_operand.vmem [shape: f32[2,1,128], index: 6, kind: input, shape index: {}]
  %s7 = inlined_call_operand.vmem [shape: f32[2,1,128], index: 7, kind: input, shape index: {}]
  %s8 = inlined_call_operand.vmem [shape: f32[2,128,128], index: 8, kind: input, shape index: {}]
  %s9 = inlined_call_operand.vmem [shape: f32[2,1,128], index: 9, kind: input, shape index: {}]
  %s10 = inlined_call_operand.vmem [shape: f32[2,32,128], index: 10, kind: input, shape index: {}]
  %s11 = inlined_call_operand.vmem [shape: f32[2,1,128], index: 11, kind: input, shape index: {}]
  %s12 = inlined_call_operand.vmem [shape: f32[2,1,128], index: 12, kind: input, shape index: {}]
  %s13 = inlined_call_operand.vmem [shape: f32[2,1,128], index: 13, kind: input, shape index: {}]
  %s14 = inlined_call_operand.vmem [shape: f32[2,128,128], index: 14, kind: input, shape index: {}]
  %s15 = inlined_call_operand.vmem [shape: f32[2,1,128], index: 15, kind: input, shape index: {}]
  %s16 = inlined_call_operand.vmem [shape: f32[2,128,128], index: 16, kind: input, shape index: {}]
  %s17 = inlined_call_operand.vmem [shape: f32[2,1,128], index: 17, kind: input, shape index: {}]
  %s18 = inlined_call_operand.vmem [shape: f32[1,128], index: 18, kind: input, shape index: {}]
  %s19 = inlined_call_operand.vmem [shape: f32[1,128], index: 19, kind: input, shape index: {}]
  %s20 = inlined_call_operand.vmem [shape: f32[48,128], index: 20, kind: output, shape index: {0}]
  %s21 = inlined_call_operand.hbm [shape: f32[2,128], index: 21, kind: output, shape index: {1}]
  %22 = xla_tuple %s20, %s21
  %s23 = sld [smem:[#allocation0]]
  $region98: #{_lambda_.1} parent=0
    _
  %s25 = ssub.s32 1, %s23
  %s26 = scalar_select 0, %s25, %s23
  $region1: #{_lambda_.1} parent=0
    #allocation2 [shape = 'u8[1024]{0}', space=vmem, size = 0x400, scoped, tag = 'output window, operand 1, single buffered']
    #allocation3 [shape = 's32[1]{0}', space=sflag, size = 0x4, scoped, tag = 'scoped memory for _lambda_.1']
    %27 = vsyncpa [#allocation3], 0
    // Predicated region
    $region2: #{_lambda_.1} parent=1 // pred_check
      _
    $region3: #{_lambda_.1} parent=1 // pred_check_branch
      %29 = sbr.rel (0) target = $region5
    $region4: #{_lambda_.1} parent=1 // pred_region
      _
    $region5: #{_lambda_.1} parent=1 // pred_fallthru
      _
    // Predicated region
    $region6: #{_lambda_.1} parent=1 // pred_check
      _
    $region7: #{_lambda_.1} parent=1 // pred_check_branch
      %31 = sbr.rel (0) target = $region9
    $region8: #{_lambda_.1} parent=1 // pred_region
      _
    $region9: #{_lambda_.1} parent=1 // pred_fallthru
      _
    // Predicated region
    $region10: #{_lambda_.1} parent=1 // pred_check
      _
    $region11: #{_lambda_.1} parent=1 // pred_check_branch
      %33 = sbr.rel (0) target = $region13
    $region12: #{_lambda_.1} parent=1 // pred_region
      _
    $region13: #{_lambda_.1} parent=1 // pred_fallthru
      _
    // Predicated region
    $region14: #{_lambda_.1} parent=1 // pred_check
      _
    $region15: #{_lambda_.1} parent=1 // pred_check_branch
      %35 = sbr.rel (0) target = $region17
    $region16: #{_lambda_.1} parent=1 // pred_region
      _
    $region17: #{_lambda_.1} parent=1 // pred_fallthru
      _
    // Predicated region
    $region18: #{_lambda_.1} parent=1 // pred_check
      _
    $region19: #{_lambda_.1} parent=1 // pred_check_branch
      %37 = sbr.rel (0) target = $region21
    $region20: #{_lambda_.1} parent=1 // pred_region
      _
    $region21: #{_lambda_.1} parent=1 // pred_fallthru
      _
    // Predicated region
    $region22: #{_lambda_.1} parent=1 // pred_check
      _
    $region23: #{_lambda_.1} parent=1 // pred_check_branch
      %39 = sbr.rel (0) target = $region25
    $region24: #{_lambda_.1} parent=1 // pred_region
      _
    $region25: #{_lambda_.1} parent=1 // pred_fallthru
      _
    // Predicated region
    $region26: #{_lambda_.1} parent=1 // pred_check
      _
    $region27: #{_lambda_.1} parent=1 // pred_check_branch
      %41 = sbr.rel (0) target = $region29
    $region28: #{_lambda_.1} parent=1 // pred_region
      _
    $region29: #{_lambda_.1} parent=1 // pred_fallthru
      _
    // Predicated region
    $region30: #{_lambda_.1} parent=1 // pred_check
      _
    $region31: #{_lambda_.1} parent=1 // pred_check_branch
      %43 = sbr.rel (0) target = $region33
    $region32: #{_lambda_.1} parent=1 // pred_region
      _
    $region33: #{_lambda_.1} parent=1 // pred_fallthru
      _
    // Predicated region
    $region34: #{_lambda_.1} parent=1 // pred_check
      _
    $region35: #{_lambda_.1} parent=1 // pred_check_branch
      %45 = sbr.rel (0) target = $region37
    $region36: #{_lambda_.1} parent=1 // pred_region
      _
    $region37: #{_lambda_.1} parent=1 // pred_fallthru
      _
    // Predicated region
    $region38: #{_lambda_.1} parent=1 // pred_check
      _
    $region39: #{_lambda_.1} parent=1 // pred_check_branch
      %47 = sbr.rel (0) target = $region41
    $region40: #{_lambda_.1} parent=1 // pred_region
      _
    $region41: #{_lambda_.1} parent=1 // pred_fallthru
      _
    // Predicated region
    $region42: #{_lambda_.1} parent=1 // pred_check
      _
    $region43: #{_lambda_.1} parent=1 // pred_check_branch
      %49 = sbr.rel (0) target = $region45
    $region44: #{_lambda_.1} parent=1 // pred_region
      _
    $region45: #{_lambda_.1} parent=1 // pred_fallthru
      _
    // Predicated region
    $region46: #{_lambda_.1} parent=1 // pred_check
      _
    $region47: #{_lambda_.1} parent=1 // pred_check_branch
      %51 = sbr.rel (0) target = $region49
    $region48: #{_lambda_.1} parent=1 // pred_region
      _
    $region49: #{_lambda_.1} parent=1 // pred_fallthru
      _
    // Predicated region
    $region50: #{_lambda_.1} parent=1 // pred_check
      _
    $region51: #{_lambda_.1} parent=1 // pred_check_branch
      %53 = sbr.rel (0) target = $region53
    $region52: #{_lambda_.1} parent=1 // pred_region
      _
    $region53: #{_lambda_.1} parent=1 // pred_fallthru
      _
    // Predicated region
    $region54: #{_lambda_.1} parent=1 // pred_check
      _
    $region55: #{_lambda_.1} parent=1 // pred_check_branch
      %55 = sbr.rel (0) target = $region57
    $region56: #{_lambda_.1} parent=1 // pred_region
      _
    $region57: #{_lambda_.1} parent=1 // pred_fallthru
      _
    // Predicated region
    $region58: #{_lambda_.1} parent=1 // pred_check
      _
    $region59: #{_lambda_.1} parent=1 // pred_check_branch
      %57 = sbr.rel (0) target = $region61
    $region60: #{_lambda_.1} parent=1 // pred_region
      _
    $region61: #{_lambda_.1} parent=1 // pred_fallthru
      _
    // Predicated region
    $region62: #{_lambda_.1} parent=1 // pred_check
      _
    $region63: #{_lambda_.1} parent=1 // pred_check_branch
      %59 = sbr.rel (0) target = $region65
    $region64: #{_lambda_.1} parent=1 // pred_region
      _
    $region65: #{_lambda_.1} parent=1 // pred_fallthru
      _
    // Predicated region
    $region66: #{_lambda_.1} parent=1 // pred_check
      _
    $region67: #{_lambda_.1} parent=1 // pred_check_branch
      %61 = sbr.rel (0) target = $region69
    $region68: #{_lambda_.1} parent=1 // pred_region
      _
    $region69: #{_lambda_.1} parent=1 // pred_fallthru
      _
    // Predicated region
    $region70: #{_lambda_.1} parent=1 // pred_check
      _
    $region71: #{_lambda_.1} parent=1 // pred_check_branch
      %63 = sbr.rel (0) target = $region73
    $region72: #{_lambda_.1} parent=1 // pred_region
      _
    $region73: #{_lambda_.1} parent=1 // pred_fallthru
      _
    // Predicated region
    $region74: #{_lambda_.1} parent=1 // pred_check
      _
    $region75: #{_lambda_.1} parent=1 // pred_check_branch
      %65 = sbr.rel (0) target = $region77
    $region76: #{_lambda_.1} parent=1 // pred_region
      _
    $region77: #{_lambda_.1} parent=1 // pred_fallthru
      _
    // Predicated region
    $region78: #{_lambda_.1} parent=1 // pred_check
      _
    $region79: #{_lambda_.1} parent=1 // pred_check_branch
      %67 = sbr.rel (0) target = $region81
    $region80: #{_lambda_.1} parent=1 // pred_region
      _
    $region81: #{_lambda_.1} parent=1 // pred_fallthru
      _
    %v68 = vlaneseq
    %v69 = vand.u32 %v68, 127
    %vm70 = vcmp.lt.s32.totalorder %v69, 32
    %v71 = vsel %vm70, 1, 0
    %v72 = vcvt.s32.f32 %v71
    %v73 = vld [vmem:[%s1] sm:$0xff]
    %v74 = vld [vmem:[%s1 + $0x8] sm:$0xff]
    %v75 = vld [vmem:[%s1 + $0x10] sm:$0xff]
    %v76 = vld [vmem:[%s1 + $0x18] sm:$0xff]
    %v77 = vld [vmem:[%s1 + $0x20] sm:$0xff]
    %v78 = vld [vmem:[%s1 + $0x28] sm:$0xff]
    %v79 = vld [vmem:[%s2] sm:$0xff]
    %v80 = vld [vmem:[%s2 + $0x8] sm:$0xff]
    %v81 = vld [vmem:[%s2 + $0x10] sm:$0xff]
    %v82 = vld [vmem:[%s0] sm:$0xff]
    %v83 = vld [vmem:[%s0 + $0x8] sm:$0xff]
    %v84 = vld [vmem:[%s0 + $0x10] sm:$0xff]
    %v85 = vld [vmem:[%s0 + $0x18] sm:$0xff]
    %v86 = vld [vmem:[%s0 + $0x20] sm:$0xff]
    %v87 = vld [vmem:[%s0 + $0x28] sm:$0xff]
    %v88 = vld [vmem:[%s3] sm:$0xff]
    %v89 = vld [vmem:[%s3 + $0x8] sm:$0xff]
    %v90 = vld [vmem:[%s3 + $0x10] sm:$0xff]
    %v91 = vld [vmem:[%s3 + $0x18] sm:$0xff]
    %v92 = vld [vmem:[%s3 + $0x20] sm:$0xff]
    %v93 = vld [vmem:[%s3 + $0x28] sm:$0xff]
    %v94 = vld [vmem:[%s3 + $0x30] sm:$0xff]
    %v95 = vld [vmem:[%s3 + $0x38] sm:$0xff]
    %v96 = vld [vmem:[%s3 + $0x40] sm:$0xff]
    %v97 = vld [vmem:[%s3 + $0x48] sm:$0xff]
    %v98 = vld [vmem:[%s3 + $0x50] sm:$0xff]
    %v99 = vld [vmem:[%s3 + $0x58] sm:$0xff]
    %v100 = vld [vmem:[%s3 + $0x60] sm:$0xff]
    %v101 = vld [vmem:[%s3 + $0x68] sm:$0xff]
    %v102 = vld [vmem:[%s3 + $0x70] sm:$0xff]
    %v103 = vld [vmem:[%s3 + $0x78] sm:$0xff]
    %104 = vmatprep.subr.mxu0 0.0
    %105 = vmatpush1.msra.mxu0 %v103
    %106 = vmatprep.subr.mxu0 0.0
    %107 = vmatpush1.msra.mxu0 %v102
    %108 = vmatprep.subr.mxu0 0.0
    %109 = vmatpush1.msra.mxu0 %v101
    %110 = vmatprep.subr.mxu0 0.0
    %111 = vmatpush1.msra.mxu0 %v100
    %112 = vmatprep.subr.mxu0 0.0
    %113 = vmatpush1.msra.mxu0 %v99
    %114 = vmatprep.subr.mxu0 0.0
    %115 = vmatpush1.msra.mxu0 %v98
    %116 = vmatprep.subr.mxu0 0.0
    %117 = vmatpush1.msra.mxu0 %v97
    %118 = vmatprep.subr.mxu0 0.0
    %119 = vmatpush1.msra.mxu0 %v96
    %120 = vmatprep.subr.mxu0 0.0
    %121 = vmatpush1.msra.mxu0 %v95
    %122 = vmatprep.subr.mxu0 0.0
    %123 = vmatpush1.msra.mxu0 %v94
    %124 = vmatprep.subr.mxu0 0.0
    %125 = vmatpush1.msra.mxu0 %v93
    %126 = vmatprep.subr.mxu0 0.0
    %127 = vmatpush1.msra.mxu0 %v92
    %128 = vmatprep.subr.mxu0 0.0
    %129 = vmatpush1.msra.mxu0 %v91
    %130 = vmatprep.subr.mxu0 0.0
    %131 = vmatpush1.msra.mxu0 %v90
    %132 = vmatprep.subr.mxu0 0.0
    %133 = vmatpush1.msra.mxu0 %v89
    %134 = vmatprep.subr.mxu0 0.0
    %135 = vmatpush1.msra.mxu0 %v88
    %136 = vmatprep.subr.mxu0 0.0
    %137 = vmatpush2.msra.mxu0 0.0
    %138 = vmatprep.subr.mxu0 0.0
    %139 = vmatpush2.msra.mxu0 0.0
    %140 = vmatprep.subr.mxu0 0.0
    %141 = vmatpush2.msra.mxu0 0.0
    %142 = vmatprep.subr.mxu0 0.0
    %143 = vmatpush2.msra.mxu0 0.0
    %144 = vmatprep.subr.mxu0 0.0
    %145 = vmatpush2.msra.mxu0 0.0
    %146 = vmatprep.subr.mxu0 0.0
    %147 = vmatpush2.msra.mxu0 0.0
    %148 = vmatprep.subr.mxu0 0.0
    %149 = vmatpush2.msra.mxu0 0.0
    %150 = vmatprep.subr.mxu0 0.0
    %151 = vmatpush2.msra.mxu0 0.0
    %152 = vmatprep.subr.mxu0 0.0
    %153 = vmatpush2.msra.mxu0 0.0
    %154 = vmatprep.subr.mxu0 0.0
    %155 = vmatpush2.msra.mxu0 0.0
    %156 = vmatprep.subr.mxu0 0.0
    %157 = vmatpush2.msra.mxu0 0.0
    %158 = vmatprep.subr.mxu0 0.0
    %159 = vmatpush2.msra.mxu0 0.0
    %160 = vmatprep.subr.mxu0 0.0
    %161 = vmatpush2.msra.mxu0 0.0
    %162 = vmatprep.subr.mxu0 0.0
    %163 = vmatpush2.msra.mxu0 0.0
    %164 = vmatprep.subr.mxu0 0.0
    %165 = vmatpush2.msra.mxu0 0.0
    %166 = vmatprep.subr.mxu0 0.0
    %167 = vmatpush2.msra.mxu0 0.0
    %168 = vmatprep.mubr.f32.mxu0 0.0
    %169 = vmatmul.mubr.f32.gmra.mxu0 %v82
    %v170 = vpop.f32.mrf.mxu0
    %v171 = vadd.f32 %v79, %v170
    %v172 = vpop.f32.mrf.mxu0
    %173 = vmatprep.mubr.f32.mxu0 0.0
    %174 = vmatmul.mubr.f32.gmra.mxu0 %v83
    %v175 = vpop.f32.mrf.mxu0
    %v176 = vadd.f32 %v80, %v175
    %v177 = vpop.f32.mrf.mxu0
    %178 = vmatprep.mubr.f32.mxu0 0.0
    %179 = vmatmul.mubr.f32.gmra.mxu0 %v84
    %v180 = vpop.f32.mrf.mxu0
    %v181 = vadd.f32 %v81, %v180
    %v182 = vpop.f32.mrf.mxu0
    %183 = vmatprep.mubr.f32.mxu0 0.0
    %184 = vmatmul.mubr.f32.gmra.mxu0 %v85
    %v185 = vpop.f32.mrf.mxu0
    %v186 = vadd.f32 %v79, %v185
    %v187 = vpop.f32.mrf.mxu0
    %188 = vmatprep.mubr.f32.mxu0 0.0
    %189 = vmatmul.mubr.f32.gmra.mxu0 %v86
    %v190 = vpop.f32.mrf.mxu0
    %v191 = vadd.f32 %v80, %v190
    %v192 = vpop.f32.mrf.mxu0
    %193 = vmatprep.mubr.f32.mxu0 0.0
    %194 = vmatmul.mubr.f32.gmra.mxu0 %v87
    %v195 = vpop.f32.mrf.mxu0
    %v196 = vadd.f32 %v81, %v195
    %v197 = vpop.f32.mrf.mxu0
    %198 = vdwg.mxu0
    %v199 = vld [vmem:[%s4] sm:$0x1]
    %v200 = vld [vmem:[%s5] sm:$0x1]
    %201 = vadd.xlane.f32.xlu0 %v171
    %v202 = vpop.xlane.xlu0 %201
    %203 = vadd.xlane.f32.xlu0 %v176
    %v204 = vpop.xlane.xlu0 %203
    %205 = vadd.xlane.f32.xlu0 %v181
    %v206 = vpop.xlane.xlu0 %205
    %207 = vadd.xlane.f32.xlu0 %v186
    %v208 = vpop.xlane.xlu0 %207
    %209 = vadd.xlane.f32.xlu0 %v191
    %v210 = vpop.xlane.xlu0 %209
    %211 = vadd.xlane.f32.xlu0 %v196
    %v212 = vpop.xlane.xlu0 %211
    %v213 = vmul.f32 %v202, 0.03125
    %v214 = vmul.f32 %v204, 0.03125
    %v215 = vmul.f32 %v206, 0.03125
    %v216 = vmul.f32 %v208, 0.03125
    %v217 = vmul.f32 %v210, 0.03125
    %v218 = vmul.f32 %v212, 0.03125
    %v219 = vsub.f32 %v171, %v213
    %v220 = vsub.f32 %v176, %v214
    %v221 = vsub.f32 %v181, %v215
    %v222 = vsub.f32 %v186, %v216
    %v223 = vsub.f32 %v191, %v217
    %v224 = vsub.f32 %v196, %v218
    %v225 = vmul.f32 %v219, %v72
    %v226 = vmul.f32 %v220, %v72
    %v227 = vmul.f32 %v221, %v72
    %v228 = vmul.f32 %v222, %v72
    %v229 = vmul.f32 %v223, %v72
    %v230 = vmul.f32 %v224, %v72
    %v231 = vmul.f32 %v225, %v225
    %v232 = vmul.f32 %v226, %v226
    %v233 = vmul.f32 %v227, %v227
    %v234 = vmul.f32 %v228, %v228
    %v235 = vmul.f32 %v229, %v229
    %v236 = vmul.f32 %v230, %v230
    %237 = vadd.xlane.f32.xlu0 %v231
    %v238 = vpop.xlane.xlu0 %237
    %239 = vadd.xlane.f32.xlu0 %v232
    %v240 = vpop.xlane.xlu0 %239
    %241 = vadd.xlane.f32.xlu0 %v233
    %v242 = vpop.xlane.xlu0 %241
    %243 = vadd.xlane.f32.xlu0 %v234
    %v244 = vpop.xlane.xlu0 %243
    %245 = vadd.xlane.f32.xlu0 %v235
    %v246 = vpop.xlane.xlu0 %245
    %247 = vadd.xlane.f32.xlu0 %v236
    %v248 = vpop.xlane.xlu0 %247
    %v249 = vmul.f32 %v238, 0.03125
    %v250 = vmul.f32 %v240, 0.03125
    %v251 = vmul.f32 %v242, 0.03125
    %v252 = vmul.f32 %v244, 0.03125
    %v253 = vmul.f32 %v246, 0.03125
    %v254 = vmul.f32 %v248, 0.03125
    %v255 = vadd.f32 %v249, 1e-05
    %v256 = vadd.f32 %v250, 1e-05
    %v257 = vadd.f32 %v251, 1e-05
    %v258 = vadd.f32 %v252, 1e-05
    %v259 = vadd.f32 %v253, 1e-05
    %v260 = vadd.f32 %v254, 1e-05
    %v261 = vrsqrt.pop %v255
    %v262 = vrsqrt.pop %v256
    %v263 = vrsqrt.pop %v257
    %v264 = vrsqrt.pop %v258
    %v265 = vrsqrt.pop %v259
    %v266 = vrsqrt.pop %v260
    %v267 = vmul.f32 %v225, %v261
    %v268 = vmul.f32 %v226, %v262
    %v269 = vmul.f32 %v227, %v263
    %v270 = vmul.f32 %v228, %v264
    %v271 = vmul.f32 %v229, %v265
    %v272 = vmul.f32 %v230, %v266
    %v274 = vlaneseq
    %v275 = vshrl.u32 %v274, 7
    %v276 = vsub.s32 0, %v275
    %v277 = vrot.slane %v199, %v276
    %v279 = vmul.f32 %v267, %v277
    %v280 = vmul.f32 %v268, %v277
    %v281 = vmul.f32 %v269, %v277
    %v282 = vmul.f32 %v270, %v277
    %v283 = vmul.f32 %v271, %v277
    %v284 = vmul.f32 %v272, %v277
    %v286 = vlaneseq
    %v287 = vshrl.u32 %v286, 7
    %v288 = vsub.s32 0, %v287
    %v289 = vrot.slane %v200, %v288
    %v291 = vadd.f32 %v279, %v289
    %v292 = vadd.f32 %v280, %v289
    %v293 = vadd.f32 %v281, %v289
    %v294 = vadd.f32 %v282, %v289
    %v295 = vadd.f32 %v283, %v289
    %v296 = vadd.f32 %v284, %v289
    %v297 = vld [vmem:[%s6] sm:$0x1]
    %v298 = vld [vmem:[%s7] sm:$0x1]
    %299 = vadd.xlane.f32.xlu0 %v291
    %v300 = vpop.xlane.xlu0 %299
    %301 = vadd.xlane.f32.xlu0 %v292
    %v302 = vpop.xlane.xlu0 %301
    %303 = vadd.xlane.f32.xlu0 %v293
    %v304 = vpop.xlane.xlu0 %303
    %305 = vadd.xlane.f32.xlu0 %v294
    %v306 = vpop.xlane.xlu0 %305
    %307 = vadd.xlane.f32.xlu0 %v295
    %v308 = vpop.xlane.xlu0 %307
    %309 = vadd.xlane.f32.xlu0 %v296
    %v310 = vpop.xlane.xlu0 %309
    %v311 = vmul.f32 %v300, 0.03125
    %v312 = vmul.f32 %v302, 0.03125
    %v313 = vmul.f32 %v304, 0.03125
    %v314 = vmul.f32 %v306, 0.03125
    %v315 = vmul.f32 %v308, 0.03125
    %v316 = vmul.f32 %v310, 0.03125
    %v317 = vsub.f32 %v291, %v311
    %v318 = vsub.f32 %v292, %v312
    %v319 = vsub.f32 %v293, %v313
    %v320 = vsub.f32 %v294, %v314
    %v321 = vsub.f32 %v295, %v315
    %v322 = vsub.f32 %v296, %v316
    %v323 = vmul.f32 %v317, %v72
    %v324 = vmul.f32 %v318, %v72
    %v325 = vmul.f32 %v319, %v72
    %v326 = vmul.f32 %v320, %v72
    %v327 = vmul.f32 %v321, %v72
    %v328 = vmul.f32 %v322, %v72
    %v329 = vmul.f32 %v323, %v323
    %v330 = vmul.f32 %v324, %v324
    %v331 = vmul.f32 %v325, %v325
    %v332 = vmul.f32 %v326, %v326
    %v333 = vmul.f32 %v327, %v327
    %v334 = vmul.f32 %v328, %v328
    %335 = vadd.xlane.f32.xlu0 %v329
    %v336 = vpop.xlane.xlu0 %335
    %337 = vadd.xlane.f32.xlu0 %v330
    %v338 = vpop.xlane.xlu0 %337
    %339 = vadd.xlane.f32.xlu0 %v331
    %v340 = vpop.xlane.xlu0 %339
    %341 = vadd.xlane.f32.xlu0 %v332
    %v342 = vpop.xlane.xlu0 %341
    %343 = vadd.xlane.f32.xlu0 %v333
    %v344 = vpop.xlane.xlu0 %343
    %345 = vadd.xlane.f32.xlu0 %v334
    %v346 = vpop.xlane.xlu0 %345
    %v347 = vmul.f32 %v336, 0.03125
    %v348 = vmul.f32 %v338, 0.03125
    %v349 = vmul.f32 %v340, 0.03125
    %v350 = vmul.f32 %v342, 0.03125
    %v351 = vmul.f32 %v344, 0.03125
    %v352 = vmul.f32 %v346, 0.03125
    %v353 = vadd.f32 %v347, 1e-05
    %v354 = vadd.f32 %v348, 1e-05
    %v355 = vadd.f32 %v349, 1e-05
    %v356 = vadd.f32 %v350, 1e-05
    %v357 = vadd.f32 %v351, 1e-05
    %v358 = vadd.f32 %v352, 1e-05
    %v359 = vrsqrt.pop %v353
    %v360 = vrsqrt.pop %v354
    %v361 = vrsqrt.pop %v355
    %v362 = vrsqrt.pop %v356
    %v363 = vrsqrt.pop %v357
    %v364 = vrsqrt.pop %v358
    %v365 = vmul.f32 %v323, %v359
    %v366 = vmul.f32 %v324, %v360
    %v367 = vmul.f32 %v325, %v361
    %v368 = vmul.f32 %v326, %v362
    %v369 = vmul.f32 %v327, %v363
    %v370 = vmul.f32 %v328, %v364
    %v372 = vlaneseq
    %v373 = vshrl.u32 %v372, 7
    %v374 = vsub.s32 0, %v373
    %v375 = vrot.slane %v297, %v374
    %v377 = vmul.f32 %v365, %v375
    %v378 = vmul.f32 %v366, %v375
    %v379 = vmul.f32 %v367, %v375
    %v380 = vmul.f32 %v368, %v375
    %v381 = vmul.f32 %v369, %v375
    %v382 = vmul.f32 %v370, %v375
    %v384 = vlaneseq
    %v385 = vshrl.u32 %v384, 7
    %v386 = vsub.s32 0, %v385
    %v387 = vrot.slane %v298, %v386
    %v389 = vadd.f32 %v377, %v387
    %v390 = vadd.f32 %v378, %v387
    %v391 = vadd.f32 %v379, %v387
    %v392 = vadd.f32 %v380, %v387
    %v393 = vadd.f32 %v381, %v387
    %v394 = vadd.f32 %v382, %v387
    %v395 = vld [vmem:[%s8] sm:$0xff]
    %v396 = vld [vmem:[%s8 + $0x8] sm:$0xff]
    %v397 = vld [vmem:[%s8 + $0x10] sm:$0xff]
    %v398 = vld [vmem:[%s8 + $0x18] sm:$0xff]
    %v399 = vld [vmem:[%s8 + $0x20] sm:$0xff]
    %v400 = vld [vmem:[%s8 + $0x28] sm:$0xff]
    %v401 = vld [vmem:[%s8 + $0x30] sm:$0xff]
    %v402 = vld [vmem:[%s8 + $0x38] sm:$0xff]
    %v403 = vld [vmem:[%s8 + $0x40] sm:$0xff]
    %v404 = vld [vmem:[%s8 + $0x48] sm:$0xff]
    %v405 = vld [vmem:[%s8 + $0x50] sm:$0xff]
    %v406 = vld [vmem:[%s8 + $0x58] sm:$0xff]
    %v407 = vld [vmem:[%s8 + $0x60] sm:$0xff]
    %v408 = vld [vmem:[%s8 + $0x68] sm:$0xff]
    %v409 = vld [vmem:[%s8 + $0x70] sm:$0xff]
    %v410 = vld [vmem:[%s8 + $0x78] sm:$0xff]
    %v411 = vld [vmem:[%s9] sm:$0x1]
    %v413 = vlaneseq
    %v414 = vshrl.u32 %v413, 7
    %v415 = vsub.s32 0, %v414
    %v416 = vrot.slane %v411, %v415
    %418 = vmatprep.subr.mxu0 0.0
    %419 = vmatpush1.msra.mxu0 %v410
    %420 = vmatprep.subr.mxu0 0.0
    %421 = vmatpush1.msra.mxu0 %v409
    %422 = vmatprep.subr.mxu0 0.0
    %423 = vmatpush1.msra.mxu0 %v408
    %424 = vmatprep.subr.mxu0 0.0
    %425 = vmatpush1.msra.mxu0 %v407
    %426 = vmatprep.subr.mxu0 0.0
    %427 = vmatpush1.msra.mxu0 %v406
    %428 = vmatprep.subr.mxu0 0.0
    %429 = vmatpush1.msra.mxu0 %v405
    %430 = vmatprep.subr.mxu0 0.0
    %431 = vmatpush1.msra.mxu0 %v404
    %432 = vmatprep.subr.mxu0 0.0
    %433 = vmatpush1.msra.mxu0 %v403
    %434 = vmatprep.subr.mxu0 0.0
    %435 = vmatpush1.msra.mxu0 %v402
    %436 = vmatprep.subr.mxu0 0.0
    %437 = vmatpush1.msra.mxu0 %v401
    %438 = vmatprep.subr.mxu0 0.0
    %439 = vmatpush1.msra.mxu0 %v400
    %440 = vmatprep.subr.mxu0 0.0
    %441 = vmatpush1.msra.mxu0 %v399
    %442 = vmatprep.subr.mxu0 0.0
    %443 = vmatpush1.msra.mxu0 %v398
    %444 = vmatprep.subr.mxu0 0.0
    %445 = vmatpush1.msra.mxu0 %v397
    %446 = vmatprep.subr.mxu0 0.0
    %447 = vmatpush1.msra.mxu0 %v396
    %448 = vmatprep.subr.mxu0 0.0
    %449 = vmatpush1.msra.mxu0 %v395
    %450 = vmatprep.subr.mxu0 0.0
    %451 = vmatpush2.msra.mxu0 0.0
    %452 = vmatprep.subr.mxu0 0.0
    %453 = vmatpush2.msra.mxu0 0.0
    %454 = vmatprep.subr.mxu0 0.0
    %455 = vmatpush2.msra.mxu0 0.0
    %456 = vmatprep.subr.mxu0 0.0
    %457 = vmatpush2.msra.mxu0 0.0
    %458 = vmatprep.subr.mxu0 0.0
    %459 = vmatpush2.msra.mxu0 0.0
    %460 = vmatprep.subr.mxu0 0.0
    %461 = vmatpush2.msra.mxu0 0.0
    %462 = vmatprep.subr.mxu0 0.0
    %463 = vmatpush2.msra.mxu0 0.0
    %464 = vmatprep.subr.mxu0 0.0
    %465 = vmatpush2.msra.mxu0 0.0
    %466 = vmatprep.subr.mxu0 0.0
    %467 = vmatpush2.msra.mxu0 0.0
    %468 = vmatprep.subr.mxu0 0.0
    %469 = vmatpush2.msra.mxu0 0.0
    %470 = vmatprep.subr.mxu0 0.0
    %471 = vmatpush2.msra.mxu0 0.0
    %472 = vmatprep.subr.mxu0 0.0
    %473 = vmatpush2.msra.mxu0 0.0
    %474 = vmatprep.subr.mxu0 0.0
    %475 = vmatpush2.msra.mxu0 0.0
    %476 = vmatprep.subr.mxu0 0.0
    %477 = vmatpush2.msra.mxu0 0.0
    %478 = vmatprep.subr.mxu0 0.0
    %479 = vmatpush2.msra.mxu0 0.0
    %480 = vmatprep.subr.mxu0 0.0
    %481 = vmatpush2.msra.mxu0 0.0
    %482 = vmatprep.mubr.f32.mxu0 0.0
    %483 = vmatmul.mubr.f32.gmra.mxu0 %v389
    %v484 = vpop.f32.mrf.mxu0
    %v485 = vadd.f32 %v416, %v484
    %v486 = vpop.f32.mrf.mxu0
    %487 = vmatprep.mubr.f32.mxu0 0.0
    %488 = vmatmul.mubr.f32.gmra.mxu0 %v390
    %v489 = vpop.f32.mrf.mxu0
    %v490 = vadd.f32 %v416, %v489
    %v491 = vpop.f32.mrf.mxu0
    %492 = vmatprep.mubr.f32.mxu0 0.0
    %493 = vmatmul.mubr.f32.gmra.mxu0 %v391
    %v494 = vpop.f32.mrf.mxu0
    %v495 = vadd.f32 %v416, %v494
    %v496 = vpop.f32.mrf.mxu0
    %497 = vmatprep.mubr.f32.mxu0 0.0
    %498 = vmatmul.mubr.f32.gmra.mxu0 %v392
    %v499 = vpop.f32.mrf.mxu0
    %v500 = vadd.f32 %v416, %v499
    %v501 = vpop.f32.mrf.mxu0
    %502 = vmatprep.mubr.f32.mxu0 0.0
    %503 = vmatmul.mubr.f32.gmra.mxu0 %v393
    %v504 = vpop.f32.mrf.mxu0
    %v505 = vadd.f32 %v416, %v504
    %v506 = vpop.f32.mrf.mxu0
    %507 = vmatprep.mubr.f32.mxu0 0.0
    %508 = vmatmul.mubr.f32.gmra.mxu0 %v394
    %v509 = vpop.f32.mrf.mxu0
    %v510 = vadd.f32 %v416, %v509
    %v511 = vpop.f32.mrf.mxu0
    %512 = vdwg.mxu0
    %519 = vrot.lane.b32.xlu0 %v485, 96
    %v520 = vpop.permute.xlu0 %519
    %521 = vrot.lane.b32.xlu0 %v490, 96
    %v522 = vpop.permute.xlu0 %521
    %523 = vrot.lane.b32.xlu0 %v495, 96
    %v524 = vpop.permute.xlu0 %523
    %525 = vrot.lane.b32.xlu0 %v500, 96
    %v526 = vpop.permute.xlu0 %525
    %527 = vrot.lane.b32.xlu0 %v505, 96
    %v528 = vpop.permute.xlu0 %527
    %529 = vrot.lane.b32.xlu0 %v510, 96
    %v530 = vpop.permute.xlu0 %529
    %vm531 = vcmask 64512
    %v532 = vsel %vm531, %v485, 0
    %v534 = vsel %vm531, %v490, 0
    %v536 = vsel %vm531, %v495, 0
    %v538 = vsel %vm531, %v500, 0
    %v540 = vsel %vm531, %v505, 0
    %v542 = vsel %vm531, %v510, 0
    %v544 = vsel %vm531, %v520, 0
    %v546 = vsel %vm531, %v522, 0
    %v548 = vsel %vm531, %v524, 0
    %v550 = vsel %vm531, %v526, 0
    %v552 = vsel %vm531, %v528, 0
    %v554 = vsel %vm531, %v530, 0
    %556 = vmatprep.subr.mxu0 0.0
    %557 = vmatpush1.xpose.msra.mxu0 0.0
    %558 = vmatprep.subr.mxu0 0.0
    %559 = vmatpush1.xpose.msra.mxu0 0.0
    %560 = vmatprep.subr.mxu0 0.0
    %561 = vmatpush1.xpose.msra.mxu0 0.0
    %562 = vmatprep.subr.mxu0 0.0
    %563 = vmatpush1.xpose.msra.mxu0 0.0
    %564 = vmatprep.subr.mxu0 0.0
    %565 = vmatpush1.xpose.msra.mxu0 0.0
    %566 = vmatprep.subr.mxu0 0.0
    %567 = vmatpush1.xpose.msra.mxu0 0.0
    %568 = vmatprep.subr.mxu0 0.0
    %569 = vmatpush1.xpose.msra.mxu0 0.0
    %570 = vmatprep.subr.mxu0 0.0
    %571 = vmatpush1.xpose.msra.mxu0 0.0
    %572 = vmatprep.subr.mxu0 0.0
    %573 = vmatpush1.xpose.msra.mxu0 0.0
    %574 = vmatprep.subr.mxu0 0.0
    %575 = vmatpush1.xpose.msra.mxu0 0.0
    %576 = vmatprep.subr.mxu0 0.0
    %577 = vmatpush1.xpose.msra.mxu0 %v554
    %578 = vmatprep.subr.mxu0 0.0
    %579 = vmatpush1.xpose.msra.mxu0 %v552
    %580 = vmatprep.subr.mxu0 0.0
    %581 = vmatpush1.xpose.msra.mxu0 %v550
    %582 = vmatprep.subr.mxu0 0.0
    %583 = vmatpush1.xpose.msra.mxu0 %v548
    %584 = vmatprep.subr.mxu0 0.0
    %585 = vmatpush1.xpose.msra.mxu0 %v546
    %586 = vmatprep.subr.mxu0 0.0
    %587 = vmatpush1.xpose.msra.mxu0 %v544
    %588 = vmatprep.subr.mxu0 0.0
    %589 = vmatpush2.xpose.msra.mxu0 0.0
    %590 = vmatprep.subr.mxu0 0.0
    %591 = vmatpush2.xpose.msra.mxu0 0.0
    %592 = vmatprep.subr.mxu0 0.0
    %593 = vmatpush2.xpose.msra.mxu0 0.0
    %594 = vmatprep.subr.mxu0 0.0
    %595 = vmatpush2.xpose.msra.mxu0 0.0
    %596 = vmatprep.subr.mxu0 0.0
    %597 = vmatpush2.xpose.msra.mxu0 0.0
    %598 = vmatprep.subr.mxu0 0.0
    %599 = vmatpush2.xpose.msra.mxu0 0.0
    %600 = vmatprep.subr.mxu0 0.0
    %601 = vmatpush2.xpose.msra.mxu0 0.0
    %602 = vmatprep.subr.mxu0 0.0
    %603 = vmatpush2.xpose.msra.mxu0 0.0
    %604 = vmatprep.subr.mxu0 0.0
    %605 = vmatpush2.xpose.msra.mxu0 0.0
    %606 = vmatprep.subr.mxu0 0.0
    %607 = vmatpush2.xpose.msra.mxu0 0.0
    %608 = vmatprep.subr.mxu0 0.0
    %609 = vmatpush2.xpose.msra.mxu0 0.0
    %610 = vmatprep.subr.mxu0 0.0
    %611 = vmatpush2.xpose.msra.mxu0 0.0
    %612 = vmatprep.subr.mxu0 0.0
    %613 = vmatpush2.xpose.msra.mxu0 0.0
    %614 = vmatprep.subr.mxu0 0.0
    %615 = vmatpush2.xpose.msra.mxu0 0.0
    %616 = vmatprep.subr.mxu0 0.0
    %617 = vmatpush2.xpose.msra.mxu0 0.0
    %618 = vmatprep.subr.mxu0 0.0
    %619 = vmatpush2.xpose.msra.mxu0 0.0
    %620 = vmatprep.mubr.f32.mxu0 0.0
    %621 = vmatmul.mubr.f32.gmra.mxu0 %v532
    %v622 = vpop.f32.mrf.mxu0
    %v623 = vadd.f32 %v73, %v622
    %v624 = vpop.f32.mrf.mxu0
    %625 = vmatprep.mubr.f32.mxu0 0.0
    %626 = vmatmul.mubr.f32.gmra.mxu0 %v534
    %v627 = vpop.f32.mrf.mxu0
    %v628 = vadd.f32 %v74, %v627
    %v629 = vpop.f32.mrf.mxu0
    %630 = vmatprep.mubr.f32.mxu0 0.0
    %631 = vmatmul.mubr.f32.gmra.mxu0 %v536
    %v632 = vpop.f32.mrf.mxu0
    %v633 = vadd.f32 %v75, %v632
    %v634 = vpop.f32.mrf.mxu0
    %635 = vmatprep.mubr.f32.mxu0 0.0
    %636 = vmatmul.mubr.f32.gmra.mxu0 %v538
    %v637 = vpop.f32.mrf.mxu0
    %v638 = vadd.f32 %v76, %v637
    %v639 = vpop.f32.mrf.mxu0
    %640 = vmatprep.mubr.f32.mxu0 0.0
    %641 = vmatmul.mubr.f32.gmra.mxu0 %v540
    %v642 = vpop.f32.mrf.mxu0
    %v643 = vadd.f32 %v77, %v642
    %v644 = vpop.f32.mrf.mxu0
    %645 = vmatprep.mubr.f32.mxu0 0.0
    %646 = vmatmul.mubr.f32.gmra.mxu0 %v542
    %v647 = vpop.f32.mrf.mxu0
    %v648 = vadd.f32 %v78, %v647
    %v649 = vpop.f32.mrf.mxu0
    %650 = vdwg.mxu0
    %vm651 = vcmask 392192
    %v652 = vsel %vm651, %v623, -inf
    %653 = vmax.xlane.f32.xlu0 %v652
    %v654 = vpop.xlane.xlu0 %653
    %v655 = vsel %vm651, %v628, -inf
    %656 = vmax.xlane.f32.xlu0 %v655
    %v657 = vpop.xlane.xlu0 %656
    %v658 = vsel %vm651, %v633, -inf
    %659 = vmax.xlane.f32.xlu0 %v658
    %v660 = vpop.xlane.xlu0 %659
    %v661 = vsel %vm651, %v638, -inf
    %662 = vmax.xlane.f32.xlu0 %v661
    %v663 = vpop.xlane.xlu0 %662
    %v664 = vsel %vm651, %v643, -inf
    %665 = vmax.xlane.f32.xlu0 %v664
    %v666 = vpop.xlane.xlu0 %665
    %v667 = vsel %vm651, %v648, -inf
    %668 = vmax.xlane.f32.xlu0 %v667
    %v669 = vpop.xlane.xlu0 %668
    %v670 = vsub.f32 %v623, %v654
    %v671 = vsub.f32 %v628, %v657
    %v672 = vsub.f32 %v633, %v660
    %v673 = vsub.f32 %v638, %v663
    %v674 = vsub.f32 %v643, %v666
    %v675 = vsub.f32 %v648, %v669
    %v676 = vmul.f32 %v670, 1.442695
    %v677 = vpow.pop %v676
    %v678 = vmul.f32 %v671, 1.442695
    %v679 = vpow.pop %v678
    %v680 = vmul.f32 %v672, 1.442695
    %v681 = vpow.pop %v680
    %v682 = vmul.f32 %v673, 1.442695
    %v683 = vpow.pop %v682
    %v684 = vmul.f32 %v674, 1.442695
    %v685 = vpow.pop %v684
    %v686 = vmul.f32 %v675, 1.442695
    %v687 = vpow.pop %v686
    %v688 = vsel %vm651, %v677, 0.0
    %689 = vadd.xlane.f32.xlu0 %v688
    %v690 = vpop.xlane.xlu0 %689
    %v691 = vsel %vm651, %v679, 0.0
    %692 = vadd.xlane.f32.xlu0 %v691
    %v693 = vpop.xlane.xlu0 %692
    %v694 = vsel %vm651, %v681, 0.0
    %695 = vadd.xlane.f32.xlu0 %v694
    %v696 = vpop.xlane.xlu0 %695
    %v697 = vsel %vm651, %v683, 0.0
    %698 = vadd.xlane.f32.xlu0 %v697
    %v699 = vpop.xlane.xlu0 %698
    %v700 = vsel %vm651, %v685, 0.0
    %701 = vadd.xlane.f32.xlu0 %v700
    %v702 = vpop.xlane.xlu0 %701
    %v703 = vsel %vm651, %v687, 0.0
    %704 = vadd.xlane.f32.xlu0 %v703
    %v705 = vpop.xlane.xlu0 %704
    %v706 = vrcp.pop %v690
    %v707 = vrcp.pop %v693
    %v708 = vrcp.pop %v696
    %v709 = vrcp.pop %v699
    %v710 = vrcp.pop %v702
    %v711 = vrcp.pop %v705
    %v712 = vmul.f32 %v677, %v706
    %v713 = vmul.f32 %v679, %v707
    %v714 = vmul.f32 %v681, %v708
    %v715 = vmul.f32 %v683, %v709
    %v716 = vmul.f32 %v685, %v710
    %v717 = vmul.f32 %v687, %v711
    %718 = vrot.lane.b32.xlu0 %v485, 64
    %v719 = vpop.permute.xlu0 %718
    %720 = vrot.lane.b32.xlu0 %v490, 64
    %v721 = vpop.permute.xlu0 %720
    %722 = vrot.lane.b32.xlu0 %v495, 64
    %v723 = vpop.permute.xlu0 %722
    %724 = vrot.lane.b32.xlu0 %v500, 64
    %v725 = vpop.permute.xlu0 %724
    %726 = vrot.lane.b32.xlu0 %v505, 64
    %v727 = vpop.permute.xlu0 %726
    %728 = vrot.lane.b32.xlu0 %v510, 64
    %v729 = vpop.permute.xlu0 %728
    %v737 = vsel %vm651, %v712, 0
    %v740 = vsel %vm651, %v713, 0
    %v743 = vsel %vm651, %v714, 0
    %v746 = vsel %vm651, %v715, 0
    %v749 = vsel %vm651, %v716, 0
    %v752 = vsel %vm651, %v717, 0
    %754 = vmatprep.subr.mxu0 0.0
    %755 = vmatpush1.msra.mxu0 0.0
    %756 = vmatprep.subr.mxu0 0.0
    %757 = vmatpush1.msra.mxu0 0.0
    %758 = vmatprep.subr.mxu0 0.0
    %759 = vmatpush1.msra.mxu0 0.0
    %760 = vmatprep.subr.mxu0 0.0
    %761 = vmatpush1.msra.mxu0 0.0
    %762 = vmatprep.subr.mxu0 0.0
    %763 = vmatpush1.msra.mxu0 0.0
    %764 = vmatprep.subr.mxu0 0.0
    %765 = vmatpush1.msra.mxu0 0.0
    %766 = vmatprep.subr.mxu0 0.0
    %767 = vmatpush1.msra.mxu0 0.0
    %768 = vmatprep.subr.mxu0 0.0
    %769 = vmatpush1.msra.mxu0 0.0
    %770 = vmatprep.subr.mxu0 0.0
    %771 = vmatpush1.msra.mxu0 0.0
    %772 = vmatprep.subr.mxu0 0.0
    %773 = vmatpush1.msra.mxu0 0.0
    %774 = vmatprep.subr.mxu0 0.0
    %775 = vmatpush1.msra.mxu0 %v729
    %776 = vmatprep.subr.mxu0 0.0
    %777 = vmatpush1.msra.mxu0 %v727
    %778 = vmatprep.subr.mxu0 0.0
    %779 = vmatpush1.msra.mxu0 %v725
    %780 = vmatprep.subr.mxu0 0.0
    %781 = vmatpush1.msra.mxu0 %v723
    %782 = vmatprep.subr.mxu0 0.0
    %783 = vmatpush1.msra.mxu0 %v721
    %784 = vmatprep.subr.mxu0 0.0
    %785 = vmatpush1.msra.mxu0 %v719
    %786 = vmatprep.subr.mxu0 0.0
    %787 = vmatpush2.msra.mxu0 0.0
    %788 = vmatprep.subr.mxu0 0.0
    %789 = vmatpush2.msra.mxu0 0.0
    %790 = vmatprep.subr.mxu0 0.0
    %791 = vmatpush2.msra.mxu0 0.0
    %792 = vmatprep.subr.mxu0 0.0
    %793 = vmatpush2.msra.mxu0 0.0
    %794 = vmatprep.subr.mxu0 0.0
    %795 = vmatpush2.msra.mxu0 0.0
    %796 = vmatprep.subr.mxu0 0.0
    %797 = vmatpush2.msra.mxu0 0.0
    %798 = vmatprep.subr.mxu0 0.0
    %799 = vmatpush2.msra.mxu0 0.0
    %800 = vmatprep.subr.mxu0 0.0
    %801 = vmatpush2.msra.mxu0 0.0
    %802 = vmatprep.subr.mxu0 0.0
    %803 = vmatpush2.msra.mxu0 0.0
    %804 = vmatprep.subr.mxu0 0.0
    %805 = vmatpush2.msra.mxu0 0.0
    %806 = vmatprep.subr.mxu0 0.0
    %807 = vmatpush2.msra.mxu0 0.0
    %808 = vmatprep.subr.mxu0 0.0
    %809 = vmatpush2.msra.mxu0 0.0
    %810 = vmatprep.subr.mxu0 0.0
    %811 = vmatpush2.msra.mxu0 0.0
    %812 = vmatprep.subr.mxu0 0.0
    %813 = vmatpush2.msra.mxu0 0.0
    %814 = vmatprep.subr.mxu0 0.0
    %815 = vmatpush2.msra.mxu0 0.0
    %816 = vmatprep.subr.mxu0 0.0
    %817 = vmatpush2.msra.mxu0 0.0
    %818 = vmatprep.mubr.f32.mxu0 0.0
    %819 = vmatmul.mubr.f32.gmra.mxu0 %v737
    %v820 = vpop.f32.mrf.mxu0
    %v821 = vadd.f32 0.0, %v820
    %v822 = vpop.f32.mrf.mxu0
    %823 = vmatprep.mubr.f32.mxu0 0.0
    %824 = vmatmul.mubr.f32.gmra.mxu0 %v740
    %v825 = vpop.f32.mrf.mxu0
    %v826 = vadd.f32 0.0, %v825
    %v827 = vpop.f32.mrf.mxu0
    %828 = vmatprep.mubr.f32.mxu0 0.0
    %829 = vmatmul.mubr.f32.gmra.mxu0 %v743
    %v830 = vpop.f32.mrf.mxu0
    %v831 = vadd.f32 0.0, %v830
    %v832 = vpop.f32.mrf.mxu0
    %833 = vmatprep.mubr.f32.mxu0 0.0
    %834 = vmatmul.mubr.f32.gmra.mxu0 %v746
    %v835 = vpop.f32.mrf.mxu0
    %v836 = vadd.f32 0.0, %v835
    %v837 = vpop.f32.mrf.mxu0
    %838 = vmatprep.mubr.f32.mxu0 0.0
    %839 = vmatmul.mubr.f32.gmra.mxu0 %v749
    %v840 = vpop.f32.mrf.mxu0
    %v841 = vadd.f32 0.0, %v840
    %v842 = vpop.f32.mrf.mxu0
    %843 = vmatprep.mubr.f32.mxu0 0.0
    %844 = vmatmul.mubr.f32.gmra.mxu0 %v752
    %v845 = vpop.f32.mrf.mxu0
    %v846 = vadd.f32 0.0, %v845
    %v847 = vpop.f32.mrf.mxu0
    %848 = vdwg.mxu0
    %849 = vrot.lane.b32.xlu0 %v485, 120
    %v850 = vpop.permute.xlu0 %849
    %851 = vrot.lane.b32.xlu0 %v490, 120
    %v852 = vpop.permute.xlu0 %851
    %853 = vrot.lane.b32.xlu0 %v495, 120
    %v854 = vpop.permute.xlu0 %853
    %855 = vrot.lane.b32.xlu0 %v500, 120
    %v856 = vpop.permute.xlu0 %855
    %857 = vrot.lane.b32.xlu0 %v505, 120
    %v858 = vpop.permute.xlu0 %857
    %859 = vrot.lane.b32.xlu0 %v510, 120
    %v860 = vpop.permute.xlu0 %859
    %861 = vrot.lane.b32.xlu0 %v485, 88
    %v862 = vpop.permute.xlu0 %861
    %863 = vrot.lane.b32.xlu0 %v490, 88
    %v864 = vpop.permute.xlu0 %863
    %865 = vrot.lane.b32.xlu0 %v495, 88
    %v866 = vpop.permute.xlu0 %865
    %867 = vrot.lane.b32.xlu0 %v500, 88
    %v868 = vpop.permute.xlu0 %867
    %869 = vrot.lane.b32.xlu0 %v505, 88
    %v870 = vpop.permute.xlu0 %869
    %871 = vrot.lane.b32.xlu0 %v510, 88
    %v872 = vpop.permute.xlu0 %871
    %v873 = vsel %vm531, %v850, 0
    %v875 = vsel %vm531, %v852, 0
    %v877 = vsel %vm531, %v854, 0
    %v879 = vsel %vm531, %v856, 0
    %v881 = vsel %vm531, %v858, 0
    %v883 = vsel %vm531, %v860, 0
    %v885 = vsel %vm531, %v862, 0
    %v887 = vsel %vm531, %v864, 0
    %v889 = vsel %vm531, %v866, 0
    %v891 = vsel %vm531, %v868, 0
    %v893 = vsel %vm531, %v870, 0
    %v895 = vsel %vm531, %v872, 0
    %897 = vmatprep.subr.mxu0 0.0
    %898 = vmatpush1.xpose.msra.mxu0 0.0
    %899 = vmatprep.subr.mxu0 0.0
    %900 = vmatpush1.xpose.msra.mxu0 0.0
    %901 = vmatprep.subr.mxu0 0.0
    %902 = vmatpush1.xpose.msra.mxu0 0.0
    %903 = vmatprep.subr.mxu0 0.0
    %904 = vmatpush1.xpose.msra.mxu0 0.0
    %905 = vmatprep.subr.mxu0 0.0
    %906 = vmatpush1.xpose.msra.mxu0 0.0
    %907 = vmatprep.subr.mxu0 0.0
    %908 = vmatpush1.xpose.msra.mxu0 0.0
    %909 = vmatprep.subr.mxu0 0.0
    %910 = vmatpush1.xpose.msra.mxu0 0.0
    %911 = vmatprep.subr.mxu0 0.0
    %912 = vmatpush1.xpose.msra.mxu0 0.0
    %913 = vmatprep.subr.mxu0 0.0
    %914 = vmatpush1.xpose.msra.mxu0 0.0
    %915 = vmatprep.subr.mxu0 0.0
    %916 = vmatpush1.xpose.msra.mxu0 0.0
    %917 = vmatprep.subr.mxu0 0.0
    %918 = vmatpush1.xpose.msra.mxu0 %v895
    %919 = vmatprep.subr.mxu0 0.0
    %920 = vmatpush1.xpose.msra.mxu0 %v893
    %921 = vmatprep.subr.mxu0 0.0
    %922 = vmatpush1.xpose.msra.mxu0 %v891
    %923 = vmatprep.subr.mxu0 0.0
    %924 = vmatpush1.xpose.msra.mxu0 %v889
    %925 = vmatprep.subr.mxu0 0.0
    %926 = vmatpush1.xpose.msra.mxu0 %v887
    %927 = vmatprep.subr.mxu0 0.0
    %928 = vmatpush1.xpose.msra.mxu0 %v885
    %929 = vmatprep.subr.mxu0 0.0
    %930 = vmatpush2.xpose.msra.mxu0 0.0
    %931 = vmatprep.subr.mxu0 0.0
    %932 = vmatpush2.xpose.msra.mxu0 0.0
    %933 = vmatprep.subr.mxu0 0.0
    %934 = vmatpush2.xpose.msra.mxu0 0.0
    %935 = vmatprep.subr.mxu0 0.0
    %936 = vmatpush2.xpose.msra.mxu0 0.0
    %937 = vmatprep.subr.mxu0 0.0
    %938 = vmatpush2.xpose.msra.mxu0 0.0
    %939 = vmatprep.subr.mxu0 0.0
    %940 = vmatpush2.xpose.msra.mxu0 0.0
    %941 = vmatprep.subr.mxu0 0.0
    %942 = vmatpush2.xpose.msra.mxu0 0.0
    %943 = vmatprep.subr.mxu0 0.0
    %944 = vmatpush2.xpose.msra.mxu0 0.0
    %945 = vmatprep.subr.mxu0 0.0
    %946 = vmatpush2.xpose.msra.mxu0 0.0
    %947 = vmatprep.subr.mxu0 0.0
    %948 = vmatpush2.xpose.msra.mxu0 0.0
    %949 = vmatprep.subr.mxu0 0.0
    %950 = vmatpush2.xpose.msra.mxu0 0.0
    %951 = vmatprep.subr.mxu0 0.0
    %952 = vmatpush2.xpose.msra.mxu0 0.0
    %953 = vmatprep.subr.mxu0 0.0
    %954 = vmatpush2.xpose.msra.mxu0 0.0
    %955 = vmatprep.subr.mxu0 0.0
    %956 = vmatpush2.xpose.msra.mxu0 0.0
    %957 = vmatprep.subr.mxu0 0.0
    %958 = vmatpush2.xpose.msra.mxu0 0.0
    %959 = vmatprep.subr.mxu0 0.0
    %960 = vmatpush2.xpose.msra.mxu0 0.0
    %961 = vmatprep.mubr.f32.mxu0 0.0
    %962 = vmatmul.mubr.f32.gmra.mxu0 %v873
    %v963 = vpop.f32.mrf.mxu0
    %v964 = vadd.f32 %v73, %v963
    %v965 = vpop.f32.mrf.mxu0
    %966 = vmatprep.mubr.f32.mxu0 0.0
    %967 = vmatmul.mubr.f32.gmra.mxu0 %v875
    %v968 = vpop.f32.mrf.mxu0
    %v969 = vadd.f32 %v74, %v968
    %v970 = vpop.f32.mrf.mxu0
    %971 = vmatprep.mubr.f32.mxu0 0.0
    %972 = vmatmul.mubr.f32.gmra.mxu0 %v877
    %v973 = vpop.f32.mrf.mxu0
    %v974 = vadd.f32 %v75, %v973
    %v975 = vpop.f32.mrf.mxu0
    %976 = vmatprep.mubr.f32.mxu0 0.0
    %977 = vmatmul.mubr.f32.gmra.mxu0 %v879
    %v978 = vpop.f32.mrf.mxu0
    %v979 = vadd.f32 %v76, %v978
    %v980 = vpop.f32.mrf.mxu0
    %981 = vmatprep.mubr.f32.mxu0 0.0
    %982 = vmatmul.mubr.f32.gmra.mxu0 %v881
    %v983 = vpop.f32.mrf.mxu0
    %v984 = vadd.f32 %v77, %v983
    %v985 = vpop.f32.mrf.mxu0
    %986 = vmatprep.mubr.f32.mxu0 0.0
    %987 = vmatmul.mubr.f32.gmra.mxu0 %v883
    %v988 = vpop.f32.mrf.mxu0
    %v989 = vadd.f32 %v78, %v988
    %v990 = vpop.f32.mrf.mxu0
    %991 = vdwg.mxu0
    %v992 = vsel %vm651, %v964, -inf
    %993 = vmax.xlane.f32.xlu0 %v992
    %v994 = vpop.xlane.xlu0 %993
    %v995 = vsel %vm651, %v969, -inf
    %996 = vmax.xlane.f32.xlu0 %v995
    %v997 = vpop.xlane.xlu0 %996
    %v998 = vsel %vm651, %v974, -inf
    %999 = vmax.xlane.f32.xlu0 %v998
    %v1000 = vpop.xlane.xlu0 %999
    %v1001 = vsel %vm651, %v979, -inf
    %1002 = vmax.xlane.f32.xlu0 %v1001
    %v1003 = vpop.xlane.xlu0 %1002
    %v1004 = vsel %vm651, %v984, -inf
    %1005 = vmax.xlane.f32.xlu0 %v1004
    %v1006 = vpop.xlane.xlu0 %1005
    %v1007 = vsel %vm651, %v989, -inf
    %1008 = vmax.xlane.f32.xlu0 %v1007
    %v1009 = vpop.xlane.xlu0 %1008
    %v1010 = vsub.f32 %v964, %v994
    %v1011 = vsub.f32 %v969, %v997
    %v1012 = vsub.f32 %v974, %v1000
    %v1013 = vsub.f32 %v979, %v1003
    %v1014 = vsub.f32 %v984, %v1006
    %v1015 = vsub.f32 %v989, %v1009
    %v1016 = vmul.f32 %v1010, 1.442695
    %v1017 = vpow.pop %v1016
    %v1018 = vmul.f32 %v1011, 1.442695
    %v1019 = vpow.pop %v1018
    %v1020 = vmul.f32 %v1012, 1.442695
    %v1021 = vpow.pop %v1020
    %v1022 = vmul.f32 %v1013, 1.442695
    %v1023 = vpow.pop %v1022
    %v1024 = vmul.f32 %v1014, 1.442695
    %v1025 = vpow.pop %v1024
    %v1026 = vmul.f32 %v1015, 1.442695
    %v1027 = vpow.pop %v1026
    %v1028 = vsel %vm651, %v1017, 0.0
    %1029 = vadd.xlane.f32.xlu0 %v1028
    %v1030 = vpop.xlane.xlu0 %1029
    %v1031 = vsel %vm651, %v1019, 0.0
    %1032 = vadd.xlane.f32.xlu0 %v1031
    %v1033 = vpop.xlane.xlu0 %1032
    %v1034 = vsel %vm651, %v1021, 0.0
    %1035 = vadd.xlane.f32.xlu0 %v1034
    %v1036 = vpop.xlane.xlu0 %1035
    %v1037 = vsel %vm651, %v1023, 0.0
    %1038 = vadd.xlane.f32.xlu0 %v1037
    %v1039 = vpop.xlane.xlu0 %1038
    %v1040 = vsel %vm651, %v1025, 0.0
    %1041 = vadd.xlane.f32.xlu0 %v1040
    %v1042 = vpop.xlane.xlu0 %1041
    %v1043 = vsel %vm651, %v1027, 0.0
    %1044 = vadd.xlane.f32.xlu0 %v1043
    %v1045 = vpop.xlane.xlu0 %1044
    %v1046 = vrcp.pop %v1030
    %v1047 = vrcp.pop %v1033
    %v1048 = vrcp.pop %v1036
    %v1049 = vrcp.pop %v1039
    %v1050 = vrcp.pop %v1042
    %v1051 = vrcp.pop %v1045
    %v1052 = vmul.f32 %v1017, %v1046
    %v1053 = vmul.f32 %v1019, %v1047
    %v1054 = vmul.f32 %v1021, %v1048
    %v1055 = vmul.f32 %v1023, %v1049
    %v1056 = vmul.f32 %v1025, %v1050
    %v1057 = vmul.f32 %v1027, %v1051
    %1058 = vrot.lane.b32.xlu0 %v485, 56
    %v1059 = vpop.permute.xlu0 %1058
    %1060 = vrot.lane.b32.xlu0 %v490, 56
    %v1061 = vpop.permute.xlu0 %1060
    %1062 = vrot.lane.b32.xlu0 %v495, 56
    %v1063 = vpop.permute.xlu0 %1062
    %1064 = vrot.lane.b32.xlu0 %v500, 56
    %v1065 = vpop.permute.xlu0 %1064
    %1066 = vrot.lane.b32.xlu0 %v505, 56
    %v1067 = vpop.permute.xlu0 %1066
    %1068 = vrot.lane.b32.xlu0 %v510, 56
    %v1069 = vpop.permute.xlu0 %1068
    %v1077 = vsel %vm651, %v1052, 0
    %v1080 = vsel %vm651, %v1053, 0
    %v1083 = vsel %vm651, %v1054, 0
    %v1086 = vsel %vm651, %v1055, 0
    %v1089 = vsel %vm651, %v1056, 0
    %v1092 = vsel %vm651, %v1057, 0
    %1094 = vmatprep.subr.mxu0 0.0
    %1095 = vmatpush1.msra.mxu0 0.0
    %1096 = vmatprep.subr.mxu0 0.0
    %1097 = vmatpush1.msra.mxu0 0.0
    %1098 = vmatprep.subr.mxu0 0.0
    %1099 = vmatpush1.msra.mxu0 0.0
    %1100 = vmatprep.subr.mxu0 0.0
    %1101 = vmatpush1.msra.mxu0 0.0
    %1102 = vmatprep.subr.mxu0 0.0
    %1103 = vmatpush1.msra.mxu0 0.0
    %1104 = vmatprep.subr.mxu0 0.0
    %1105 = vmatpush1.msra.mxu0 0.0
    %1106 = vmatprep.subr.mxu0 0.0
    %1107 = vmatpush1.msra.mxu0 0.0
    %1108 = vmatprep.subr.mxu0 0.0
    %1109 = vmatpush1.msra.mxu0 0.0
    %1110 = vmatprep.subr.mxu0 0.0
    %1111 = vmatpush1.msra.mxu0 0.0
    %1112 = vmatprep.subr.mxu0 0.0
    %1113 = vmatpush1.msra.mxu0 0.0
    %1114 = vmatprep.subr.mxu0 0.0
    %1115 = vmatpush1.msra.mxu0 %v1069
    %1116 = vmatprep.subr.mxu0 0.0
    %1117 = vmatpush1.msra.mxu0 %v1067
    %1118 = vmatprep.subr.mxu0 0.0
    %1119 = vmatpush1.msra.mxu0 %v1065
    %1120 = vmatprep.subr.mxu0 0.0
    %1121 = vmatpush1.msra.mxu0 %v1063
    %1122 = vmatprep.subr.mxu0 0.0
    %1123 = vmatpush1.msra.mxu0 %v1061
    %1124 = vmatprep.subr.mxu0 0.0
    %1125 = vmatpush1.msra.mxu0 %v1059
    %1126 = vmatprep.subr.mxu0 0.0
    %1127 = vmatpush2.msra.mxu0 0.0
    %1128 = vmatprep.subr.mxu0 0.0
    %1129 = vmatpush2.msra.mxu0 0.0
    %1130 = vmatprep.subr.mxu0 0.0
    %1131 = vmatpush2.msra.mxu0 0.0
    %1132 = vmatprep.subr.mxu0 0.0
    %1133 = vmatpush2.msra.mxu0 0.0
    %1134 = vmatprep.subr.mxu0 0.0
    %1135 = vmatpush2.msra.mxu0 0.0
    %1136 = vmatprep.subr.mxu0 0.0
    %1137 = vmatpush2.msra.mxu0 0.0
    %1138 = vmatprep.subr.mxu0 0.0
    %1139 = vmatpush2.msra.mxu0 0.0
    %1140 = vmatprep.subr.mxu0 0.0
    %1141 = vmatpush2.msra.mxu0 0.0
    %1142 = vmatprep.subr.mxu0 0.0
    %1143 = vmatpush2.msra.mxu0 0.0
    %1144 = vmatprep.subr.mxu0 0.0
    %1145 = vmatpush2.msra.mxu0 0.0
    %1146 = vmatprep.subr.mxu0 0.0
    %1147 = vmatpush2.msra.mxu0 0.0
    %1148 = vmatprep.subr.mxu0 0.0
    %1149 = vmatpush2.msra.mxu0 0.0
    %1150 = vmatprep.subr.mxu0 0.0
    %1151 = vmatpush2.msra.mxu0 0.0
    %1152 = vmatprep.subr.mxu0 0.0
    %1153 = vmatpush2.msra.mxu0 0.0
    %1154 = vmatprep.subr.mxu0 0.0
    %1155 = vmatpush2.msra.mxu0 0.0
    %1156 = vmatprep.subr.mxu0 0.0
    %1157 = vmatpush2.msra.mxu0 0.0
    %1158 = vmatprep.mubr.f32.mxu0 0.0
    %1159 = vmatmul.mubr.f32.gmra.mxu0 %v1077
    %v1160 = vpop.f32.mrf.mxu0
    %v1161 = vadd.f32 0.0, %v1160
    %v1162 = vpop.f32.mrf.mxu0
    %1163 = vmatprep.mubr.f32.mxu0 0.0
    %1164 = vmatmul.mubr.f32.gmra.mxu0 %v1080
    %v1165 = vpop.f32.mrf.mxu0
    %v1166 = vadd.f32 0.0, %v1165
    %v1167 = vpop.f32.mrf.mxu0
    %1168 = vmatprep.mubr.f32.mxu0 0.0
    %1169 = vmatmul.mubr.f32.gmra.mxu0 %v1083
    %v1170 = vpop.f32.mrf.mxu0
    %v1171 = vadd.f32 0.0, %v1170
    %v1172 = vpop.f32.mrf.mxu0
    %1173 = vmatprep.mubr.f32.mxu0 0.0
    %1174 = vmatmul.mubr.f32.gmra.mxu0 %v1086
    %v1175 = vpop.f32.mrf.mxu0
    %v1176 = vadd.f32 0.0, %v1175
    %v1177 = vpop.f32.mrf.mxu0
    %1178 = vmatprep.mubr.f32.mxu0 0.0
    %1179 = vmatmul.mubr.f32.gmra.mxu0 %v1089
    %v1180 = vpop.f32.mrf.mxu0
    %v1181 = vadd.f32 0.0, %v1180
    %v1182 = vpop.f32.mrf.mxu0
    %1183 = vmatprep.mubr.f32.mxu0 0.0
    %1184 = vmatmul.mubr.f32.gmra.mxu0 %v1092
    %v1185 = vpop.f32.mrf.mxu0
    %v1186 = vadd.f32 0.0, %v1185
    %v1187 = vpop.f32.mrf.mxu0
    %1188 = vdwg.mxu0
    %1189 = vrot.lane.b32.xlu0 %v485, 112
    %v1190 = vpop.permute.xlu0 %1189
    %1191 = vrot.lane.b32.xlu0 %v490, 112
    %v1192 = vpop.permute.xlu0 %1191
    %1193 = vrot.lane.b32.xlu0 %v495, 112
    %v1194 = vpop.permute.xlu0 %1193
    %1195 = vrot.lane.b32.xlu0 %v500, 112
    %v1196 = vpop.permute.xlu0 %1195
    %1197 = vrot.lane.b32.xlu0 %v505, 112
    %v1198 = vpop.permute.xlu0 %1197
    %1199 = vrot.lane.b32.xlu0 %v510, 112
    %v1200 = vpop.permute.xlu0 %1199
    %1201 = vrot.lane.b32.xlu0 %v485, 80
    %v1202 = vpop.permute.xlu0 %1201
    %1203 = vrot.lane.b32.xlu0 %v490, 80
    %v1204 = vpop.permute.xlu0 %1203
    %1205 = vrot.lane.b32.xlu0 %v495, 80
    %v1206 = vpop.permute.xlu0 %1205
    %1207 = vrot.lane.b32.xlu0 %v500, 80
    %v1208 = vpop.permute.xlu0 %1207
    %1209 = vrot.lane.b32.xlu0 %v505, 80
    %v1210 = vpop.permute.xlu0 %1209
    %1211 = vrot.lane.b32.xlu0 %v510, 80
    %v1212 = vpop.permute.xlu0 %1211
    %v1213 = vsel %vm531, %v1190, 0
    %v1215 = vsel %vm531, %v1192, 0
    %v1217 = vsel %vm531, %v1194, 0
    %v1219 = vsel %vm531, %v1196, 0
    %v1221 = vsel %vm531, %v1198, 0
    %v1223 = vsel %vm531, %v1200, 0
    %v1225 = vsel %vm531, %v1202, 0
    %v1227 = vsel %vm531, %v1204, 0
    %v1229 = vsel %vm531, %v1206, 0
    %v1231 = vsel %vm531, %v1208, 0
    %v1233 = vsel %vm531, %v1210, 0
    %v1235 = vsel %vm531, %v1212, 0
    %1237 = vmatprep.subr.mxu0 0.0
    %1238 = vmatpush1.xpose.msra.mxu0 0.0
    %1239 = vmatprep.subr.mxu0 0.0
    %1240 = vmatpush1.xpose.msra.mxu0 0.0
    %1241 = vmatprep.subr.mxu0 0.0
    %1242 = vmatpush1.xpose.msra.mxu0 0.0
    %1243 = vmatprep.subr.mxu0 0.0
    %1244 = vmatpush1.xpose.msra.mxu0 0.0
    %1245 = vmatprep.subr.mxu0 0.0
    %1246 = vmatpush1.xpose.msra.mxu0 0.0
    %1247 = vmatprep.subr.mxu0 0.0
    %1248 = vmatpush1.xpose.msra.mxu0 0.0
    %1249 = vmatprep.subr.mxu0 0.0
    %1250 = vmatpush1.xpose.msra.mxu0 0.0
    %1251 = vmatprep.subr.mxu0 0.0
    %1252 = vmatpush1.xpose.msra.mxu0 0.0
    %1253 = vmatprep.subr.mxu0 0.0
    %1254 = vmatpush1.xpose.msra.mxu0 0.0
    %1255 = vmatprep.subr.mxu0 0.0
    %1256 = vmatpush1.xpose.msra.mxu0 0.0
    %1257 = vmatprep.subr.mxu0 0.0
    %1258 = vmatpush1.xpose.msra.mxu0 %v1235
    %1259 = vmatprep.subr.mxu0 0.0
    %1260 = vmatpush1.xpose.msra.mxu0 %v1233
    %1261 = vmatprep.subr.mxu0 0.0
    %1262 = vmatpush1.xpose.msra.mxu0 %v1231
    %1263 = vmatprep.subr.mxu0 0.0
    %1264 = vmatpush1.xpose.msra.mxu0 %v1229
    %1265 = vmatprep.subr.mxu0 0.0
    %1266 = vmatpush1.xpose.msra.mxu0 %v1227
    %1267 = vmatprep.subr.mxu0 0.0
    %1268 = vmatpush1.xpose.msra.mxu0 %v1225
    %1269 = vmatprep.subr.mxu0 0.0
    %1270 = vmatpush2.xpose.msra.mxu0 0.0
    %1271 = vmatprep.subr.mxu0 0.0
    %1272 = vmatpush2.xpose.msra.mxu0 0.0
    %1273 = vmatprep.subr.mxu0 0.0
    %1274 = vmatpush2.xpose.msra.mxu0 0.0
    %1275 = vmatprep.subr.mxu0 0.0
    %1276 = vmatpush2.xpose.msra.mxu0 0.0
    %1277 = vmatprep.subr.mxu0 0.0
    %1278 = vmatpush2.xpose.msra.mxu0 0.0
    %1279 = vmatprep.subr.mxu0 0.0
    %1280 = vmatpush2.xpose.msra.mxu0 0.0
    %1281 = vmatprep.subr.mxu0 0.0
    %1282 = vmatpush2.xpose.msra.mxu0 0.0
    %1283 = vmatprep.subr.mxu0 0.0
    %1284 = vmatpush2.xpose.msra.mxu0 0.0
    %1285 = vmatprep.subr.mxu0 0.0
    %1286 = vmatpush2.xpose.msra.mxu0 0.0
    %1287 = vmatprep.subr.mxu0 0.0
    %1288 = vmatpush2.xpose.msra.mxu0 0.0
    %1289 = vmatprep.subr.mxu0 0.0
    %1290 = vmatpush2.xpose.msra.mxu0 0.0
    %1291 = vmatprep.subr.mxu0 0.0
    %1292 = vmatpush2.xpose.msra.mxu0 0.0
    %1293 = vmatprep.subr.mxu0 0.0
    %1294 = vmatpush2.xpose.msra.mxu0 0.0
    %1295 = vmatprep.subr.mxu0 0.0
    %1296 = vmatpush2.xpose.msra.mxu0 0.0
    %1297 = vmatprep.subr.mxu0 0.0
    %1298 = vmatpush2.xpose.msra.mxu0 0.0
    %1299 = vmatprep.subr.mxu0 0.0
    %1300 = vmatpush2.xpose.msra.mxu0 0.0
    %1301 = vmatprep.mubr.f32.mxu0 0.0
    %1302 = vmatmul.mubr.f32.gmra.mxu0 %v1213
    %v1303 = vpop.f32.mrf.mxu0
    %v1304 = vadd.f32 %v73, %v1303
    %v1305 = vpop.f32.mrf.mxu0
    %1306 = vmatprep.mubr.f32.mxu0 0.0
    %1307 = vmatmul.mubr.f32.gmra.mxu0 %v1215
    %v1308 = vpop.f32.mrf.mxu0
    %v1309 = vadd.f32 %v74, %v1308
    %v1310 = vpop.f32.mrf.mxu0
    %1311 = vmatprep.mubr.f32.mxu0 0.0
    %1312 = vmatmul.mubr.f32.gmra.mxu0 %v1217
    %v1313 = vpop.f32.mrf.mxu0
    %v1314 = vadd.f32 %v75, %v1313
    %v1315 = vpop.f32.mrf.mxu0
    %1316 = vmatprep.mubr.f32.mxu0 0.0
    %1317 = vmatmul.mubr.f32.gmra.mxu0 %v1219
    %v1318 = vpop.f32.mrf.mxu0
    %v1319 = vadd.f32 %v76, %v1318
    %v1320 = vpop.f32.mrf.mxu0
    %1321 = vmatprep.mubr.f32.mxu0 0.0
    %1322 = vmatmul.mubr.f32.gmra.mxu0 %v1221
    %v1323 = vpop.f32.mrf.mxu0
    %v1324 = vadd.f32 %v77, %v1323
    %v1325 = vpop.f32.mrf.mxu0
    %1326 = vmatprep.mubr.f32.mxu0 0.0
    %1327 = vmatmul.mubr.f32.gmra.mxu0 %v1223
    %v1328 = vpop.f32.mrf.mxu0
    %v1329 = vadd.f32 %v78, %v1328
    %v1330 = vpop.f32.mrf.mxu0
    %1331 = vdwg.mxu0
    %v1332 = vsel %vm651, %v1304, -inf
    %1333 = vmax.xlane.f32.xlu0 %v1332
    %v1334 = vpop.xlane.xlu0 %1333
    %v1335 = vsel %vm651, %v1309, -inf
    %1336 = vmax.xlane.f32.xlu0 %v1335
    %v1337 = vpop.xlane.xlu0 %1336
    %v1338 = vsel %vm651, %v1314, -inf
    %1339 = vmax.xlane.f32.xlu0 %v1338
    %v1340 = vpop.xlane.xlu0 %1339
    %v1341 = vsel %vm651, %v1319, -inf
    %1342 = vmax.xlane.f32.xlu0 %v1341
    %v1343 = vpop.xlane.xlu0 %1342
    %v1344 = vsel %vm651, %v1324, -inf
    %1345 = vmax.xlane.f32.xlu0 %v1344
    %v1346 = vpop.xlane.xlu0 %1345
    %v1347 = vsel %vm651, %v1329, -inf
    %1348 = vmax.xlane.f32.xlu0 %v1347
    %v1349 = vpop.xlane.xlu0 %1348
    %v1350 = vsub.f32 %v1304, %v1334
    %v1351 = vsub.f32 %v1309, %v1337
    %v1352 = vsub.f32 %v1314, %v1340
    %v1353 = vsub.f32 %v1319, %v1343
    %v1354 = vsub.f32 %v1324, %v1346
    %v1355 = vsub.f32 %v1329, %v1349
    %v1356 = vmul.f32 %v1350, 1.442695
    %v1357 = vpow.pop %v1356
    %v1358 = vmul.f32 %v1351, 1.442695
    %v1359 = vpow.pop %v1358
    %v1360 = vmul.f32 %v1352, 1.442695
    %v1361 = vpow.pop %v1360
    %v1362 = vmul.f32 %v1353, 1.442695
    %v1363 = vpow.pop %v1362
    %v1364 = vmul.f32 %v1354, 1.442695
    %v1365 = vpow.pop %v1364
    %v1366 = vmul.f32 %v1355, 1.442695
    %v1367 = vpow.pop %v1366
    %v1368 = vsel %vm651, %v1357, 0.0
    %1369 = vadd.xlane.f32.xlu0 %v1368
    %v1370 = vpop.xlane.xlu0 %1369
    %v1371 = vsel %vm651, %v1359, 0.0
    %1372 = vadd.xlane.f32.xlu0 %v1371
    %v1373 = vpop.xlane.xlu0 %1372
    %v1374 = vsel %vm651, %v1361, 0.0
    %1375 = vadd.xlane.f32.xlu0 %v1374
    %v1376 = vpop.xlane.xlu0 %1375
    %v1377 = vsel %vm651, %v1363, 0.0
    %1378 = vadd.xlane.f32.xlu0 %v1377
    %v1379 = vpop.xlane.xlu0 %1378
    %v1380 = vsel %vm651, %v1365, 0.0
    %1381 = vadd.xlane.f32.xlu0 %v1380
    %v1382 = vpop.xlane.xlu0 %1381
    %v1383 = vsel %vm651, %v1367, 0.0
    %1384 = vadd.xlane.f32.xlu0 %v1383
    %v1385 = vpop.xlane.xlu0 %1384
    %v1386 = vrcp.pop %v1370
    %v1387 = vrcp.pop %v1373
    %v1388 = vrcp.pop %v1376
    %v1389 = vrcp.pop %v1379
    %v1390 = vrcp.pop %v1382
    %v1391 = vrcp.pop %v1385
    %v1392 = vmul.f32 %v1357, %v1386
    %v1393 = vmul.f32 %v1359, %v1387
    %v1394 = vmul.f32 %v1361, %v1388
    %v1395 = vmul.f32 %v1363, %v1389
    %v1396 = vmul.f32 %v1365, %v1390
    %v1397 = vmul.f32 %v1367, %v1391
    %1398 = vrot.lane.b32.xlu0 %v485, 48
    %v1399 = vpop.permute.xlu0 %1398
    %1400 = vrot.lane.b32.xlu0 %v490, 48
    %v1401 = vpop.permute.xlu0 %1400
    %1402 = vrot.lane.b32.xlu0 %v495, 48
    %v1403 = vpop.permute.xlu0 %1402
    %1404 = vrot.lane.b32.xlu0 %v500, 48
    %v1405 = vpop.permute.xlu0 %1404
    %1406 = vrot.lane.b32.xlu0 %v505, 48
    %v1407 = vpop.permute.xlu0 %1406
    %1408 = vrot.lane.b32.xlu0 %v510, 48
    %v1409 = vpop.permute.xlu0 %1408
    %v1417 = vsel %vm651, %v1392, 0
    %v1420 = vsel %vm651, %v1393, 0
    %v1423 = vsel %vm651, %v1394, 0
    %v1426 = vsel %vm651, %v1395, 0
    %v1429 = vsel %vm651, %v1396, 0
    %v1432 = vsel %vm651, %v1397, 0
    %1434 = vmatprep.subr.mxu0 0.0
    %1435 = vmatpush1.msra.mxu0 0.0
    %1436 = vmatprep.subr.mxu0 0.0
    %1437 = vmatpush1.msra.mxu0 0.0
    %1438 = vmatprep.subr.mxu0 0.0
    %1439 = vmatpush1.msra.mxu0 0.0
    %1440 = vmatprep.subr.mxu0 0.0
    %1441 = vmatpush1.msra.mxu0 0.0
    %1442 = vmatprep.subr.mxu0 0.0
    %1443 = vmatpush1.msra.mxu0 0.0
    %1444 = vmatprep.subr.mxu0 0.0
    %1445 = vmatpush1.msra.mxu0 0.0
    %1446 = vmatprep.subr.mxu0 0.0
    %1447 = vmatpush1.msra.mxu0 0.0
    %1448 = vmatprep.subr.mxu0 0.0
    %1449 = vmatpush1.msra.mxu0 0.0
    %1450 = vmatprep.subr.mxu0 0.0
    %1451 = vmatpush1.msra.mxu0 0.0
    %1452 = vmatprep.subr.mxu0 0.0
    %1453 = vmatpush1.msra.mxu0 0.0
    %1454 = vmatprep.subr.mxu0 0.0
    %1455 = vmatpush1.msra.mxu0 %v1409
    %1456 = vmatprep.subr.mxu0 0.0
    %1457 = vmatpush1.msra.mxu0 %v1407
    %1458 = vmatprep.subr.mxu0 0.0
    %1459 = vmatpush1.msra.mxu0 %v1405
    %1460 = vmatprep.subr.mxu0 0.0
    %1461 = vmatpush1.msra.mxu0 %v1403
    %1462 = vmatprep.subr.mxu0 0.0
    %1463 = vmatpush1.msra.mxu0 %v1401
    %1464 = vmatprep.subr.mxu0 0.0
    %1465 = vmatpush1.msra.mxu0 %v1399
    %1466 = vmatprep.subr.mxu0 0.0
    %1467 = vmatpush2.msra.mxu0 0.0
    %1468 = vmatprep.subr.mxu0 0.0
    %1469 = vmatpush2.msra.mxu0 0.0
    %1470 = vmatprep.subr.mxu0 0.0
    %1471 = vmatpush2.msra.mxu0 0.0
    %1472 = vmatprep.subr.mxu0 0.0
    %1473 = vmatpush2.msra.mxu0 0.0
    %1474 = vmatprep.subr.mxu0 0.0
    %1475 = vmatpush2.msra.mxu0 0.0
    %1476 = vmatprep.subr.mxu0 0.0
    %1477 = vmatpush2.msra.mxu0 0.0
    %1478 = vmatprep.subr.mxu0 0.0
    %1479 = vmatpush2.msra.mxu0 0.0
    %1480 = vmatprep.subr.mxu0 0.0
    %1481 = vmatpush2.msra.mxu0 0.0
    %1482 = vmatprep.subr.mxu0 0.0
    %1483 = vmatpush2.msra.mxu0 0.0
    %1484 = vmatprep.subr.mxu0 0.0
    %1485 = vmatpush2.msra.mxu0 0.0
    %1486 = vmatprep.subr.mxu0 0.0
    %1487 = vmatpush2.msra.mxu0 0.0
    %1488 = vmatprep.subr.mxu0 0.0
    %1489 = vmatpush2.msra.mxu0 0.0
    %1490 = vmatprep.subr.mxu0 0.0
    %1491 = vmatpush2.msra.mxu0 0.0
    %1492 = vmatprep.subr.mxu0 0.0
    %1493 = vmatpush2.msra.mxu0 0.0
    %1494 = vmatprep.subr.mxu0 0.0
    %1495 = vmatpush2.msra.mxu0 0.0
    %1496 = vmatprep.subr.mxu0 0.0
    %1497 = vmatpush2.msra.mxu0 0.0
    %1498 = vmatprep.mubr.f32.mxu0 0.0
    %1499 = vmatmul.mubr.f32.gmra.mxu0 %v1417
    %v1500 = vpop.f32.mrf.mxu0
    %v1501 = vadd.f32 0.0, %v1500
    %v1502 = vpop.f32.mrf.mxu0
    %1503 = vmatprep.mubr.f32.mxu0 0.0
    %1504 = vmatmul.mubr.f32.gmra.mxu0 %v1420
    %v1505 = vpop.f32.mrf.mxu0
    %v1506 = vadd.f32 0.0, %v1505
    %v1507 = vpop.f32.mrf.mxu0
    %1508 = vmatprep.mubr.f32.mxu0 0.0
    %1509 = vmatmul.mubr.f32.gmra.mxu0 %v1423
    %v1510 = vpop.f32.mrf.mxu0
    %v1511 = vadd.f32 0.0, %v1510
    %v1512 = vpop.f32.mrf.mxu0
    %1513 = vmatprep.mubr.f32.mxu0 0.0
    %1514 = vmatmul.mubr.f32.gmra.mxu0 %v1426
    %v1515 = vpop.f32.mrf.mxu0
    %v1516 = vadd.f32 0.0, %v1515
    %v1517 = vpop.f32.mrf.mxu0
    %1518 = vmatprep.mubr.f32.mxu0 0.0
    %1519 = vmatmul.mubr.f32.gmra.mxu0 %v1429
    %v1520 = vpop.f32.mrf.mxu0
    %v1521 = vadd.f32 0.0, %v1520
    %v1522 = vpop.f32.mrf.mxu0
    %1523 = vmatprep.mubr.f32.mxu0 0.0
    %1524 = vmatmul.mubr.f32.gmra.mxu0 %v1432
    %v1525 = vpop.f32.mrf.mxu0
    %v1526 = vadd.f32 0.0, %v1525
    %v1527 = vpop.f32.mrf.mxu0
    %1528 = vdwg.mxu0
    %1529 = vrot.lane.b32.xlu0 %v485, 104
    %v1530 = vpop.permute.xlu0 %1529
    %1531 = vrot.lane.b32.xlu0 %v490, 104
    %v1532 = vpop.permute.xlu0 %1531
    %1533 = vrot.lane.b32.xlu0 %v495, 104
    %v1534 = vpop.permute.xlu0 %1533
    %1535 = vrot.lane.b32.xlu0 %v500, 104
    %v1536 = vpop.permute.xlu0 %1535
    %1537 = vrot.lane.b32.xlu0 %v505, 104
    %v1538 = vpop.permute.xlu0 %1537
    %1539 = vrot.lane.b32.xlu0 %v510, 104
    %v1540 = vpop.permute.xlu0 %1539
    %1541 = vrot.lane.b32.xlu0 %v485, 72
    %v1542 = vpop.permute.xlu0 %1541
    %1543 = vrot.lane.b32.xlu0 %v490, 72
    %v1544 = vpop.permute.xlu0 %1543
    %1545 = vrot.lane.b32.xlu0 %v495, 72
    %v1546 = vpop.permute.xlu0 %1545
    %1547 = vrot.lane.b32.xlu0 %v500, 72
    %v1548 = vpop.permute.xlu0 %1547
    %1549 = vrot.lane.b32.xlu0 %v505, 72
    %v1550 = vpop.permute.xlu0 %1549
    %1551 = vrot.lane.b32.xlu0 %v510, 72
    %v1552 = vpop.permute.xlu0 %1551
    %v1553 = vsel %vm531, %v1530, 0
    %v1555 = vsel %vm531, %v1532, 0
    %v1557 = vsel %vm531, %v1534, 0
    %v1559 = vsel %vm531, %v1536, 0
    %v1561 = vsel %vm531, %v1538, 0
    %v1563 = vsel %vm531, %v1540, 0
    %v1565 = vsel %vm531, %v1542, 0
    %v1567 = vsel %vm531, %v1544, 0
    %v1569 = vsel %vm531, %v1546, 0
    %v1571 = vsel %vm531, %v1548, 0
    %v1573 = vsel %vm531, %v1550, 0
    %v1575 = vsel %vm531, %v1552, 0
    %1577 = vmatprep.subr.mxu0 0.0
    %1578 = vmatpush1.xpose.msra.mxu0 0.0
    %1579 = vmatprep.subr.mxu0 0.0
    %1580 = vmatpush1.xpose.msra.mxu0 0.0
    %1581 = vmatprep.subr.mxu0 0.0
    %1582 = vmatpush1.xpose.msra.mxu0 0.0
    %1583 = vmatprep.subr.mxu0 0.0
    %1584 = vmatpush1.xpose.msra.mxu0 0.0
    %1585 = vmatprep.subr.mxu0 0.0
    %1586 = vmatpush1.xpose.msra.mxu0 0.0
    %1587 = vmatprep.subr.mxu0 0.0
    %1588 = vmatpush1.xpose.msra.mxu0 0.0
    %1589 = vmatprep.subr.mxu0 0.0
    %1590 = vmatpush1.xpose.msra.mxu0 0.0
    %1591 = vmatprep.subr.mxu0 0.0
    %1592 = vmatpush1.xpose.msra.mxu0 0.0
    %1593 = vmatprep.subr.mxu0 0.0
    %1594 = vmatpush1.xpose.msra.mxu0 0.0
    %1595 = vmatprep.subr.mxu0 0.0
    %1596 = vmatpush1.xpose.msra.mxu0 0.0
    %1597 = vmatprep.subr.mxu0 0.0
    %1598 = vmatpush1.xpose.msra.mxu0 %v1575
    %1599 = vmatprep.subr.mxu0 0.0
    %1600 = vmatpush1.xpose.msra.mxu0 %v1573
    %1601 = vmatprep.subr.mxu0 0.0
    %1602 = vmatpush1.xpose.msra.mxu0 %v1571
    %1603 = vmatprep.subr.mxu0 0.0
    %1604 = vmatpush1.xpose.msra.mxu0 %v1569
    %1605 = vmatprep.subr.mxu0 0.0
    %1606 = vmatpush1.xpose.msra.mxu0 %v1567
    %1607 = vmatprep.subr.mxu0 0.0
    %1608 = vmatpush1.xpose.msra.mxu0 %v1565
    %1609 = vmatprep.subr.mxu0 0.0
    %1610 = vmatpush2.xpose.msra.mxu0 0.0
    %1611 = vmatprep.subr.mxu0 0.0
    %1612 = vmatpush2.xpose.msra.mxu0 0.0
    %1613 = vmatprep.subr.mxu0 0.0
    %1614 = vmatpush2.xpose.msra.mxu0 0.0
    %1615 = vmatprep.subr.mxu0 0.0
    %1616 = vmatpush2.xpose.msra.mxu0 0.0
    %1617 = vmatprep.subr.mxu0 0.0
    %1618 = vmatpush2.xpose.msra.mxu0 0.0
    %1619 = vmatprep.subr.mxu0 0.0
    %1620 = vmatpush2.xpose.msra.mxu0 0.0
    %1621 = vmatprep.subr.mxu0 0.0
    %1622 = vmatpush2.xpose.msra.mxu0 0.0
    %1623 = vmatprep.subr.mxu0 0.0
    %1624 = vmatpush2.xpose.msra.mxu0 0.0
    %1625 = vmatprep.subr.mxu0 0.0
    %1626 = vmatpush2.xpose.msra.mxu0 0.0
    %1627 = vmatprep.subr.mxu0 0.0
    %1628 = vmatpush2.xpose.msra.mxu0 0.0
    %1629 = vmatprep.subr.mxu0 0.0
    %1630 = vmatpush2.xpose.msra.mxu0 0.0
    %1631 = vmatprep.subr.mxu0 0.0
    %1632 = vmatpush2.xpose.msra.mxu0 0.0
    %1633 = vmatprep.subr.mxu0 0.0
    %1634 = vmatpush2.xpose.msra.mxu0 0.0
    %1635 = vmatprep.subr.mxu0 0.0
    %1636 = vmatpush2.xpose.msra.mxu0 0.0
    %1637 = vmatprep.subr.mxu0 0.0
    %1638 = vmatpush2.xpose.msra.mxu0 0.0
    %1639 = vmatprep.subr.mxu0 0.0
    %1640 = vmatpush2.xpose.msra.mxu0 0.0
    %1641 = vmatprep.mubr.f32.mxu0 0.0
    %1642 = vmatmul.mubr.f32.gmra.mxu0 %v1553
    %v1643 = vpop.f32.mrf.mxu0
    %v1644 = vadd.f32 %v73, %v1643
    %v1645 = vpop.f32.mrf.mxu0
    %1646 = vmatprep.mubr.f32.mxu0 0.0
    %1647 = vmatmul.mubr.f32.gmra.mxu0 %v1555
    %v1648 = vpop.f32.mrf.mxu0
    %v1649 = vadd.f32 %v74, %v1648
    %v1650 = vpop.f32.mrf.mxu0
    %1651 = vmatprep.mubr.f32.mxu0 0.0
    %1652 = vmatmul.mubr.f32.gmra.mxu0 %v1557
    %v1653 = vpop.f32.mrf.mxu0
    %v1654 = vadd.f32 %v75, %v1653
    %v1655 = vpop.f32.mrf.mxu0
    %1656 = vmatprep.mubr.f32.mxu0 0.0
    %1657 = vmatmul.mubr.f32.gmra.mxu0 %v1559
    %v1658 = vpop.f32.mrf.mxu0
    %v1659 = vadd.f32 %v76, %v1658
    %v1660 = vpop.f32.mrf.mxu0
    %1661 = vmatprep.mubr.f32.mxu0 0.0
    %1662 = vmatmul.mubr.f32.gmra.mxu0 %v1561
    %v1663 = vpop.f32.mrf.mxu0
    %v1664 = vadd.f32 %v77, %v1663
    %v1665 = vpop.f32.mrf.mxu0
    %1666 = vmatprep.mubr.f32.mxu0 0.0
    %1667 = vmatmul.mubr.f32.gmra.mxu0 %v1563
    %v1668 = vpop.f32.mrf.mxu0
    %v1669 = vadd.f32 %v78, %v1668
    %v1670 = vpop.f32.mrf.mxu0
    %1671 = vdwg.mxu0
    %v1672 = vsel %vm651, %v1644, -inf
    %1673 = vmax.xlane.f32.xlu0 %v1672
    %v1674 = vpop.xlane.xlu0 %1673
    %v1675 = vsel %vm651, %v1649, -inf
    %1676 = vmax.xlane.f32.xlu0 %v1675
    %v1677 = vpop.xlane.xlu0 %1676
    %v1678 = vsel %vm651, %v1654, -inf
    %1679 = vmax.xlane.f32.xlu0 %v1678
    %v1680 = vpop.xlane.xlu0 %1679
    %v1681 = vsel %vm651, %v1659, -inf
    %1682 = vmax.xlane.f32.xlu0 %v1681
    %v1683 = vpop.xlane.xlu0 %1682
    %v1684 = vsel %vm651, %v1664, -inf
    %1685 = vmax.xlane.f32.xlu0 %v1684
    %v1686 = vpop.xlane.xlu0 %1685
    %v1687 = vsel %vm651, %v1669, -inf
    %1688 = vmax.xlane.f32.xlu0 %v1687
    %v1689 = vpop.xlane.xlu0 %1688
    %v1690 = vsub.f32 %v1644, %v1674
    %v1691 = vsub.f32 %v1649, %v1677
    %v1692 = vsub.f32 %v1654, %v1680
    %v1693 = vsub.f32 %v1659, %v1683
    %v1694 = vsub.f32 %v1664, %v1686
    %v1695 = vsub.f32 %v1669, %v1689
    %v1696 = vmul.f32 %v1690, 1.442695
    %v1697 = vpow.pop %v1696
    %v1698 = vmul.f32 %v1691, 1.442695
    %v1699 = vpow.pop %v1698
    %v1700 = vmul.f32 %v1692, 1.442695
    %v1701 = vpow.pop %v1700
    %v1702 = vmul.f32 %v1693, 1.442695
    %v1703 = vpow.pop %v1702
    %v1704 = vmul.f32 %v1694, 1.442695
    %v1705 = vpow.pop %v1704
    %v1706 = vmul.f32 %v1695, 1.442695
    %v1707 = vpow.pop %v1706
    %v1708 = vsel %vm651, %v1697, 0.0
    %1709 = vadd.xlane.f32.xlu0 %v1708
    %v1710 = vpop.xlane.xlu0 %1709
    %v1711 = vsel %vm651, %v1699, 0.0
    %1712 = vadd.xlane.f32.xlu0 %v1711
    %v1713 = vpop.xlane.xlu0 %1712
    %v1714 = vsel %vm651, %v1701, 0.0
    %1715 = vadd.xlane.f32.xlu0 %v1714
    %v1716 = vpop.xlane.xlu0 %1715
    %v1717 = vsel %vm651, %v1703, 0.0
    %1718 = vadd.xlane.f32.xlu0 %v1717
    %v1719 = vpop.xlane.xlu0 %1718
    %v1720 = vsel %vm651, %v1705, 0.0
    %1721 = vadd.xlane.f32.xlu0 %v1720
    %v1722 = vpop.xlane.xlu0 %1721
    %v1723 = vsel %vm651, %v1707, 0.0
    %1724 = vadd.xlane.f32.xlu0 %v1723
    %v1725 = vpop.xlane.xlu0 %1724
    %v1726 = vrcp.pop %v1710
    %v1727 = vrcp.pop %v1713
    %v1728 = vrcp.pop %v1716
    %v1729 = vrcp.pop %v1719
    %v1730 = vrcp.pop %v1722
    %v1731 = vrcp.pop %v1725
    %v1732 = vmul.f32 %v1697, %v1726
    %v1733 = vmul.f32 %v1699, %v1727
    %v1734 = vmul.f32 %v1701, %v1728
    %v1735 = vmul.f32 %v1703, %v1729
    %v1736 = vmul.f32 %v1705, %v1730
    %v1737 = vmul.f32 %v1707, %v1731
    %1738 = vrot.lane.b32.xlu0 %v485, 40
    %v1739 = vpop.permute.xlu0 %1738
    %1740 = vrot.lane.b32.xlu0 %v490, 40
    %v1741 = vpop.permute.xlu0 %1740
    %1742 = vrot.lane.b32.xlu0 %v495, 40
    %v1743 = vpop.permute.xlu0 %1742
    %1744 = vrot.lane.b32.xlu0 %v500, 40
    %v1745 = vpop.permute.xlu0 %1744
    %1746 = vrot.lane.b32.xlu0 %v505, 40
    %v1747 = vpop.permute.xlu0 %1746
    %1748 = vrot.lane.b32.xlu0 %v510, 40
    %v1749 = vpop.permute.xlu0 %1748
    %v1757 = vsel %vm651, %v1732, 0
    %v1760 = vsel %vm651, %v1733, 0
    %v1763 = vsel %vm651, %v1734, 0
    %v1766 = vsel %vm651, %v1735, 0
    %v1769 = vsel %vm651, %v1736, 0
    %v1772 = vsel %vm651, %v1737, 0
    %1774 = vmatprep.subr.mxu0 0.0
    %1775 = vmatpush1.msra.mxu0 0.0
    %1776 = vmatprep.subr.mxu0 0.0
    %1777 = vmatpush1.msra.mxu0 0.0
    %1778 = vmatprep.subr.mxu0 0.0
    %1779 = vmatpush1.msra.mxu0 0.0
    %1780 = vmatprep.subr.mxu0 0.0
    %1781 = vmatpush1.msra.mxu0 0.0
    %1782 = vmatprep.subr.mxu0 0.0
    %1783 = vmatpush1.msra.mxu0 0.0
    %1784 = vmatprep.subr.mxu0 0.0
    %1785 = vmatpush1.msra.mxu0 0.0
    %1786 = vmatprep.subr.mxu0 0.0
    %1787 = vmatpush1.msra.mxu0 0.0
    %1788 = vmatprep.subr.mxu0 0.0
    %1789 = vmatpush1.msra.mxu0 0.0
    %1790 = vmatprep.subr.mxu0 0.0
    %1791 = vmatpush1.msra.mxu0 0.0
    %1792 = vmatprep.subr.mxu0 0.0
    %1793 = vmatpush1.msra.mxu0 0.0
    %1794 = vmatprep.subr.mxu0 0.0
    %1795 = vmatpush1.msra.mxu0 %v1749
    %1796 = vmatprep.subr.mxu0 0.0
    %1797 = vmatpush1.msra.mxu0 %v1747
    %1798 = vmatprep.subr.mxu0 0.0
    %1799 = vmatpush1.msra.mxu0 %v1745
    %1800 = vmatprep.subr.mxu0 0.0
    %1801 = vmatpush1.msra.mxu0 %v1743
    %1802 = vmatprep.subr.mxu0 0.0
    %1803 = vmatpush1.msra.mxu0 %v1741
    %1804 = vmatprep.subr.mxu0 0.0
    %1805 = vmatpush1.msra.mxu0 %v1739
    %1806 = vmatprep.subr.mxu0 0.0
    %1807 = vmatpush2.msra.mxu0 0.0
    %1808 = vmatprep.subr.mxu0 0.0
    %1809 = vmatpush2.msra.mxu0 0.0
    %1810 = vmatprep.subr.mxu0 0.0
    %1811 = vmatpush2.msra.mxu0 0.0
    %1812 = vmatprep.subr.mxu0 0.0
    %1813 = vmatpush2.msra.mxu0 0.0
    %1814 = vmatprep.subr.mxu0 0.0
    %1815 = vmatpush2.msra.mxu0 0.0
    %1816 = vmatprep.subr.mxu0 0.0
    %1817 = vmatpush2.msra.mxu0 0.0
    %1818 = vmatprep.subr.mxu0 0.0
    %1819 = vmatpush2.msra.mxu0 0.0
    %1820 = vmatprep.subr.mxu0 0.0
    %1821 = vmatpush2.msra.mxu0 0.0
    %1822 = vmatprep.subr.mxu0 0.0
    %1823 = vmatpush2.msra.mxu0 0.0
    %1824 = vmatprep.subr.mxu0 0.0
    %1825 = vmatpush2.msra.mxu0 0.0
    %1826 = vmatprep.subr.mxu0 0.0
    %1827 = vmatpush2.msra.mxu0 0.0
    %1828 = vmatprep.subr.mxu0 0.0
    %1829 = vmatpush2.msra.mxu0 0.0
    %1830 = vmatprep.subr.mxu0 0.0
    %1831 = vmatpush2.msra.mxu0 0.0
    %1832 = vmatprep.subr.mxu0 0.0
    %1833 = vmatpush2.msra.mxu0 0.0
    %1834 = vmatprep.subr.mxu0 0.0
    %1835 = vmatpush2.msra.mxu0 0.0
    %1836 = vmatprep.subr.mxu0 0.0
    %1837 = vmatpush2.msra.mxu0 0.0
    %1838 = vmatprep.mubr.f32.mxu0 0.0
    %1839 = vmatmul.mubr.f32.gmra.mxu0 %v1757
    %v1840 = vpop.f32.mrf.mxu0
    %v1841 = vadd.f32 0.0, %v1840
    %v1842 = vpop.f32.mrf.mxu0
    %1843 = vmatprep.mubr.f32.mxu0 0.0
    %1844 = vmatmul.mubr.f32.gmra.mxu0 %v1760
    %v1845 = vpop.f32.mrf.mxu0
    %v1846 = vadd.f32 0.0, %v1845
    %v1847 = vpop.f32.mrf.mxu0
    %1848 = vmatprep.mubr.f32.mxu0 0.0
    %1849 = vmatmul.mubr.f32.gmra.mxu0 %v1763
    %v1850 = vpop.f32.mrf.mxu0
    %v1851 = vadd.f32 0.0, %v1850
    %v1852 = vpop.f32.mrf.mxu0
    %1853 = vmatprep.mubr.f32.mxu0 0.0
    %1854 = vmatmul.mubr.f32.gmra.mxu0 %v1766
    %v1855 = vpop.f32.mrf.mxu0
    %v1856 = vadd.f32 0.0, %v1855
    %v1857 = vpop.f32.mrf.mxu0
    %1858 = vmatprep.mubr.f32.mxu0 0.0
    %1859 = vmatmul.mubr.f32.gmra.mxu0 %v1769
    %v1860 = vpop.f32.mrf.mxu0
    %v1861 = vadd.f32 0.0, %v1860
    %v1862 = vpop.f32.mrf.mxu0
    %1863 = vmatprep.mubr.f32.mxu0 0.0
    %1864 = vmatmul.mubr.f32.gmra.mxu0 %v1772
    %v1865 = vpop.f32.mrf.mxu0
    %v1866 = vadd.f32 0.0, %v1865
    %v1867 = vpop.f32.mrf.mxu0
    %1868 = vdwg.mxu0
    %1875 = vrot.lane.b32.xlu0 %v1161, 8
    %v1876 = vpop.permute.xlu0 %1875
    %1877 = vrot.lane.b32.xlu0 %v1166, 8
    %v1878 = vpop.permute.xlu0 %1877
    %1879 = vrot.lane.b32.xlu0 %v1171, 8
    %v1880 = vpop.permute.xlu0 %1879
    %1881 = vrot.lane.b32.xlu0 %v1176, 8
    %v1882 = vpop.permute.xlu0 %1881
    %1883 = vrot.lane.b32.xlu0 %v1181, 8
    %v1884 = vpop.permute.xlu0 %1883
    %1885 = vrot.lane.b32.xlu0 %v1186, 8
    %v1886 = vpop.permute.xlu0 %1885
    %1899 = vrot.lane.b32.xlu0 %v1501, 16
    %v1900 = vpop.permute.xlu0 %1899
    %1901 = vrot.lane.b32.xlu0 %v1506, 16
    %v1902 = vpop.permute.xlu0 %1901
    %1903 = vrot.lane.b32.xlu0 %v1511, 16
    %v1904 = vpop.permute.xlu0 %1903
    %1905 = vrot.lane.b32.xlu0 %v1516, 16
    %v1906 = vpop.permute.xlu0 %1905
    %1907 = vrot.lane.b32.xlu0 %v1521, 16
    %v1908 = vpop.permute.xlu0 %1907
    %1909 = vrot.lane.b32.xlu0 %v1526, 16
    %v1910 = vpop.permute.xlu0 %1909
    %1923 = vrot.lane.b32.xlu0 %v1841, 24
    %v1924 = vpop.permute.xlu0 %1923
    %1925 = vrot.lane.b32.xlu0 %v1846, 24
    %v1926 = vpop.permute.xlu0 %1925
    %1927 = vrot.lane.b32.xlu0 %v1851, 24
    %v1928 = vpop.permute.xlu0 %1927
    %1929 = vrot.lane.b32.xlu0 %v1856, 24
    %v1930 = vpop.permute.xlu0 %1929
    %1931 = vrot.lane.b32.xlu0 %v1861, 24
    %v1932 = vpop.permute.xlu0 %1931
    %1933 = vrot.lane.b32.xlu0 %v1866, 24
    %v1934 = vpop.permute.xlu0 %1933
    %v1941 = vsel %vm531, %v821, %v1876
    %v1942 = vsel %vm531, %v826, %v1878
    %v1943 = vsel %vm531, %v831, %v1880
    %v1944 = vsel %vm531, %v836, %v1882
    %v1945 = vsel %vm531, %v841, %v1884
    %v1946 = vsel %vm531, %v846, %v1886
    %vm1947 = vcmask 130048
    %v1948 = vsel %vm1947, %v1941, %v1900
    %v1949 = vsel %vm1947, %v1942, %v1902
    %v1950 = vsel %vm1947, %v1943, %v1904
    %v1951 = vsel %vm1947, %v1944, %v1906
    %v1952 = vsel %vm1947, %v1945, %v1908
    %v1953 = vsel %vm1947, %v1946, %v1910
    %vm1954 = vcmask 195584
    %v1955 = vsel %vm1954, %v1948, %v1924
    %v1956 = vsel %vm1954, %v1949, %v1926
    %v1957 = vsel %vm1954, %v1950, %v1928
    %v1958 = vsel %vm1954, %v1951, %v1930
    %v1959 = vsel %vm1954, %v1952, %v1932
    %v1960 = vsel %vm1954, %v1953, %v1934
    %v1961 = vld [vmem:[%s10] sm:$0xff]
    %v1962 = vld [vmem:[%s10 + $0x8] sm:$0xff]
    %v1963 = vld [vmem:[%s10 + $0x10] sm:$0xff]
    %v1964 = vld [vmem:[%s10 + $0x18] sm:$0xff]
    %v1965 = vld [vmem:[%s11] sm:$0x1]
    %v1967 = vlaneseq
    %v1968 = vshrl.u32 %v1967, 7
    %v1969 = vsub.s32 0, %v1968
    %v1970 = vrot.slane %v1965, %v1969
    %vm1972 = vcmask 261120
    %v1974 = vsel %vm1972, %v1955, 0
    %v1977 = vsel %vm1972, %v1956, 0
    %v1980 = vsel %vm1972, %v1957, 0
    %v1983 = vsel %vm1972, %v1958, 0
    %v1986 = vsel %vm1972, %v1959, 0
    %v1989 = vsel %vm1972, %v1960, 0
    %1991 = vmatprep.subr.mxu0 0.0
    %1992 = vmatpush1.msra.mxu0 0.0
    %1993 = vmatprep.subr.mxu0 0.0
    %1994 = vmatpush1.msra.mxu0 0.0
    %1995 = vmatprep.subr.mxu0 0.0
    %1996 = vmatpush1.msra.mxu0 0.0
    %1997 = vmatprep.subr.mxu0 0.0
    %1998 = vmatpush1.msra.mxu0 0.0
    %1999 = vmatprep.subr.mxu0 0.0
    %2000 = vmatpush1.msra.mxu0 0.0
    %2001 = vmatprep.subr.mxu0 0.0
    %2002 = vmatpush1.msra.mxu0 0.0
    %2003 = vmatprep.subr.mxu0 0.0
    %2004 = vmatpush1.msra.mxu0 0.0
    %2005 = vmatprep.subr.mxu0 0.0
    %2006 = vmatpush1.msra.mxu0 0.0
    %2007 = vmatprep.subr.mxu0 0.0
    %2008 = vmatpush1.msra.mxu0 0.0
    %2009 = vmatprep.subr.mxu0 0.0
    %2010 = vmatpush1.msra.mxu0 0.0
    %2011 = vmatprep.subr.mxu0 0.0
    %2012 = vmatpush1.msra.mxu0 0.0
    %2013 = vmatprep.subr.mxu0 0.0
    %2014 = vmatpush1.msra.mxu0 0.0
    %2015 = vmatprep.subr.mxu0 0.0
    %2016 = vmatpush1.msra.mxu0 %v1964
    %2017 = vmatprep.subr.mxu0 0.0
    %2018 = vmatpush1.msra.mxu0 %v1963
    %2019 = vmatprep.subr.mxu0 0.0
    %2020 = vmatpush1.msra.mxu0 %v1962
    %2021 = vmatprep.subr.mxu0 0.0
    %2022 = vmatpush1.msra.mxu0 %v1961
    %2023 = vmatprep.subr.mxu0 0.0
    %2024 = vmatpush2.msra.mxu0 0.0
    %2025 = vmatprep.subr.mxu0 0.0
    %2026 = vmatpush2.msra.mxu0 0.0
    %2027 = vmatprep.subr.mxu0 0.0
    %2028 = vmatpush2.msra.mxu0 0.0
    %2029 = vmatprep.subr.mxu0 0.0
    %2030 = vmatpush2.msra.mxu0 0.0
    %2031 = vmatprep.subr.mxu0 0.0
    %2032 = vmatpush2.msra.mxu0 0.0
    %2033 = vmatprep.subr.mxu0 0.0
    %2034 = vmatpush2.msra.mxu0 0.0
    %2035 = vmatprep.subr.mxu0 0.0
    %2036 = vmatpush2.msra.mxu0 0.0
    %2037 = vmatprep.subr.mxu0 0.0
    %2038 = vmatpush2.msra.mxu0 0.0
    %2039 = vmatprep.subr.mxu0 0.0
    %2040 = vmatpush2.msra.mxu0 0.0
    %2041 = vmatprep.subr.mxu0 0.0
    %2042 = vmatpush2.msra.mxu0 0.0
    %2043 = vmatprep.subr.mxu0 0.0
    %2044 = vmatpush2.msra.mxu0 0.0
    %2045 = vmatprep.subr.mxu0 0.0
    %2046 = vmatpush2.msra.mxu0 0.0
    %2047 = vmatprep.subr.mxu0 0.0
    %2048 = vmatpush2.msra.mxu0 0.0
    %2049 = vmatprep.subr.mxu0 0.0
    %2050 = vmatpush2.msra.mxu0 0.0
    %2051 = vmatprep.subr.mxu0 0.0
    %2052 = vmatpush2.msra.mxu0 0.0
    %2053 = vmatprep.subr.mxu0 0.0
    %2054 = vmatpush2.msra.mxu0 0.0
    %2055 = vmatprep.mubr.f32.mxu0 0.0
    %2056 = vmatmul.mubr.f32.gmra.mxu0 %v1974
    %v2057 = vpop.f32.mrf.mxu0
    %v2058 = vadd.f32 %v1970, %v2057
    %v2059 = vpop.f32.mrf.mxu0
    %2060 = vmatprep.mubr.f32.mxu0 0.0
    %2061 = vmatmul.mubr.f32.gmra.mxu0 %v1977
    %v2062 = vpop.f32.mrf.mxu0
    %v2063 = vadd.f32 %v1970, %v2062
    %v2064 = vpop.f32.mrf.mxu0
    %2065 = vmatprep.mubr.f32.mxu0 0.0
    %2066 = vmatmul.mubr.f32.gmra.mxu0 %v1980
    %v2067 = vpop.f32.mrf.mxu0
    %v2068 = vadd.f32 %v1970, %v2067
    %v2069 = vpop.f32.mrf.mxu0
    %2070 = vmatprep.mubr.f32.mxu0 0.0
    %2071 = vmatmul.mubr.f32.gmra.mxu0 %v1983
    %v2072 = vpop.f32.mrf.mxu0
    %v2073 = vadd.f32 %v1970, %v2072
    %v2074 = vpop.f32.mrf.mxu0
    %2075 = vmatprep.mubr.f32.mxu0 0.0
    %2076 = vmatmul.mubr.f32.gmra.mxu0 %v1986
    %v2077 = vpop.f32.mrf.mxu0
    %v2078 = vadd.f32 %v1970, %v2077
    %v2079 = vpop.f32.mrf.mxu0
    %2080 = vmatprep.mubr.f32.mxu0 0.0
    %2081 = vmatmul.mubr.f32.gmra.mxu0 %v1989
    %v2082 = vpop.f32.mrf.mxu0
    %v2083 = vadd.f32 %v1970, %v2082
    %v2084 = vpop.f32.mrf.mxu0
    %2085 = vdwg.mxu0
    %v2086 = vadd.f32 %v291, %v2058
    %v2087 = vadd.f32 %v292, %v2063
    %v2088 = vadd.f32 %v293, %v2068
    %v2089 = vadd.f32 %v294, %v2073
    %v2090 = vadd.f32 %v295, %v2078
    %v2091 = vadd.f32 %v296, %v2083
    %v2092 = vld [vmem:[%s12] sm:$0x1]
    %v2093 = vld [vmem:[%s13] sm:$0x1]
    %2094 = vadd.xlane.f32.xlu0 %v2086
    %v2095 = vpop.xlane.xlu0 %2094
    %2096 = vadd.xlane.f32.xlu0 %v2087
    %v2097 = vpop.xlane.xlu0 %2096
    %2098 = vadd.xlane.f32.xlu0 %v2088
    %v2099 = vpop.xlane.xlu0 %2098
    %2100 = vadd.xlane.f32.xlu0 %v2089
    %v2101 = vpop.xlane.xlu0 %2100
    %2102 = vadd.xlane.f32.xlu0 %v2090
    %v2103 = vpop.xlane.xlu0 %2102
    %2104 = vadd.xlane.f32.xlu0 %v2091
    %v2105 = vpop.xlane.xlu0 %2104
    %v2106 = vmul.f32 %v2095, 0.03125
    %v2107 = vmul.f32 %v2097, 0.03125
    %v2108 = vmul.f32 %v2099, 0.03125
    %v2109 = vmul.f32 %v2101, 0.03125
    %v2110 = vmul.f32 %v2103, 0.03125
    %v2111 = vmul.f32 %v2105, 0.03125
    %v2112 = vsub.f32 %v2086, %v2106
    %v2113 = vsub.f32 %v2087, %v2107
    %v2114 = vsub.f32 %v2088, %v2108
    %v2115 = vsub.f32 %v2089, %v2109
    %v2116 = vsub.f32 %v2090, %v2110
    %v2117 = vsub.f32 %v2091, %v2111
    %v2118 = vmul.f32 %v2112, %v72
    %v2119 = vmul.f32 %v2113, %v72
    %v2120 = vmul.f32 %v2114, %v72
    %v2121 = vmul.f32 %v2115, %v72
    %v2122 = vmul.f32 %v2116, %v72
    %v2123 = vmul.f32 %v2117, %v72
    %v2124 = vmul.f32 %v2118, %v2118
    %v2125 = vmul.f32 %v2119, %v2119
    %v2126 = vmul.f32 %v2120, %v2120
    %v2127 = vmul.f32 %v2121, %v2121
    %v2128 = vmul.f32 %v2122, %v2122
    %v2129 = vmul.f32 %v2123, %v2123
    %2130 = vadd.xlane.f32.xlu0 %v2124
    %v2131 = vpop.xlane.xlu0 %2130
    %2132 = vadd.xlane.f32.xlu0 %v2125
    %v2133 = vpop.xlane.xlu0 %2132
    %2134 = vadd.xlane.f32.xlu0 %v2126
    %v2135 = vpop.xlane.xlu0 %2134
    %2136 = vadd.xlane.f32.xlu0 %v2127
    %v2137 = vpop.xlane.xlu0 %2136
    %2138 = vadd.xlane.f32.xlu0 %v2128
    %v2139 = vpop.xlane.xlu0 %2138
    %2140 = vadd.xlane.f32.xlu0 %v2129
    %v2141 = vpop.xlane.xlu0 %2140
    %v2142 = vmul.f32 %v2131, 0.03125
    %v2143 = vmul.f32 %v2133, 0.03125
    %v2144 = vmul.f32 %v2135, 0.03125
    %v2145 = vmul.f32 %v2137, 0.03125
    %v2146 = vmul.f32 %v2139, 0.03125
    %v2147 = vmul.f32 %v2141, 0.03125
    %v2148 = vadd.f32 %v2142, 1e-05
    %v2149 = vadd.f32 %v2143, 1e-05
    %v2150 = vadd.f32 %v2144, 1e-05
    %v2151 = vadd.f32 %v2145, 1e-05
    %v2152 = vadd.f32 %v2146, 1e-05
    %v2153 = vadd.f32 %v2147, 1e-05
    %v2154 = vrsqrt.pop %v2148
    %v2155 = vrsqrt.pop %v2149
    %v2156 = vrsqrt.pop %v2150
    %v2157 = vrsqrt.pop %v2151
    %v2158 = vrsqrt.pop %v2152
    %v2159 = vrsqrt.pop %v2153
    %v2160 = vmul.f32 %v2118, %v2154
    %v2161 = vmul.f32 %v2119, %v2155
    %v2162 = vmul.f32 %v2120, %v2156
    %v2163 = vmul.f32 %v2121, %v2157
    %v2164 = vmul.f32 %v2122, %v2158
    %v2165 = vmul.f32 %v2123, %v2159
    %v2167 = vlaneseq
    %v2168 = vshrl.u32 %v2167, 7
    %v2169 = vsub.s32 0, %v2168
    %v2170 = vrot.slane %v2092, %v2169
    %v2172 = vmul.f32 %v2160, %v2170
    %v2173 = vmul.f32 %v2161, %v2170
    %v2174 = vmul.f32 %v2162, %v2170
    %v2175 = vmul.f32 %v2163, %v2170
    %v2176 = vmul.f32 %v2164, %v2170
    %v2177 = vmul.f32 %v2165, %v2170
    %v2179 = vlaneseq
    %v2180 = vshrl.u32 %v2179, 7
    %v2181 = vsub.s32 0, %v2180
    %v2182 = vrot.slane %v2093, %v2181
    %v2184 = vadd.f32 %v2172, %v2182
    %v2185 = vadd.f32 %v2173, %v2182
    %v2186 = vadd.f32 %v2174, %v2182
    %v2187 = vadd.f32 %v2175, %v2182
    %v2188 = vadd.f32 %v2176, %v2182
    %v2189 = vadd.f32 %v2177, %v2182
    %v2190 = vld [vmem:[%s14] sm:$0xff]
    %v2191 = vld [vmem:[%s14 + $0x8] sm:$0xff]
    %v2192 = vld [vmem:[%s14 + $0x10] sm:$0xff]
    %v2193 = vld [vmem:[%s14 + $0x18] sm:$0xff]
    %v2194 = vld [vmem:[%s14 + $0x20] sm:$0xff]
    %v2195 = vld [vmem:[%s14 + $0x28] sm:$0xff]
    %v2196 = vld [vmem:[%s14 + $0x30] sm:$0xff]
    %v2197 = vld [vmem:[%s14 + $0x38] sm:$0xff]
    %v2198 = vld [vmem:[%s14 + $0x40] sm:$0xff]
    %v2199 = vld [vmem:[%s14 + $0x48] sm:$0xff]
    %v2200 = vld [vmem:[%s14 + $0x50] sm:$0xff]
    %v2201 = vld [vmem:[%s14 + $0x58] sm:$0xff]
    %v2202 = vld [vmem:[%s14 + $0x60] sm:$0xff]
    %v2203 = vld [vmem:[%s14 + $0x68] sm:$0xff]
    %v2204 = vld [vmem:[%s14 + $0x70] sm:$0xff]
    %v2205 = vld [vmem:[%s14 + $0x78] sm:$0xff]
    %v2206 = vld [vmem:[%s15] sm:$0x1]
    %v2208 = vlaneseq
    %v2209 = vshrl.u32 %v2208, 7
    %v2210 = vsub.s32 0, %v2209
    %v2211 = vrot.slane %v2206, %v2210
    %2213 = vmatprep.subr.mxu0 0.0
    %2214 = vmatpush1.msra.mxu0 %v2205
    %2215 = vmatprep.subr.mxu0 0.0
    %2216 = vmatpush1.msra.mxu0 %v2204
    %2217 = vmatprep.subr.mxu0 0.0
    %2218 = vmatpush1.msra.mxu0 %v2203
    %2219 = vmatprep.subr.mxu0 0.0
    %2220 = vmatpush1.msra.mxu0 %v2202
    %2221 = vmatprep.subr.mxu0 0.0
    %2222 = vmatpush1.msra.mxu0 %v2201
    %2223 = vmatprep.subr.mxu0 0.0
    %2224 = vmatpush1.msra.mxu0 %v2200
    %2225 = vmatprep.subr.mxu0 0.0
    %2226 = vmatpush1.msra.mxu0 %v2199
    %2227 = vmatprep.subr.mxu0 0.0
    %2228 = vmatpush1.msra.mxu0 %v2198
    %2229 = vmatprep.subr.mxu0 0.0
    %2230 = vmatpush1.msra.mxu0 %v2197
    %2231 = vmatprep.subr.mxu0 0.0
    %2232 = vmatpush1.msra.mxu0 %v2196
    %2233 = vmatprep.subr.mxu0 0.0
    %2234 = vmatpush1.msra.mxu0 %v2195
    %2235 = vmatprep.subr.mxu0 0.0
    %2236 = vmatpush1.msra.mxu0 %v2194
    %2237 = vmatprep.subr.mxu0 0.0
    %2238 = vmatpush1.msra.mxu0 %v2193
    %2239 = vmatprep.subr.mxu0 0.0
    %2240 = vmatpush1.msra.mxu0 %v2192
    %2241 = vmatprep.subr.mxu0 0.0
    %2242 = vmatpush1.msra.mxu0 %v2191
    %2243 = vmatprep.subr.mxu0 0.0
    %2244 = vmatpush1.msra.mxu0 %v2190
    %2245 = vmatprep.subr.mxu0 0.0
    %2246 = vmatpush2.msra.mxu0 0.0
    %2247 = vmatprep.subr.mxu0 0.0
    %2248 = vmatpush2.msra.mxu0 0.0
    %2249 = vmatprep.subr.mxu0 0.0
    %2250 = vmatpush2.msra.mxu0 0.0
    %2251 = vmatprep.subr.mxu0 0.0
    %2252 = vmatpush2.msra.mxu0 0.0
    %2253 = vmatprep.subr.mxu0 0.0
    %2254 = vmatpush2.msra.mxu0 0.0
    %2255 = vmatprep.subr.mxu0 0.0
    %2256 = vmatpush2.msra.mxu0 0.0
    %2257 = vmatprep.subr.mxu0 0.0
    %2258 = vmatpush2.msra.mxu0 0.0
    %2259 = vmatprep.subr.mxu0 0.0
    %2260 = vmatpush2.msra.mxu0 0.0
    %2261 = vmatprep.subr.mxu0 0.0
    %2262 = vmatpush2.msra.mxu0 0.0
    %2263 = vmatprep.subr.mxu0 0.0
    %2264 = vmatpush2.msra.mxu0 0.0
    %2265 = vmatprep.subr.mxu0 0.0
    %2266 = vmatpush2.msra.mxu0 0.0
    %2267 = vmatprep.subr.mxu0 0.0
    %2268 = vmatpush2.msra.mxu0 0.0
    %2269 = vmatprep.subr.mxu0 0.0
    %2270 = vmatpush2.msra.mxu0 0.0
    %2271 = vmatprep.subr.mxu0 0.0
    %2272 = vmatpush2.msra.mxu0 0.0
    %2273 = vmatprep.subr.mxu0 0.0
    %2274 = vmatpush2.msra.mxu0 0.0
    %2275 = vmatprep.subr.mxu0 0.0
    %2276 = vmatpush2.msra.mxu0 0.0
    %2277 = vmatprep.mubr.f32.mxu0 0.0
    %2278 = vmatmul.mubr.f32.gmra.mxu0 %v2184
    %v2279 = vpop.f32.mrf.mxu0
    %v2280 = vadd.f32 %v2211, %v2279
    %v2281 = vpop.f32.mrf.mxu0
    %2282 = vmatprep.mubr.f32.mxu0 0.0
    %2283 = vmatmul.mubr.f32.gmra.mxu0 %v2185
    %v2284 = vpop.f32.mrf.mxu0
    %v2285 = vadd.f32 %v2211, %v2284
    %v2286 = vpop.f32.mrf.mxu0
    %2287 = vmatprep.mubr.f32.mxu0 0.0
    %2288 = vmatmul.mubr.f32.gmra.mxu0 %v2186
    %v2289 = vpop.f32.mrf.mxu0
    %v2290 = vadd.f32 %v2211, %v2289
    %v2291 = vpop.f32.mrf.mxu0
    %2292 = vmatprep.mubr.f32.mxu0 0.0
    %2293 = vmatmul.mubr.f32.gmra.mxu0 %v2187
    %v2294 = vpop.f32.mrf.mxu0
    %v2295 = vadd.f32 %v2211, %v2294
    %v2296 = vpop.f32.mrf.mxu0
    %2297 = vmatprep.mubr.f32.mxu0 0.0
    %2298 = vmatmul.mubr.f32.gmra.mxu0 %v2188
    %v2299 = vpop.f32.mrf.mxu0
    %v2300 = vadd.f32 %v2211, %v2299
    %v2301 = vpop.f32.mrf.mxu0
    %2302 = vmatprep.mubr.f32.mxu0 0.0
    %2303 = vmatmul.mubr.f32.gmra.mxu0 %v2189
    %v2304 = vpop.f32.mrf.mxu0
    %v2305 = vadd.f32 %v2211, %v2304
    %v2306 = vpop.f32.mrf.mxu0
    %2307 = vdwg.mxu0
    %v2308 = vmul.f32 %v2280, 1.702
    %v2309 = vmul.f32 %v2285, 1.702
    %v2310 = vmul.f32 %v2290, 1.702
    %v2311 = vmul.f32 %v2295, 1.702
    %v2312 = vmul.f32 %v2300, 1.702
    %v2313 = vmul.f32 %v2305, 1.702
    %v2314 = vxor.u32 %v2308, 2147483648
    %v2315 = vxor.u32 %v2309, 2147483648
    %v2316 = vxor.u32 %v2310, 2147483648
    %v2317 = vxor.u32 %v2311, 2147483648
    %v2318 = vxor.u32 %v2312, 2147483648
    %v2319 = vxor.u32 %v2313, 2147483648
    %v2320 = vmul.f32 %v2314, 1.442695
    %v2321 = vpow.pop %v2320
    %v2322 = vmul.f32 %v2315, 1.442695
    %v2323 = vpow.pop %v2322
    %v2324 = vmul.f32 %v2316, 1.442695
    %v2325 = vpow.pop %v2324
    %v2326 = vmul.f32 %v2317, 1.442695
    %v2327 = vpow.pop %v2326
    %v2328 = vmul.f32 %v2318, 1.442695
    %v2329 = vpow.pop %v2328
    %v2330 = vmul.f32 %v2319, 1.442695
    %v2331 = vpow.pop %v2330
    %v2332 = vadd.f32 %v2321, 1.0
    %v2333 = vadd.f32 %v2323, 1.0
    %v2334 = vadd.f32 %v2325, 1.0
    %v2335 = vadd.f32 %v2327, 1.0
    %v2336 = vadd.f32 %v2329, 1.0
    %v2337 = vadd.f32 %v2331, 1.0
    %v2338 = vrcp.pop %v2332
    %v2339 = vmul.f32 1.0, %v2338
    %v2340 = vrcp.pop %v2333
    %v2341 = vmul.f32 1.0, %v2340
    %v2342 = vrcp.pop %v2334
    %v2343 = vmul.f32 1.0, %v2342
    %v2344 = vrcp.pop %v2335
    %v2345 = vmul.f32 1.0, %v2344
    %v2346 = vrcp.pop %v2336
    %v2347 = vmul.f32 1.0, %v2346
    %v2348 = vrcp.pop %v2337
    %v2349 = vmul.f32 1.0, %v2348
    %v2350 = vmul.f32 %v2280, %v2339
    %v2351 = vmul.f32 %v2285, %v2341
    %v2352 = vmul.f32 %v2290, %v2343
    %v2353 = vmul.f32 %v2295, %v2345
    %v2354 = vmul.f32 %v2300, %v2347
    %v2355 = vmul.f32 %v2305, %v2349
    %v2356 = vld [vmem:[%s16] sm:$0xff]
    %v2357 = vld [vmem:[%s16 + $0x8] sm:$0xff]
    %v2358 = vld [vmem:[%s16 + $0x10] sm:$0xff]
    %v2359 = vld [vmem:[%s16 + $0x18] sm:$0xff]
    %v2360 = vld [vmem:[%s16 + $0x20] sm:$0xff]
    %v2361 = vld [vmem:[%s16 + $0x28] sm:$0xff]
    %v2362 = vld [vmem:[%s16 + $0x30] sm:$0xff]
    %v2363 = vld [vmem:[%s16 + $0x38] sm:$0xff]
    %v2364 = vld [vmem:[%s16 + $0x40] sm:$0xff]
    %v2365 = vld [vmem:[%s16 + $0x48] sm:$0xff]
    %v2366 = vld [vmem:[%s16 + $0x50] sm:$0xff]
    %v2367 = vld [vmem:[%s16 + $0x58] sm:$0xff]
    %v2368 = vld [vmem:[%s16 + $0x60] sm:$0xff]
    %v2369 = vld [vmem:[%s16 + $0x68] sm:$0xff]
    %v2370 = vld [vmem:[%s16 + $0x70] sm:$0xff]
    %v2371 = vld [vmem:[%s16 + $0x78] sm:$0xff]
    %2372 = vmatprep.subr.mxu0 0.0
    %2373 = vmatpush1.msra.mxu0 %v2371
    %2374 = vmatprep.subr.mxu0 0.0
    %2375 = vmatpush1.msra.mxu0 %v2370
    %2376 = vmatprep.subr.mxu0 0.0
    %2377 = vmatpush1.msra.mxu0 %v2369
    %2378 = vmatprep.subr.mxu0 0.0
    %2379 = vmatpush1.msra.mxu0 %v2368
    %2380 = vmatprep.subr.mxu0 0.0
    %2381 = vmatpush1.msra.mxu0 %v2367
    %2382 = vmatprep.subr.mxu0 0.0
    %2383 = vmatpush1.msra.mxu0 %v2366
    %2384 = vmatprep.subr.mxu0 0.0
    %2385 = vmatpush1.msra.mxu0 %v2365
    %2386 = vmatprep.subr.mxu0 0.0
    %2387 = vmatpush1.msra.mxu0 %v2364
    %2388 = vmatprep.subr.mxu0 0.0
    %2389 = vmatpush1.msra.mxu0 %v2363
    %2390 = vmatprep.subr.mxu0 0.0
    %2391 = vmatpush1.msra.mxu0 %v2362
    %2392 = vmatprep.subr.mxu0 0.0
    %2393 = vmatpush1.msra.mxu0 %v2361
    %2394 = vmatprep.subr.mxu0 0.0
    %2395 = vmatpush1.msra.mxu0 %v2360
    %2396 = vmatprep.subr.mxu0 0.0
    %2397 = vmatpush1.msra.mxu0 %v2359
    %2398 = vmatprep.subr.mxu0 0.0
    %2399 = vmatpush1.msra.mxu0 %v2358
    %2400 = vmatprep.subr.mxu0 0.0
    %2401 = vmatpush1.msra.mxu0 %v2357
    %2402 = vmatprep.subr.mxu0 0.0
    %2403 = vmatpush1.msra.mxu0 %v2356
    %2404 = vmatprep.subr.mxu0 0.0
    %2405 = vmatpush2.msra.mxu0 0.0
    %2406 = vmatprep.subr.mxu0 0.0
    %2407 = vmatpush2.msra.mxu0 0.0
    %2408 = vmatprep.subr.mxu0 0.0
    %2409 = vmatpush2.msra.mxu0 0.0
    %2410 = vmatprep.subr.mxu0 0.0
    %2411 = vmatpush2.msra.mxu0 0.0
    %2412 = vmatprep.subr.mxu0 0.0
    %2413 = vmatpush2.msra.mxu0 0.0
    %2414 = vmatprep.subr.mxu0 0.0
    %2415 = vmatpush2.msra.mxu0 0.0
    %2416 = vmatprep.subr.mxu0 0.0
    %2417 = vmatpush2.msra.mxu0 0.0
    %2418 = vmatprep.subr.mxu0 0.0
    %2419 = vmatpush2.msra.mxu0 0.0
    %2420 = vmatprep.subr.mxu0 0.0
    %2421 = vmatpush2.msra.mxu0 0.0
    %2422 = vmatprep.subr.mxu0 0.0
    %2423 = vmatpush2.msra.mxu0 0.0
    %2424 = vmatprep.subr.mxu0 0.0
    %2425 = vmatpush2.msra.mxu0 0.0
    %2426 = vmatprep.subr.mxu0 0.0
    %2427 = vmatpush2.msra.mxu0 0.0
    %2428 = vmatprep.subr.mxu0 0.0
    %2429 = vmatpush2.msra.mxu0 0.0
    %2430 = vmatprep.subr.mxu0 0.0
    %2431 = vmatpush2.msra.mxu0 0.0
    %2432 = vmatprep.subr.mxu0 0.0
    %2433 = vmatpush2.msra.mxu0 0.0
    %2434 = vmatprep.subr.mxu0 0.0
    %2435 = vmatpush2.msra.mxu0 0.0
    %2436 = vmatprep.mubr.f32.mxu0 0.0
    %2437 = vmatmul.mubr.f32.gmra.mxu0 %v2350
    %v2438 = vpop.f32.mrf.mxu0
    %v2439 = vadd.f32 0.0, %v2438
    %v2440 = vpop.f32.mrf.mxu0
    %2441 = vmatprep.mubr.f32.mxu0 0.0
    %2442 = vmatmul.mubr.f32.gmra.mxu0 %v2351
    %v2443 = vpop.f32.mrf.mxu0
    %v2444 = vadd.f32 0.0, %v2443
    %v2445 = vpop.f32.mrf.mxu0
    %2446 = vmatprep.mubr.f32.mxu0 0.0
    %2447 = vmatmul.mubr.f32.gmra.mxu0 %v2352
    %v2448 = vpop.f32.mrf.mxu0
    %v2449 = vadd.f32 0.0, %v2448
    %v2450 = vpop.f32.mrf.mxu0
    %2451 = vmatprep.mubr.f32.mxu0 0.0
    %2452 = vmatmul.mubr.f32.gmra.mxu0 %v2353
    %v2453 = vpop.f32.mrf.mxu0
    %v2454 = vadd.f32 0.0, %v2453
    %v2455 = vpop.f32.mrf.mxu0
    %2456 = vmatprep.mubr.f32.mxu0 0.0
    %2457 = vmatmul.mubr.f32.gmra.mxu0 %v2354
    %v2458 = vpop.f32.mrf.mxu0
    %v2459 = vadd.f32 0.0, %v2458
    %v2460 = vpop.f32.mrf.mxu0
    %2461 = vmatprep.mubr.f32.mxu0 0.0
    %2462 = vmatmul.mubr.f32.gmra.mxu0 %v2355
    %v2463 = vpop.f32.mrf.mxu0
    %v2464 = vadd.f32 0.0, %v2463
    %v2465 = vpop.f32.mrf.mxu0
    %2466 = vdwg.mxu0
    %v2467 = vadd.f32 %v2086, %v2439
    %v2468 = vadd.f32 %v2087, %v2444
    %v2469 = vadd.f32 %v2088, %v2449
    %v2470 = vadd.f32 %v2089, %v2454
    %v2471 = vadd.f32 %v2090, %v2459
    %v2472 = vadd.f32 %v2091, %v2464
    %v2473 = vld [vmem:[%s17] sm:$0x1]
    %v2475 = vlaneseq
    %v2476 = vshrl.u32 %v2475, 7
    %v2477 = vsub.s32 0, %v2476
    %v2478 = vrot.slane %v2473, %v2477
    %v2480 = vadd.f32 %v2467, %v2478
    %v2481 = vadd.f32 %v2468, %v2478
    %v2482 = vadd.f32 %v2469, %v2478
    %v2483 = vadd.f32 %v2470, %v2478
    %v2484 = vadd.f32 %v2471, %v2478
    %v2485 = vadd.f32 %v2472, %v2478
    %s2486 = scalar_lea.vmem %s6, 1
    %v2487 = vld [vmem:[%s2486] sm:$0x1]
    %s2488 = scalar_lea.vmem %s7, 1
    %v2489 = vld [vmem:[%s2488] sm:$0x1]
    %2490 = vadd.xlane.f32.xlu0 %v2480
    %v2491 = vpop.xlane.xlu0 %2490
    %2492 = vadd.xlane.f32.xlu0 %v2481
    %v2493 = vpop.xlane.xlu0 %2492
    %2494 = vadd.xlane.f32.xlu0 %v2482
    %v2495 = vpop.xlane.xlu0 %2494
    %2496 = vadd.xlane.f32.xlu0 %v2483
    %v2497 = vpop.xlane.xlu0 %2496
    %2498 = vadd.xlane.f32.xlu0 %v2484
    %v2499 = vpop.xlane.xlu0 %2498
    %2500 = vadd.xlane.f32.xlu0 %v2485
    %v2501 = vpop.xlane.xlu0 %2500
    %v2502 = vmul.f32 %v2491, 0.03125
    %v2503 = vmul.f32 %v2493, 0.03125
    %v2504 = vmul.f32 %v2495, 0.03125
    %v2505 = vmul.f32 %v2497, 0.03125
    %v2506 = vmul.f32 %v2499, 0.03125
    %v2507 = vmul.f32 %v2501, 0.03125
    %v2508 = vsub.f32 %v2480, %v2502
    %v2509 = vsub.f32 %v2481, %v2503
    %v2510 = vsub.f32 %v2482, %v2504
    %v2511 = vsub.f32 %v2483, %v2505
    %v2512 = vsub.f32 %v2484, %v2506
    %v2513 = vsub.f32 %v2485, %v2507
    %v2514 = vmul.f32 %v2508, %v72
    %v2515 = vmul.f32 %v2509, %v72
    %v2516 = vmul.f32 %v2510, %v72
    %v2517 = vmul.f32 %v2511, %v72
    %v2518 = vmul.f32 %v2512, %v72
    %v2519 = vmul.f32 %v2513, %v72
    %v2520 = vmul.f32 %v2514, %v2514
    %v2521 = vmul.f32 %v2515, %v2515
    %v2522 = vmul.f32 %v2516, %v2516
    %v2523 = vmul.f32 %v2517, %v2517
    %v2524 = vmul.f32 %v2518, %v2518
    %v2525 = vmul.f32 %v2519, %v2519
    %2526 = vadd.xlane.f32.xlu0 %v2520
    %v2527 = vpop.xlane.xlu0 %2526
    %2528 = vadd.xlane.f32.xlu0 %v2521
    %v2529 = vpop.xlane.xlu0 %2528
    %2530 = vadd.xlane.f32.xlu0 %v2522
    %v2531 = vpop.xlane.xlu0 %2530
    %2532 = vadd.xlane.f32.xlu0 %v2523
    %v2533 = vpop.xlane.xlu0 %2532
    %2534 = vadd.xlane.f32.xlu0 %v2524
    %v2535 = vpop.xlane.xlu0 %2534
    %2536 = vadd.xlane.f32.xlu0 %v2525
    %v2537 = vpop.xlane.xlu0 %2536
    %v2538 = vmul.f32 %v2527, 0.03125
    %v2539 = vmul.f32 %v2529, 0.03125
    %v2540 = vmul.f32 %v2531, 0.03125
    %v2541 = vmul.f32 %v2533, 0.03125
    %v2542 = vmul.f32 %v2535, 0.03125
    %v2543 = vmul.f32 %v2537, 0.03125
    %v2544 = vadd.f32 %v2538, 1e-05
    %v2545 = vadd.f32 %v2539, 1e-05
    %v2546 = vadd.f32 %v2540, 1e-05
    %v2547 = vadd.f32 %v2541, 1e-05
    %v2548 = vadd.f32 %v2542, 1e-05
    %v2549 = vadd.f32 %v2543, 1e-05
    %v2550 = vrsqrt.pop %v2544
    %v2551 = vrsqrt.pop %v2545
    %v2552 = vrsqrt.pop %v2546
    %v2553 = vrsqrt.pop %v2547
    %v2554 = vrsqrt.pop %v2548
    %v2555 = vrsqrt.pop %v2549
    %v2556 = vmul.f32 %v2514, %v2550
    %v2557 = vmul.f32 %v2515, %v2551
    %v2558 = vmul.f32 %v2516, %v2552
    %v2559 = vmul.f32 %v2517, %v2553
    %v2560 = vmul.f32 %v2518, %v2554
    %v2561 = vmul.f32 %v2519, %v2555
    %v2563 = vlaneseq
    %v2564 = vshrl.u32 %v2563, 7
    %v2565 = vsub.s32 0, %v2564
    %v2566 = vrot.slane %v2487, %v2565
    %v2568 = vmul.f32 %v2556, %v2566
    %v2569 = vmul.f32 %v2557, %v2566
    %v2570 = vmul.f32 %v2558, %v2566
    %v2571 = vmul.f32 %v2559, %v2566
    %v2572 = vmul.f32 %v2560, %v2566
    %v2573 = vmul.f32 %v2561, %v2566
    %v2575 = vlaneseq
    %v2576 = vshrl.u32 %v2575, 7
    %v2577 = vsub.s32 0, %v2576
    %v2578 = vrot.slane %v2489, %v2577
    %v2580 = vadd.f32 %v2568, %v2578
    %v2581 = vadd.f32 %v2569, %v2578
    %v2582 = vadd.f32 %v2570, %v2578
    %v2583 = vadd.f32 %v2571, %v2578
    %v2584 = vadd.f32 %v2572, %v2578
    %v2585 = vadd.f32 %v2573, %v2578
    %s2586 = scalar_lea.vmem %s8, 128
    %v2587 = vld [vmem:[%s2586] sm:$0xff]
    %v2588 = vld [vmem:[%s2586 + $0x8] sm:$0xff]
    %v2589 = vld [vmem:[%s2586 + $0x10] sm:$0xff]
    %v2590 = vld [vmem:[%s2586 + $0x18] sm:$0xff]
    %v2591 = vld [vmem:[%s2586 + $0x20] sm:$0xff]
    %v2592 = vld [vmem:[%s2586 + $0x28] sm:$0xff]
    %v2593 = vld [vmem:[%s2586 + $0x30] sm:$0xff]
    %v2594 = vld [vmem:[%s2586 + $0x38] sm:$0xff]
    %v2595 = vld [vmem:[%s2586 + $0x40] sm:$0xff]
    %v2596 = vld [vmem:[%s2586 + $0x48] sm:$0xff]
    %v2597 = vld [vmem:[%s2586 + $0x50] sm:$0xff]
    %v2598 = vld [vmem:[%s2586 + $0x58] sm:$0xff]
    %v2599 = vld [vmem:[%s2586 + $0x60] sm:$0xff]
    %v2600 = vld [vmem:[%s2586 + $0x68] sm:$0xff]
    %v2601 = vld [vmem:[%s2586 + $0x70] sm:$0xff]
    %v2602 = vld [vmem:[%s2586 + $0x78] sm:$0xff]
    %s2603 = scalar_lea.vmem %s9, 1
    %v2604 = vld [vmem:[%s2603] sm:$0x1]
    %v2606 = vlaneseq
    %v2607 = vshrl.u32 %v2606, 7
    %v2608 = vsub.s32 0, %v2607
    %v2609 = vrot.slane %v2604, %v2608
    %2611 = vmatprep.subr.mxu0 0.0
    %2612 = vmatpush1.msra.mxu0 %v2602
    %2613 = vmatprep.subr.mxu0 0.0
    %2614 = vmatpush1.msra.mxu0 %v2601
    %2615 = vmatprep.subr.mxu0 0.0
    %2616 = vmatpush1.msra.mxu0 %v2600
    %2617 = vmatprep.subr.mxu0 0.0
    %2618 = vmatpush1.msra.mxu0 %v2599
    %2619 = vmatprep.subr.mxu0 0.0
    %2620 = vmatpush1.msra.mxu0 %v2598
    %2621 = vmatprep.subr.mxu0 0.0
    %2622 = vmatpush1.msra.mxu0 %v2597
    %2623 = vmatprep.subr.mxu0 0.0
    %2624 = vmatpush1.msra.mxu0 %v2596
    %2625 = vmatprep.subr.mxu0 0.0
    %2626 = vmatpush1.msra.mxu0 %v2595
    %2627 = vmatprep.subr.mxu0 0.0
    %2628 = vmatpush1.msra.mxu0 %v2594
    %2629 = vmatprep.subr.mxu0 0.0
    %2630 = vmatpush1.msra.mxu0 %v2593
    %2631 = vmatprep.subr.mxu0 0.0
    %2632 = vmatpush1.msra.mxu0 %v2592
    %2633 = vmatprep.subr.mxu0 0.0
    %2634 = vmatpush1.msra.mxu0 %v2591
    %2635 = vmatprep.subr.mxu0 0.0
    %2636 = vmatpush1.msra.mxu0 %v2590
    %2637 = vmatprep.subr.mxu0 0.0
    %2638 = vmatpush1.msra.mxu0 %v2589
    %2639 = vmatprep.subr.mxu0 0.0
    %2640 = vmatpush1.msra.mxu0 %v2588
    %2641 = vmatprep.subr.mxu0 0.0
    %2642 = vmatpush1.msra.mxu0 %v2587
    %2643 = vmatprep.subr.mxu0 0.0
    %2644 = vmatpush2.msra.mxu0 0.0
    %2645 = vmatprep.subr.mxu0 0.0
    %2646 = vmatpush2.msra.mxu0 0.0
    %2647 = vmatprep.subr.mxu0 0.0
    %2648 = vmatpush2.msra.mxu0 0.0
    %2649 = vmatprep.subr.mxu0 0.0
    %2650 = vmatpush2.msra.mxu0 0.0
    %2651 = vmatprep.subr.mxu0 0.0
    %2652 = vmatpush2.msra.mxu0 0.0
    %2653 = vmatprep.subr.mxu0 0.0
    %2654 = vmatpush2.msra.mxu0 0.0
    %2655 = vmatprep.subr.mxu0 0.0
    %2656 = vmatpush2.msra.mxu0 0.0
    %2657 = vmatprep.subr.mxu0 0.0
    %2658 = vmatpush2.msra.mxu0 0.0
    %2659 = vmatprep.subr.mxu0 0.0
    %2660 = vmatpush2.msra.mxu0 0.0
    %2661 = vmatprep.subr.mxu0 0.0
    %2662 = vmatpush2.msra.mxu0 0.0
    %2663 = vmatprep.subr.mxu0 0.0
    %2664 = vmatpush2.msra.mxu0 0.0
    %2665 = vmatprep.subr.mxu0 0.0
    %2666 = vmatpush2.msra.mxu0 0.0
    %2667 = vmatprep.subr.mxu0 0.0
    %2668 = vmatpush2.msra.mxu0 0.0
    %2669 = vmatprep.subr.mxu0 0.0
    %2670 = vmatpush2.msra.mxu0 0.0
    %2671 = vmatprep.subr.mxu0 0.0
    %2672 = vmatpush2.msra.mxu0 0.0
    %2673 = vmatprep.subr.mxu0 0.0
    %2674 = vmatpush2.msra.mxu0 0.0
    %2675 = vmatprep.mubr.f32.mxu0 0.0
    %2676 = vmatmul.mubr.f32.gmra.mxu0 %v2580
    %v2677 = vpop.f32.mrf.mxu0
    %v2678 = vadd.f32 %v2609, %v2677
    %v2679 = vpop.f32.mrf.mxu0
    %2680 = vmatprep.mubr.f32.mxu0 0.0
    %2681 = vmatmul.mubr.f32.gmra.mxu0 %v2581
    %v2682 = vpop.f32.mrf.mxu0
    %v2683 = vadd.f32 %v2609, %v2682
    %v2684 = vpop.f32.mrf.mxu0
    %2685 = vmatprep.mubr.f32.mxu0 0.0
    %2686 = vmatmul.mubr.f32.gmra.mxu0 %v2582
    %v2687 = vpop.f32.mrf.mxu0
    %v2688 = vadd.f32 %v2609, %v2687
    %v2689 = vpop.f32.mrf.mxu0
    %2690 = vmatprep.mubr.f32.mxu0 0.0
    %2691 = vmatmul.mubr.f32.gmra.mxu0 %v2583
    %v2692 = vpop.f32.mrf.mxu0
    %v2693 = vadd.f32 %v2609, %v2692
    %v2694 = vpop.f32.mrf.mxu0
    %2695 = vmatprep.mubr.f32.mxu0 0.0
    %2696 = vmatmul.mubr.f32.gmra.mxu0 %v2584
    %v2697 = vpop.f32.mrf.mxu0
    %v2698 = vadd.f32 %v2609, %v2697
    %v2699 = vpop.f32.mrf.mxu0
    %2700 = vmatprep.mubr.f32.mxu0 0.0
    %2701 = vmatmul.mubr.f32.gmra.mxu0 %v2585
    %v2702 = vpop.f32.mrf.mxu0
    %v2703 = vadd.f32 %v2609, %v2702
    %v2704 = vpop.f32.mrf.mxu0
    %2705 = vdwg.mxu0
    %2712 = vrot.lane.b32.xlu0 %v2678, 96
    %v2713 = vpop.permute.xlu0 %2712
    %2714 = vrot.lane.b32.xlu0 %v2683, 96
    %v2715 = vpop.permute.xlu0 %2714
    %2716 = vrot.lane.b32.xlu0 %v2688, 96
    %v2717 = vpop.permute.xlu0 %2716
    %2718 = vrot.lane.b32.xlu0 %v2693, 96
    %v2719 = vpop.permute.xlu0 %2718
    %2720 = vrot.lane.b32.xlu0 %v2698, 96
    %v2721 = vpop.permute.xlu0 %2720
    %2722 = vrot.lane.b32.xlu0 %v2703, 96
    %v2723 = vpop.permute.xlu0 %2722
    %v2724 = vsel %vm531, %v2678, 0
    %v2726 = vsel %vm531, %v2683, 0
    %v2728 = vsel %vm531, %v2688, 0
    %v2730 = vsel %vm531, %v2693, 0
    %v2732 = vsel %vm531, %v2698, 0
    %v2734 = vsel %vm531, %v2703, 0
    %v2736 = vsel %vm531, %v2713, 0
    %v2738 = vsel %vm531, %v2715, 0
    %v2740 = vsel %vm531, %v2717, 0
    %v2742 = vsel %vm531, %v2719, 0
    %v2744 = vsel %vm531, %v2721, 0
    %v2746 = vsel %vm531, %v2723, 0
    %2748 = vmatprep.subr.mxu0 0.0
    %2749 = vmatpush1.xpose.msra.mxu0 0.0
    %2750 = vmatprep.subr.mxu0 0.0
    %2751 = vmatpush1.xpose.msra.mxu0 0.0
    %2752 = vmatprep.subr.mxu0 0.0
    %2753 = vmatpush1.xpose.msra.mxu0 0.0
    %2754 = vmatprep.subr.mxu0 0.0
    %2755 = vmatpush1.xpose.msra.mxu0 0.0
    %2756 = vmatprep.subr.mxu0 0.0
    %2757 = vmatpush1.xpose.msra.mxu0 0.0
    %2758 = vmatprep.subr.mxu0 0.0
    %2759 = vmatpush1.xpose.msra.mxu0 0.0
    %2760 = vmatprep.subr.mxu0 0.0
    %2761 = vmatpush1.xpose.msra.mxu0 0.0
    %2762 = vmatprep.subr.mxu0 0.0
    %2763 = vmatpush1.xpose.msra.mxu0 0.0
    %2764 = vmatprep.subr.mxu0 0.0
    %2765 = vmatpush1.xpose.msra.mxu0 0.0
    %2766 = vmatprep.subr.mxu0 0.0
    %2767 = vmatpush1.xpose.msra.mxu0 0.0
    %2768 = vmatprep.subr.mxu0 0.0
    %2769 = vmatpush1.xpose.msra.mxu0 %v2746
    %2770 = vmatprep.subr.mxu0 0.0
    %2771 = vmatpush1.xpose.msra.mxu0 %v2744
    %2772 = vmatprep.subr.mxu0 0.0
    %2773 = vmatpush1.xpose.msra.mxu0 %v2742
    %2774 = vmatprep.subr.mxu0 0.0
    %2775 = vmatpush1.xpose.msra.mxu0 %v2740
    %2776 = vmatprep.subr.mxu0 0.0
    %2777 = vmatpush1.xpose.msra.mxu0 %v2738
    %2778 = vmatprep.subr.mxu0 0.0
    %2779 = vmatpush1.xpose.msra.mxu0 %v2736
    %2780 = vmatprep.subr.mxu0 0.0
    %2781 = vmatpush2.xpose.msra.mxu0 0.0
    %2782 = vmatprep.subr.mxu0 0.0
    %2783 = vmatpush2.xpose.msra.mxu0 0.0
    %2784 = vmatprep.subr.mxu0 0.0
    %2785 = vmatpush2.xpose.msra.mxu0 0.0
    %2786 = vmatprep.subr.mxu0 0.0
    %2787 = vmatpush2.xpose.msra.mxu0 0.0
    %2788 = vmatprep.subr.mxu0 0.0
    %2789 = vmatpush2.xpose.msra.mxu0 0.0
    %2790 = vmatprep.subr.mxu0 0.0
    %2791 = vmatpush2.xpose.msra.mxu0 0.0
    %2792 = vmatprep.subr.mxu0 0.0
    %2793 = vmatpush2.xpose.msra.mxu0 0.0
    %2794 = vmatprep.subr.mxu0 0.0
    %2795 = vmatpush2.xpose.msra.mxu0 0.0
    %2796 = vmatprep.subr.mxu0 0.0
    %2797 = vmatpush2.xpose.msra.mxu0 0.0
    %2798 = vmatprep.subr.mxu0 0.0
    %2799 = vmatpush2.xpose.msra.mxu0 0.0
    %2800 = vmatprep.subr.mxu0 0.0
    %2801 = vmatpush2.xpose.msra.mxu0 0.0
    %2802 = vmatprep.subr.mxu0 0.0
    %2803 = vmatpush2.xpose.msra.mxu0 0.0
    %2804 = vmatprep.subr.mxu0 0.0
    %2805 = vmatpush2.xpose.msra.mxu0 0.0
    %2806 = vmatprep.subr.mxu0 0.0
    %2807 = vmatpush2.xpose.msra.mxu0 0.0
    %2808 = vmatprep.subr.mxu0 0.0
    %2809 = vmatpush2.xpose.msra.mxu0 0.0
    %2810 = vmatprep.subr.mxu0 0.0
    %2811 = vmatpush2.xpose.msra.mxu0 0.0
    %2812 = vmatprep.mubr.f32.mxu0 0.0
    %2813 = vmatmul.mubr.f32.gmra.mxu0 %v2724
    %v2814 = vpop.f32.mrf.mxu0
    %v2815 = vadd.f32 %v73, %v2814
    %v2816 = vpop.f32.mrf.mxu0
    %2817 = vmatprep.mubr.f32.mxu0 0.0
    %2818 = vmatmul.mubr.f32.gmra.mxu0 %v2726
    %v2819 = vpop.f32.mrf.mxu0
    %v2820 = vadd.f32 %v74, %v2819
    %v2821 = vpop.f32.mrf.mxu0
    %2822 = vmatprep.mubr.f32.mxu0 0.0
    %2823 = vmatmul.mubr.f32.gmra.mxu0 %v2728
    %v2824 = vpop.f32.mrf.mxu0
    %v2825 = vadd.f32 %v75, %v2824
    %v2826 = vpop.f32.mrf.mxu0
    %2827 = vmatprep.mubr.f32.mxu0 0.0
    %2828 = vmatmul.mubr.f32.gmra.mxu0 %v2730
    %v2829 = vpop.f32.mrf.mxu0
    %v2830 = vadd.f32 %v76, %v2829
    %v2831 = vpop.f32.mrf.mxu0
    %2832 = vmatprep.mubr.f32.mxu0 0.0
    %2833 = vmatmul.mubr.f32.gmra.mxu0 %v2732
    %v2834 = vpop.f32.mrf.mxu0
    %v2835 = vadd.f32 %v77, %v2834
    %v2836 = vpop.f32.mrf.mxu0
    %2837 = vmatprep.mubr.f32.mxu0 0.0
    %2838 = vmatmul.mubr.f32.gmra.mxu0 %v2734
    %v2839 = vpop.f32.mrf.mxu0
    %v2840 = vadd.f32 %v78, %v2839
    %v2841 = vpop.f32.mrf.mxu0
    %2842 = vdwg.mxu0
    %v2843 = vsel %vm651, %v2815, -inf
    %2844 = vmax.xlane.f32.xlu0 %v2843
    %v2845 = vpop.xlane.xlu0 %2844
    %v2846 = vsel %vm651, %v2820, -inf
    %2847 = vmax.xlane.f32.xlu0 %v2846
    %v2848 = vpop.xlane.xlu0 %2847
    %v2849 = vsel %vm651, %v2825, -inf
    %2850 = vmax.xlane.f32.xlu0 %v2849
    %v2851 = vpop.xlane.xlu0 %2850
    %v2852 = vsel %vm651, %v2830, -inf
    %2853 = vmax.xlane.f32.xlu0 %v2852
    %v2854 = vpop.xlane.xlu0 %2853
    %v2855 = vsel %vm651, %v2835, -inf
    %2856 = vmax.xlane.f32.xlu0 %v2855
    %v2857 = vpop.xlane.xlu0 %2856
    %v2858 = vsel %vm651, %v2840, -inf
    %2859 = vmax.xlane.f32.xlu0 %v2858
    %v2860 = vpop.xlane.xlu0 %2859
    %v2861 = vsub.f32 %v2815, %v2845
    %v2862 = vsub.f32 %v2820, %v2848
    %v2863 = vsub.f32 %v2825, %v2851
    %v2864 = vsub.f32 %v2830, %v2854
    %v2865 = vsub.f32 %v2835, %v2857
    %v2866 = vsub.f32 %v2840, %v2860
    %v2867 = vmul.f32 %v2861, 1.442695
    %v2868 = vpow.pop %v2867
    %v2869 = vmul.f32 %v2862, 1.442695
    %v2870 = vpow.pop %v2869
    %v2871 = vmul.f32 %v2863, 1.442695
    %v2872 = vpow.pop %v2871
    %v2873 = vmul.f32 %v2864, 1.442695
    %v2874 = vpow.pop %v2873
    %v2875 = vmul.f32 %v2865, 1.442695
    %v2876 = vpow.pop %v2875
    %v2877 = vmul.f32 %v2866, 1.442695
    %v2878 = vpow.pop %v2877
    %v2879 = vsel %vm651, %v2868, 0.0
    %2880 = vadd.xlane.f32.xlu0 %v2879
    %v2881 = vpop.xlane.xlu0 %2880
    %v2882 = vsel %vm651, %v2870, 0.0
    %2883 = vadd.xlane.f32.xlu0 %v2882
    %v2884 = vpop.xlane.xlu0 %2883
    %v2885 = vsel %vm651, %v2872, 0.0
    %2886 = vadd.xlane.f32.xlu0 %v2885
    %v2887 = vpop.xlane.xlu0 %2886
    %v2888 = vsel %vm651, %v2874, 0.0
    %2889 = vadd.xlane.f32.xlu0 %v2888
    %v2890 = vpop.xlane.xlu0 %2889
    %v2891 = vsel %vm651, %v2876, 0.0
    %2892 = vadd.xlane.f32.xlu0 %v2891
    %v2893 = vpop.xlane.xlu0 %2892
    %v2894 = vsel %vm651, %v2878, 0.0
    %2895 = vadd.xlane.f32.xlu0 %v2894
    %v2896 = vpop.xlane.xlu0 %2895
    %v2897 = vrcp.pop %v2881
    %v2898 = vrcp.pop %v2884
    %v2899 = vrcp.pop %v2887
    %v2900 = vrcp.pop %v2890
    %v2901 = vrcp.pop %v2893
    %v2902 = vrcp.pop %v2896
    %v2903 = vmul.f32 %v2868, %v2897
    %v2904 = vmul.f32 %v2870, %v2898
    %v2905 = vmul.f32 %v2872, %v2899
    %v2906 = vmul.f32 %v2874, %v2900
    %v2907 = vmul.f32 %v2876, %v2901
    %v2908 = vmul.f32 %v2878, %v2902
    %2909 = vrot.lane.b32.xlu0 %v2678, 64
    %v2910 = vpop.permute.xlu0 %2909
    %2911 = vrot.lane.b32.xlu0 %v2683, 64
    %v2912 = vpop.permute.xlu0 %2911
    %2913 = vrot.lane.b32.xlu0 %v2688, 64
    %v2914 = vpop.permute.xlu0 %2913
    %2915 = vrot.lane.b32.xlu0 %v2693, 64
    %v2916 = vpop.permute.xlu0 %2915
    %2917 = vrot.lane.b32.xlu0 %v2698, 64
    %v2918 = vpop.permute.xlu0 %2917
    %2919 = vrot.lane.b32.xlu0 %v2703, 64
    %v2920 = vpop.permute.xlu0 %2919
    %v2928 = vsel %vm651, %v2903, 0
    %v2931 = vsel %vm651, %v2904, 0
    %v2934 = vsel %vm651, %v2905, 0
    %v2937 = vsel %vm651, %v2906, 0
    %v2940 = vsel %vm651, %v2907, 0
    %v2943 = vsel %vm651, %v2908, 0
    %2945 = vmatprep.subr.mxu0 0.0
    %2946 = vmatpush1.msra.mxu0 0.0
    %2947 = vmatprep.subr.mxu0 0.0
    %2948 = vmatpush1.msra.mxu0 0.0
    %2949 = vmatprep.subr.mxu0 0.0
    %2950 = vmatpush1.msra.mxu0 0.0
    %2951 = vmatprep.subr.mxu0 0.0
    %2952 = vmatpush1.msra.mxu0 0.0
    %2953 = vmatprep.subr.mxu0 0.0
    %2954 = vmatpush1.msra.mxu0 0.0
    %2955 = vmatprep.subr.mxu0 0.0
    %2956 = vmatpush1.msra.mxu0 0.0
    %2957 = vmatprep.subr.mxu0 0.0
    %2958 = vmatpush1.msra.mxu0 0.0
    %2959 = vmatprep.subr.mxu0 0.0
    %2960 = vmatpush1.msra.mxu0 0.0
    %2961 = vmatprep.subr.mxu0 0.0
    %2962 = vmatpush1.msra.mxu0 0.0
    %2963 = vmatprep.subr.mxu0 0.0
    %2964 = vmatpush1.msra.mxu0 0.0
    %2965 = vmatprep.subr.mxu0 0.0
    %2966 = vmatpush1.msra.mxu0 %v2920
    %2967 = vmatprep.subr.mxu0 0.0
    %2968 = vmatpush1.msra.mxu0 %v2918
    %2969 = vmatprep.subr.mxu0 0.0
    %2970 = vmatpush1.msra.mxu0 %v2916
    %2971 = vmatprep.subr.mxu0 0.0
    %2972 = vmatpush1.msra.mxu0 %v2914
    %2973 = vmatprep.subr.mxu0 0.0
    %2974 = vmatpush1.msra.mxu0 %v2912
    %2975 = vmatprep.subr.mxu0 0.0
    %2976 = vmatpush1.msra.mxu0 %v2910
    %2977 = vmatprep.subr.mxu0 0.0
    %2978 = vmatpush2.msra.mxu0 0.0
    %2979 = vmatprep.subr.mxu0 0.0
    %2980 = vmatpush2.msra.mxu0 0.0
    %2981 = vmatprep.subr.mxu0 0.0
    %2982 = vmatpush2.msra.mxu0 0.0
    %2983 = vmatprep.subr.mxu0 0.0
    %2984 = vmatpush2.msra.mxu0 0.0
    %2985 = vmatprep.subr.mxu0 0.0
    %2986 = vmatpush2.msra.mxu0 0.0
    %2987 = vmatprep.subr.mxu0 0.0
    %2988 = vmatpush2.msra.mxu0 0.0
    %2989 = vmatprep.subr.mxu0 0.0
    %2990 = vmatpush2.msra.mxu0 0.0
    %2991 = vmatprep.subr.mxu0 0.0
    %2992 = vmatpush2.msra.mxu0 0.0
    %2993 = vmatprep.subr.mxu0 0.0
    %2994 = vmatpush2.msra.mxu0 0.0
    %2995 = vmatprep.subr.mxu0 0.0
    %2996 = vmatpush2.msra.mxu0 0.0
    %2997 = vmatprep.subr.mxu0 0.0
    %2998 = vmatpush2.msra.mxu0 0.0
    %2999 = vmatprep.subr.mxu0 0.0
    %3000 = vmatpush2.msra.mxu0 0.0
    %3001 = vmatprep.subr.mxu0 0.0
    %3002 = vmatpush2.msra.mxu0 0.0
    %3003 = vmatprep.subr.mxu0 0.0
    %3004 = vmatpush2.msra.mxu0 0.0
    %3005 = vmatprep.subr.mxu0 0.0
    %3006 = vmatpush2.msra.mxu0 0.0
    %3007 = vmatprep.subr.mxu0 0.0
    %3008 = vmatpush2.msra.mxu0 0.0
    %3009 = vmatprep.mubr.f32.mxu0 0.0
    %3010 = vmatmul.mubr.f32.gmra.mxu0 %v2928
    %v3011 = vpop.f32.mrf.mxu0
    %v3012 = vadd.f32 0.0, %v3011
    %v3013 = vpop.f32.mrf.mxu0
    %3014 = vmatprep.mubr.f32.mxu0 0.0
    %3015 = vmatmul.mubr.f32.gmra.mxu0 %v2931
    %v3016 = vpop.f32.mrf.mxu0
    %v3017 = vadd.f32 0.0, %v3016
    %v3018 = vpop.f32.mrf.mxu0
    %3019 = vmatprep.mubr.f32.mxu0 0.0
    %3020 = vmatmul.mubr.f32.gmra.mxu0 %v2934
    %v3021 = vpop.f32.mrf.mxu0
    %v3022 = vadd.f32 0.0, %v3021
    %v3023 = vpop.f32.mrf.mxu0
    %3024 = vmatprep.mubr.f32.mxu0 0.0
    %3025 = vmatmul.mubr.f32.gmra.mxu0 %v2937
    %v3026 = vpop.f32.mrf.mxu0
    %v3027 = vadd.f32 0.0, %v3026
    %v3028 = vpop.f32.mrf.mxu0
    %3029 = vmatprep.mubr.f32.mxu0 0.0
    %3030 = vmatmul.mubr.f32.gmra.mxu0 %v2940
    %v3031 = vpop.f32.mrf.mxu0
    %v3032 = vadd.f32 0.0, %v3031
    %v3033 = vpop.f32.mrf.mxu0
    %3034 = vmatprep.mubr.f32.mxu0 0.0
    %3035 = vmatmul.mubr.f32.gmra.mxu0 %v2943
    %v3036 = vpop.f32.mrf.mxu0
    %v3037 = vadd.f32 0.0, %v3036
    %v3038 = vpop.f32.mrf.mxu0
    %3039 = vdwg.mxu0
    %3040 = vrot.lane.b32.xlu0 %v2678, 120
    %v3041 = vpop.permute.xlu0 %3040
    %3042 = vrot.lane.b32.xlu0 %v2683, 120
    %v3043 = vpop.permute.xlu0 %3042
    %3044 = vrot.lane.b32.xlu0 %v2688, 120
    %v3045 = vpop.permute.xlu0 %3044
    %3046 = vrot.lane.b32.xlu0 %v2693, 120
    %v3047 = vpop.permute.xlu0 %3046
    %3048 = vrot.lane.b32.xlu0 %v2698, 120
    %v3049 = vpop.permute.xlu0 %3048
    %3050 = vrot.lane.b32.xlu0 %v2703, 120
    %v3051 = vpop.permute.xlu0 %3050
    %3052 = vrot.lane.b32.xlu0 %v2678, 88
    %v3053 = vpop.permute.xlu0 %3052
    %3054 = vrot.lane.b32.xlu0 %v2683, 88
    %v3055 = vpop.permute.xlu0 %3054
    %3056 = vrot.lane.b32.xlu0 %v2688, 88
    %v3057 = vpop.permute.xlu0 %3056
    %3058 = vrot.lane.b32.xlu0 %v2693, 88
    %v3059 = vpop.permute.xlu0 %3058
    %3060 = vrot.lane.b32.xlu0 %v2698, 88
    %v3061 = vpop.permute.xlu0 %3060
    %3062 = vrot.lane.b32.xlu0 %v2703, 88
    %v3063 = vpop.permute.xlu0 %3062
    %v3064 = vsel %vm531, %v3041, 0
    %v3066 = vsel %vm531, %v3043, 0
    %v3068 = vsel %vm531, %v3045, 0
    %v3070 = vsel %vm531, %v3047, 0
    %v3072 = vsel %vm531, %v3049, 0
    %v3074 = vsel %vm531, %v3051, 0
    %v3076 = vsel %vm531, %v3053, 0
    %v3078 = vsel %vm531, %v3055, 0
    %v3080 = vsel %vm531, %v3057, 0
    %v3082 = vsel %vm531, %v3059, 0
    %v3084 = vsel %vm531, %v3061, 0
    %v3086 = vsel %vm531, %v3063, 0
    %3088 = vmatprep.subr.mxu0 0.0
    %3089 = vmatpush1.xpose.msra.mxu0 0.0
    %3090 = vmatprep.subr.mxu0 0.0
    %3091 = vmatpush1.xpose.msra.mxu0 0.0
    %3092 = vmatprep.subr.mxu0 0.0
    %3093 = vmatpush1.xpose.msra.mxu0 0.0
    %3094 = vmatprep.subr.mxu0 0.0
    %3095 = vmatpush1.xpose.msra.mxu0 0.0
    %3096 = vmatprep.subr.mxu0 0.0
    %3097 = vmatpush1.xpose.msra.mxu0 0.0
    %3098 = vmatprep.subr.mxu0 0.0
    %3099 = vmatpush1.xpose.msra.mxu0 0.0
    %3100 = vmatprep.subr.mxu0 0.0
    %3101 = vmatpush1.xpose.msra.mxu0 0.0
    %3102 = vmatprep.subr.mxu0 0.0
    %3103 = vmatpush1.xpose.msra.mxu0 0.0
    %3104 = vmatprep.subr.mxu0 0.0
    %3105 = vmatpush1.xpose.msra.mxu0 0.0
    %3106 = vmatprep.subr.mxu0 0.0
    %3107 = vmatpush1.xpose.msra.mxu0 0.0
    %3108 = vmatprep.subr.mxu0 0.0
    %3109 = vmatpush1.xpose.msra.mxu0 %v3086
    %3110 = vmatprep.subr.mxu0 0.0
    %3111 = vmatpush1.xpose.msra.mxu0 %v3084
    %3112 = vmatprep.subr.mxu0 0.0
    %3113 = vmatpush1.xpose.msra.mxu0 %v3082
    %3114 = vmatprep.subr.mxu0 0.0
    %3115 = vmatpush1.xpose.msra.mxu0 %v3080
    %3116 = vmatprep.subr.mxu0 0.0
    %3117 = vmatpush1.xpose.msra.mxu0 %v3078
    %3118 = vmatprep.subr.mxu0 0.0
    %3119 = vmatpush1.xpose.msra.mxu0 %v3076
    %3120 = vmatprep.subr.mxu0 0.0
    %3121 = vmatpush2.xpose.msra.mxu0 0.0
    %3122 = vmatprep.subr.mxu0 0.0
    %3123 = vmatpush2.xpose.msra.mxu0 0.0
    %3124 = vmatprep.subr.mxu0 0.0
    %3125 = vmatpush2.xpose.msra.mxu0 0.0
    %3126 = vmatprep.subr.mxu0 0.0
    %3127 = vmatpush2.xpose.msra.mxu0 0.0
    %3128 = vmatprep.subr.mxu0 0.0
    %3129 = vmatpush2.xpose.msra.mxu0 0.0
    %3130 = vmatprep.subr.mxu0 0.0
    %3131 = vmatpush2.xpose.msra.mxu0 0.0
    %3132 = vmatprep.subr.mxu0 0.0
    %3133 = vmatpush2.xpose.msra.mxu0 0.0
    %3134 = vmatprep.subr.mxu0 0.0
    %3135 = vmatpush2.xpose.msra.mxu0 0.0
    %3136 = vmatprep.subr.mxu0 0.0
    %3137 = vmatpush2.xpose.msra.mxu0 0.0
    %3138 = vmatprep.subr.mxu0 0.0
    %3139 = vmatpush2.xpose.msra.mxu0 0.0
    %3140 = vmatprep.subr.mxu0 0.0
    %3141 = vmatpush2.xpose.msra.mxu0 0.0
    %3142 = vmatprep.subr.mxu0 0.0
    %3143 = vmatpush2.xpose.msra.mxu0 0.0
    %3144 = vmatprep.subr.mxu0 0.0
    %3145 = vmatpush2.xpose.msra.mxu0 0.0
    %3146 = vmatprep.subr.mxu0 0.0
    %3147 = vmatpush2.xpose.msra.mxu0 0.0
    %3148 = vmatprep.subr.mxu0 0.0
    %3149 = vmatpush2.xpose.msra.mxu0 0.0
    %3150 = vmatprep.subr.mxu0 0.0
    %3151 = vmatpush2.xpose.msra.mxu0 0.0
    %3152 = vmatprep.mubr.f32.mxu0 0.0
    %3153 = vmatmul.mubr.f32.gmra.mxu0 %v3064
    %v3154 = vpop.f32.mrf.mxu0
    %v3155 = vadd.f32 %v73, %v3154
    %v3156 = vpop.f32.mrf.mxu0
    %3157 = vmatprep.mubr.f32.mxu0 0.0
    %3158 = vmatmul.mubr.f32.gmra.mxu0 %v3066
    %v3159 = vpop.f32.mrf.mxu0
    %v3160 = vadd.f32 %v74, %v3159
    %v3161 = vpop.f32.mrf.mxu0
    %3162 = vmatprep.mubr.f32.mxu0 0.0
    %3163 = vmatmul.mubr.f32.gmra.mxu0 %v3068
    %v3164 = vpop.f32.mrf.mxu0
    %v3165 = vadd.f32 %v75, %v3164
    %v3166 = vpop.f32.mrf.mxu0
    %3167 = vmatprep.mubr.f32.mxu0 0.0
    %3168 = vmatmul.mubr.f32.gmra.mxu0 %v3070
    %v3169 = vpop.f32.mrf.mxu0
    %v3170 = vadd.f32 %v76, %v3169
    %v3171 = vpop.f32.mrf.mxu0
    %3172 = vmatprep.mubr.f32.mxu0 0.0
    %3173 = vmatmul.mubr.f32.gmra.mxu0 %v3072
    %v3174 = vpop.f32.mrf.mxu0
    %v3175 = vadd.f32 %v77, %v3174
    %v3176 = vpop.f32.mrf.mxu0
    %3177 = vmatprep.mubr.f32.mxu0 0.0
    %3178 = vmatmul.mubr.f32.gmra.mxu0 %v3074
    %v3179 = vpop.f32.mrf.mxu0
    %v3180 = vadd.f32 %v78, %v3179
    %v3181 = vpop.f32.mrf.mxu0
    %3182 = vdwg.mxu0
    %v3183 = vsel %vm651, %v3155, -inf
    %3184 = vmax.xlane.f32.xlu0 %v3183
    %v3185 = vpop.xlane.xlu0 %3184
    %v3186 = vsel %vm651, %v3160, -inf
    %3187 = vmax.xlane.f32.xlu0 %v3186
    %v3188 = vpop.xlane.xlu0 %3187
    %v3189 = vsel %vm651, %v3165, -inf
    %3190 = vmax.xlane.f32.xlu0 %v3189
    %v3191 = vpop.xlane.xlu0 %3190
    %v3192 = vsel %vm651, %v3170, -inf
    %3193 = vmax.xlane.f32.xlu0 %v3192
    %v3194 = vpop.xlane.xlu0 %3193
    %v3195 = vsel %vm651, %v3175, -inf
    %3196 = vmax.xlane.f32.xlu0 %v3195
    %v3197 = vpop.xlane.xlu0 %3196
    %v3198 = vsel %vm651, %v3180, -inf
    %3199 = vmax.xlane.f32.xlu0 %v3198
    %v3200 = vpop.xlane.xlu0 %3199
    %v3201 = vsub.f32 %v3155, %v3185
    %v3202 = vsub.f32 %v3160, %v3188
    %v3203 = vsub.f32 %v3165, %v3191
    %v3204 = vsub.f32 %v3170, %v3194
    %v3205 = vsub.f32 %v3175, %v3197
    %v3206 = vsub.f32 %v3180, %v3200
    %v3207 = vmul.f32 %v3201, 1.442695
    %v3208 = vpow.pop %v3207
    %v3209 = vmul.f32 %v3202, 1.442695
    %v3210 = vpow.pop %v3209
    %v3211 = vmul.f32 %v3203, 1.442695
    %v3212 = vpow.pop %v3211
    %v3213 = vmul.f32 %v3204, 1.442695
    %v3214 = vpow.pop %v3213
    %v3215 = vmul.f32 %v3205, 1.442695
    %v3216 = vpow.pop %v3215
    %v3217 = vmul.f32 %v3206, 1.442695
    %v3218 = vpow.pop %v3217
    %v3219 = vsel %vm651, %v3208, 0.0
    %3220 = vadd.xlane.f32.xlu0 %v3219
    %v3221 = vpop.xlane.xlu0 %3220
    %v3222 = vsel %vm651, %v3210, 0.0
    %3223 = vadd.xlane.f32.xlu0 %v3222
    %v3224 = vpop.xlane.xlu0 %3223
    %v3225 = vsel %vm651, %v3212, 0.0
    %3226 = vadd.xlane.f32.xlu0 %v3225
    %v3227 = vpop.xlane.xlu0 %3226
    %v3228 = vsel %vm651, %v3214, 0.0
    %3229 = vadd.xlane.f32.xlu0 %v3228
    %v3230 = vpop.xlane.xlu0 %3229
    %v3231 = vsel %vm651, %v3216, 0.0
    %3232 = vadd.xlane.f32.xlu0 %v3231
    %v3233 = vpop.xlane.xlu0 %3232
    %v3234 = vsel %vm651, %v3218, 0.0
    %3235 = vadd.xlane.f32.xlu0 %v3234
    %v3236 = vpop.xlane.xlu0 %3235
    %v3237 = vrcp.pop %v3221
    %v3238 = vrcp.pop %v3224
    %v3239 = vrcp.pop %v3227
    %v3240 = vrcp.pop %v3230
    %v3241 = vrcp.pop %v3233
    %v3242 = vrcp.pop %v3236
    %v3243 = vmul.f32 %v3208, %v3237
    %v3244 = vmul.f32 %v3210, %v3238
    %v3245 = vmul.f32 %v3212, %v3239
    %v3246 = vmul.f32 %v3214, %v3240
    %v3247 = vmul.f32 %v3216, %v3241
    %v3248 = vmul.f32 %v3218, %v3242
    %3249 = vrot.lane.b32.xlu0 %v2678, 56
    %v3250 = vpop.permute.xlu0 %3249
    %3251 = vrot.lane.b32.xlu0 %v2683, 56
    %v3252 = vpop.permute.xlu0 %3251
    %3253 = vrot.lane.b32.xlu0 %v2688, 56
    %v3254 = vpop.permute.xlu0 %3253
    %3255 = vrot.lane.b32.xlu0 %v2693, 56
    %v3256 = vpop.permute.xlu0 %3255
    %3257 = vrot.lane.b32.xlu0 %v2698, 56
    %v3258 = vpop.permute.xlu0 %3257
    %3259 = vrot.lane.b32.xlu0 %v2703, 56
    %v3260 = vpop.permute.xlu0 %3259
    %v3268 = vsel %vm651, %v3243, 0
    %v3271 = vsel %vm651, %v3244, 0
    %v3274 = vsel %vm651, %v3245, 0
    %v3277 = vsel %vm651, %v3246, 0
    %v3280 = vsel %vm651, %v3247, 0
    %v3283 = vsel %vm651, %v3248, 0
    %3285 = vmatprep.subr.mxu0 0.0
    %3286 = vmatpush1.msra.mxu0 0.0
    %3287 = vmatprep.subr.mxu0 0.0
    %3288 = vmatpush1.msra.mxu0 0.0
    %3289 = vmatprep.subr.mxu0 0.0
    %3290 = vmatpush1.msra.mxu0 0.0
    %3291 = vmatprep.subr.mxu0 0.0
    %3292 = vmatpush1.msra.mxu0 0.0
    %3293 = vmatprep.subr.mxu0 0.0
    %3294 = vmatpush1.msra.mxu0 0.0
    %3295 = vmatprep.subr.mxu0 0.0
    %3296 = vmatpush1.msra.mxu0 0.0
    %3297 = vmatprep.subr.mxu0 0.0
    %3298 = vmatpush1.msra.mxu0 0.0
    %3299 = vmatprep.subr.mxu0 0.0
    %3300 = vmatpush1.msra.mxu0 0.0
    %3301 = vmatprep.subr.mxu0 0.0
    %3302 = vmatpush1.msra.mxu0 0.0
    %3303 = vmatprep.subr.mxu0 0.0
    %3304 = vmatpush1.msra.mxu0 0.0
    %3305 = vmatprep.subr.mxu0 0.0
    %3306 = vmatpush1.msra.mxu0 %v3260
    %3307 = vmatprep.subr.mxu0 0.0
    %3308 = vmatpush1.msra.mxu0 %v3258
    %3309 = vmatprep.subr.mxu0 0.0
    %3310 = vmatpush1.msra.mxu0 %v3256
    %3311 = vmatprep.subr.mxu0 0.0
    %3312 = vmatpush1.msra.mxu0 %v3254
    %3313 = vmatprep.subr.mxu0 0.0
    %3314 = vmatpush1.msra.mxu0 %v3252
    %3315 = vmatprep.subr.mxu0 0.0
    %3316 = vmatpush1.msra.mxu0 %v3250
    %3317 = vmatprep.subr.mxu0 0.0
    %3318 = vmatpush2.msra.mxu0 0.0
    %3319 = vmatprep.subr.mxu0 0.0
    %3320 = vmatpush2.msra.mxu0 0.0
    %3321 = vmatprep.subr.mxu0 0.0
    %3322 = vmatpush2.msra.mxu0 0.0
    %3323 = vmatprep.subr.mxu0 0.0
    %3324 = vmatpush2.msra.mxu0 0.0
    %3325 = vmatprep.subr.mxu0 0.0
    %3326 = vmatpush2.msra.mxu0 0.0
    %3327 = vmatprep.subr.mxu0 0.0
    %3328 = vmatpush2.msra.mxu0 0.0
    %3329 = vmatprep.subr.mxu0 0.0
    %3330 = vmatpush2.msra.mxu0 0.0
    %3331 = vmatprep.subr.mxu0 0.0
    %3332 = vmatpush2.msra.mxu0 0.0
    %3333 = vmatprep.subr.mxu0 0.0
    %3334 = vmatpush2.msra.mxu0 0.0
    %3335 = vmatprep.subr.mxu0 0.0
    %3336 = vmatpush2.msra.mxu0 0.0
    %3337 = vmatprep.subr.mxu0 0.0
    %3338 = vmatpush2.msra.mxu0 0.0
    %3339 = vmatprep.subr.mxu0 0.0
    %3340 = vmatpush2.msra.mxu0 0.0
    %3341 = vmatprep.subr.mxu0 0.0
    %3342 = vmatpush2.msra.mxu0 0.0
    %3343 = vmatprep.subr.mxu0 0.0
    %3344 = vmatpush2.msra.mxu0 0.0
    %3345 = vmatprep.subr.mxu0 0.0
    %3346 = vmatpush2.msra.mxu0 0.0
    %3347 = vmatprep.subr.mxu0 0.0
    %3348 = vmatpush2.msra.mxu0 0.0
    %3349 = vmatprep.mubr.f32.mxu0 0.0
    %3350 = vmatmul.mubr.f32.gmra.mxu0 %v3268
    %v3351 = vpop.f32.mrf.mxu0
    %v3352 = vadd.f32 0.0, %v3351
    %v3353 = vpop.f32.mrf.mxu0
    %3354 = vmatprep.mubr.f32.mxu0 0.0
    %3355 = vmatmul.mubr.f32.gmra.mxu0 %v3271
    %v3356 = vpop.f32.mrf.mxu0
    %v3357 = vadd.f32 0.0, %v3356
    %v3358 = vpop.f32.mrf.mxu0
    %3359 = vmatprep.mubr.f32.mxu0 0.0
    %3360 = vmatmul.mubr.f32.gmra.mxu0 %v3274
    %v3361 = vpop.f32.mrf.mxu0
    %v3362 = vadd.f32 0.0, %v3361
    %v3363 = vpop.f32.mrf.mxu0
    %3364 = vmatprep.mubr.f32.mxu0 0.0
    %3365 = vmatmul.mubr.f32.gmra.mxu0 %v3277
    %v3366 = vpop.f32.mrf.mxu0
    %v3367 = vadd.f32 0.0, %v3366
    %v3368 = vpop.f32.mrf.mxu0
    %3369 = vmatprep.mubr.f32.mxu0 0.0
    %3370 = vmatmul.mubr.f32.gmra.mxu0 %v3280
    %v3371 = vpop.f32.mrf.mxu0
    %v3372 = vadd.f32 0.0, %v3371
    %v3373 = vpop.f32.mrf.mxu0
    %3374 = vmatprep.mubr.f32.mxu0 0.0
    %3375 = vmatmul.mubr.f32.gmra.mxu0 %v3283
    %v3376 = vpop.f32.mrf.mxu0
    %v3377 = vadd.f32 0.0, %v3376
    %v3378 = vpop.f32.mrf.mxu0
    %3379 = vdwg.mxu0
    %3380 = vrot.lane.b32.xlu0 %v2678, 112
    %v3381 = vpop.permute.xlu0 %3380
    %3382 = vrot.lane.b32.xlu0 %v2683, 112
    %v3383 = vpop.permute.xlu0 %3382
    %3384 = vrot.lane.b32.xlu0 %v2688, 112
    %v3385 = vpop.permute.xlu0 %3384
    %3386 = vrot.lane.b32.xlu0 %v2693, 112
    %v3387 = vpop.permute.xlu0 %3386
    %3388 = vrot.lane.b32.xlu0 %v2698, 112
    %v3389 = vpop.permute.xlu0 %3388
    %3390 = vrot.lane.b32.xlu0 %v2703, 112
    %v3391 = vpop.permute.xlu0 %3390
    %3392 = vrot.lane.b32.xlu0 %v2678, 80
    %v3393 = vpop.permute.xlu0 %3392
    %3394 = vrot.lane.b32.xlu0 %v2683, 80
    %v3395 = vpop.permute.xlu0 %3394
    %3396 = vrot.lane.b32.xlu0 %v2688, 80
    %v3397 = vpop.permute.xlu0 %3396
    %3398 = vrot.lane.b32.xlu0 %v2693, 80
    %v3399 = vpop.permute.xlu0 %3398
    %3400 = vrot.lane.b32.xlu0 %v2698, 80
    %v3401 = vpop.permute.xlu0 %3400
    %3402 = vrot.lane.b32.xlu0 %v2703, 80
    %v3403 = vpop.permute.xlu0 %3402
    %v3404 = vsel %vm531, %v3381, 0
    %v3406 = vsel %vm531, %v3383, 0
    %v3408 = vsel %vm531, %v3385, 0
    %v3410 = vsel %vm531, %v3387, 0
    %v3412 = vsel %vm531, %v3389, 0
    %v3414 = vsel %vm531, %v3391, 0
    %v3416 = vsel %vm531, %v3393, 0
    %v3418 = vsel %vm531, %v3395, 0
    %v3420 = vsel %vm531, %v3397, 0
    %v3422 = vsel %vm531, %v3399, 0
    %v3424 = vsel %vm531, %v3401, 0
    %v3426 = vsel %vm531, %v3403, 0
    %3428 = vmatprep.subr.mxu0 0.0
    %3429 = vmatpush1.xpose.msra.mxu0 0.0
    %3430 = vmatprep.subr.mxu0 0.0
    %3431 = vmatpush1.xpose.msra.mxu0 0.0
    %3432 = vmatprep.subr.mxu0 0.0
    %3433 = vmatpush1.xpose.msra.mxu0 0.0
    %3434 = vmatprep.subr.mxu0 0.0
    %3435 = vmatpush1.xpose.msra.mxu0 0.0
    %3436 = vmatprep.subr.mxu0 0.0
    %3437 = vmatpush1.xpose.msra.mxu0 0.0
    %3438 = vmatprep.subr.mxu0 0.0
    %3439 = vmatpush1.xpose.msra.mxu0 0.0
    %3440 = vmatprep.subr.mxu0 0.0
    %3441 = vmatpush1.xpose.msra.mxu0 0.0
    %3442 = vmatprep.subr.mxu0 0.0
    %3443 = vmatpush1.xpose.msra.mxu0 0.0
    %3444 = vmatprep.subr.mxu0 0.0
    %3445 = vmatpush1.xpose.msra.mxu0 0.0
    %3446 = vmatprep.subr.mxu0 0.0
    %3447 = vmatpush1.xpose.msra.mxu0 0.0
    %3448 = vmatprep.subr.mxu0 0.0
    %3449 = vmatpush1.xpose.msra.mxu0 %v3426
    %3450 = vmatprep.subr.mxu0 0.0
    %3451 = vmatpush1.xpose.msra.mxu0 %v3424
    %3452 = vmatprep.subr.mxu0 0.0
    %3453 = vmatpush1.xpose.msra.mxu0 %v3422
    %3454 = vmatprep.subr.mxu0 0.0
    %3455 = vmatpush1.xpose.msra.mxu0 %v3420
    %3456 = vmatprep.subr.mxu0 0.0
    %3457 = vmatpush1.xpose.msra.mxu0 %v3418
    %3458 = vmatprep.subr.mxu0 0.0
    %3459 = vmatpush1.xpose.msra.mxu0 %v3416
    %3460 = vmatprep.subr.mxu0 0.0
    %3461 = vmatpush2.xpose.msra.mxu0 0.0
    %3462 = vmatprep.subr.mxu0 0.0
    %3463 = vmatpush2.xpose.msra.mxu0 0.0
    %3464 = vmatprep.subr.mxu0 0.0
    %3465 = vmatpush2.xpose.msra.mxu0 0.0
    %3466 = vmatprep.subr.mxu0 0.0
    %3467 = vmatpush2.xpose.msra.mxu0 0.0
    %3468 = vmatprep.subr.mxu0 0.0
    %3469 = vmatpush2.xpose.msra.mxu0 0.0
    %3470 = vmatprep.subr.mxu0 0.0
    %3471 = vmatpush2.xpose.msra.mxu0 0.0
    %3472 = vmatprep.subr.mxu0 0.0
    %3473 = vmatpush2.xpose.msra.mxu0 0.0
    %3474 = vmatprep.subr.mxu0 0.0
    %3475 = vmatpush2.xpose.msra.mxu0 0.0
    %3476 = vmatprep.subr.mxu0 0.0
    %3477 = vmatpush2.xpose.msra.mxu0 0.0
    %3478 = vmatprep.subr.mxu0 0.0
    %3479 = vmatpush2.xpose.msra.mxu0 0.0
    %3480 = vmatprep.subr.mxu0 0.0
    %3481 = vmatpush2.xpose.msra.mxu0 0.0
    %3482 = vmatprep.subr.mxu0 0.0
    %3483 = vmatpush2.xpose.msra.mxu0 0.0
    %3484 = vmatprep.subr.mxu0 0.0
    %3485 = vmatpush2.xpose.msra.mxu0 0.0
    %3486 = vmatprep.subr.mxu0 0.0
    %3487 = vmatpush2.xpose.msra.mxu0 0.0
    %3488 = vmatprep.subr.mxu0 0.0
    %3489 = vmatpush2.xpose.msra.mxu0 0.0
    %3490 = vmatprep.subr.mxu0 0.0
    %3491 = vmatpush2.xpose.msra.mxu0 0.0
    %3492 = vmatprep.mubr.f32.mxu0 0.0
    %3493 = vmatmul.mubr.f32.gmra.mxu0 %v3404
    %v3494 = vpop.f32.mrf.mxu0
    %v3495 = vadd.f32 %v73, %v3494
    %v3496 = vpop.f32.mrf.mxu0
    %3497 = vmatprep.mubr.f32.mxu0 0.0
    %3498 = vmatmul.mubr.f32.gmra.mxu0 %v3406
    %v3499 = vpop.f32.mrf.mxu0
    %v3500 = vadd.f32 %v74, %v3499
    %v3501 = vpop.f32.mrf.mxu0
    %3502 = vmatprep.mubr.f32.mxu0 0.0
    %3503 = vmatmul.mubr.f32.gmra.mxu0 %v3408
    %v3504 = vpop.f32.mrf.mxu0
    %v3505 = vadd.f32 %v75, %v3504
    %v3506 = vpop.f32.mrf.mxu0
    %3507 = vmatprep.mubr.f32.mxu0 0.0
    %3508 = vmatmul.mubr.f32.gmra.mxu0 %v3410
    %v3509 = vpop.f32.mrf.mxu0
    %v3510 = vadd.f32 %v76, %v3509
    %v3511 = vpop.f32.mrf.mxu0
    %3512 = vmatprep.mubr.f32.mxu0 0.0
    %3513 = vmatmul.mubr.f32.gmra.mxu0 %v3412
    %v3514 = vpop.f32.mrf.mxu0
    %v3515 = vadd.f32 %v77, %v3514
    %v3516 = vpop.f32.mrf.mxu0
    %3517 = vmatprep.mubr.f32.mxu0 0.0
    %3518 = vmatmul.mubr.f32.gmra.mxu0 %v3414
    %v3519 = vpop.f32.mrf.mxu0
    %v3520 = vadd.f32 %v78, %v3519
    %v3521 = vpop.f32.mrf.mxu0
    %3522 = vdwg.mxu0
    %v3523 = vsel %vm651, %v3495, -inf
    %3524 = vmax.xlane.f32.xlu0 %v3523
    %v3525 = vpop.xlane.xlu0 %3524
    %v3526 = vsel %vm651, %v3500, -inf
    %3527 = vmax.xlane.f32.xlu0 %v3526
    %v3528 = vpop.xlane.xlu0 %3527
    %v3529 = vsel %vm651, %v3505, -inf
    %3530 = vmax.xlane.f32.xlu0 %v3529
    %v3531 = vpop.xlane.xlu0 %3530
    %v3532 = vsel %vm651, %v3510, -inf
    %3533 = vmax.xlane.f32.xlu0 %v3532
    %v3534 = vpop.xlane.xlu0 %3533
    %v3535 = vsel %vm651, %v3515, -inf
    %3536 = vmax.xlane.f32.xlu0 %v3535
    %v3537 = vpop.xlane.xlu0 %3536
    %v3538 = vsel %vm651, %v3520, -inf
    %3539 = vmax.xlane.f32.xlu0 %v3538
    %v3540 = vpop.xlane.xlu0 %3539
    %v3541 = vsub.f32 %v3495, %v3525
    %v3542 = vsub.f32 %v3500, %v3528
    %v3543 = vsub.f32 %v3505, %v3531
    %v3544 = vsub.f32 %v3510, %v3534
    %v3545 = vsub.f32 %v3515, %v3537
    %v3546 = vsub.f32 %v3520, %v3540
    %v3547 = vmul.f32 %v3541, 1.442695
    %v3548 = vpow.pop %v3547
    %v3549 = vmul.f32 %v3542, 1.442695
    %v3550 = vpow.pop %v3549
    %v3551 = vmul.f32 %v3543, 1.442695
    %v3552 = vpow.pop %v3551
    %v3553 = vmul.f32 %v3544, 1.442695
    %v3554 = vpow.pop %v3553
    %v3555 = vmul.f32 %v3545, 1.442695
    %v3556 = vpow.pop %v3555
    %v3557 = vmul.f32 %v3546, 1.442695
    %v3558 = vpow.pop %v3557
    %v3559 = vsel %vm651, %v3548, 0.0
    %3560 = vadd.xlane.f32.xlu0 %v3559
    %v3561 = vpop.xlane.xlu0 %3560
    %v3562 = vsel %vm651, %v3550, 0.0
    %3563 = vadd.xlane.f32.xlu0 %v3562
    %v3564 = vpop.xlane.xlu0 %3563
    %v3565 = vsel %vm651, %v3552, 0.0
    %3566 = vadd.xlane.f32.xlu0 %v3565
    %v3567 = vpop.xlane.xlu0 %3566
    %v3568 = vsel %vm651, %v3554, 0.0
    %3569 = vadd.xlane.f32.xlu0 %v3568
    %v3570 = vpop.xlane.xlu0 %3569
    %v3571 = vsel %vm651, %v3556, 0.0
    %3572 = vadd.xlane.f32.xlu0 %v3571
    %v3573 = vpop.xlane.xlu0 %3572
    %v3574 = vsel %vm651, %v3558, 0.0
    %3575 = vadd.xlane.f32.xlu0 %v3574
    %v3576 = vpop.xlane.xlu0 %3575
    %v3577 = vrcp.pop %v3561
    %v3578 = vrcp.pop %v3564
    %v3579 = vrcp.pop %v3567
    %v3580 = vrcp.pop %v3570
    %v3581 = vrcp.pop %v3573
    %v3582 = vrcp.pop %v3576
    %v3583 = vmul.f32 %v3548, %v3577
    %v3584 = vmul.f32 %v3550, %v3578
    %v3585 = vmul.f32 %v3552, %v3579
    %v3586 = vmul.f32 %v3554, %v3580
    %v3587 = vmul.f32 %v3556, %v3581
    %v3588 = vmul.f32 %v3558, %v3582
    %3589 = vrot.lane.b32.xlu0 %v2678, 48
    %v3590 = vpop.permute.xlu0 %3589
    %3591 = vrot.lane.b32.xlu0 %v2683, 48
    %v3592 = vpop.permute.xlu0 %3591
    %3593 = vrot.lane.b32.xlu0 %v2688, 48
    %v3594 = vpop.permute.xlu0 %3593
    %3595 = vrot.lane.b32.xlu0 %v2693, 48
    %v3596 = vpop.permute.xlu0 %3595
    %3597 = vrot.lane.b32.xlu0 %v2698, 48
    %v3598 = vpop.permute.xlu0 %3597
    %3599 = vrot.lane.b32.xlu0 %v2703, 48
    %v3600 = vpop.permute.xlu0 %3599
    %v3608 = vsel %vm651, %v3583, 0
    %v3611 = vsel %vm651, %v3584, 0
    %v3614 = vsel %vm651, %v3585, 0
    %v3617 = vsel %vm651, %v3586, 0
    %v3620 = vsel %vm651, %v3587, 0
    %v3623 = vsel %vm651, %v3588, 0
    %3625 = vmatprep.subr.mxu0 0.0
    %3626 = vmatpush1.msra.mxu0 0.0
    %3627 = vmatprep.subr.mxu0 0.0
    %3628 = vmatpush1.msra.mxu0 0.0
    %3629 = vmatprep.subr.mxu0 0.0
    %3630 = vmatpush1.msra.mxu0 0.0
    %3631 = vmatprep.subr.mxu0 0.0
    %3632 = vmatpush1.msra.mxu0 0.0
    %3633 = vmatprep.subr.mxu0 0.0
    %3634 = vmatpush1.msra.mxu0 0.0
    %3635 = vmatprep.subr.mxu0 0.0
    %3636 = vmatpush1.msra.mxu0 0.0
    %3637 = vmatprep.subr.mxu0 0.0
    %3638 = vmatpush1.msra.mxu0 0.0
    %3639 = vmatprep.subr.mxu0 0.0
    %3640 = vmatpush1.msra.mxu0 0.0
    %3641 = vmatprep.subr.mxu0 0.0
    %3642 = vmatpush1.msra.mxu0 0.0
    %3643 = vmatprep.subr.mxu0 0.0
    %3644 = vmatpush1.msra.mxu0 0.0
    %3645 = vmatprep.subr.mxu0 0.0
    %3646 = vmatpush1.msra.mxu0 %v3600
    %3647 = vmatprep.subr.mxu0 0.0
    %3648 = vmatpush1.msra.mxu0 %v3598
    %3649 = vmatprep.subr.mxu0 0.0
    %3650 = vmatpush1.msra.mxu0 %v3596
    %3651 = vmatprep.subr.mxu0 0.0
    %3652 = vmatpush1.msra.mxu0 %v3594
    %3653 = vmatprep.subr.mxu0 0.0
    %3654 = vmatpush1.msra.mxu0 %v3592
    %3655 = vmatprep.subr.mxu0 0.0
    %3656 = vmatpush1.msra.mxu0 %v3590
    %3657 = vmatprep.subr.mxu0 0.0
    %3658 = vmatpush2.msra.mxu0 0.0
    %3659 = vmatprep.subr.mxu0 0.0
    %3660 = vmatpush2.msra.mxu0 0.0
    %3661 = vmatprep.subr.mxu0 0.0
    %3662 = vmatpush2.msra.mxu0 0.0
    %3663 = vmatprep.subr.mxu0 0.0
    %3664 = vmatpush2.msra.mxu0 0.0
    %3665 = vmatprep.subr.mxu0 0.0
    %3666 = vmatpush2.msra.mxu0 0.0
    %3667 = vmatprep.subr.mxu0 0.0
    %3668 = vmatpush2.msra.mxu0 0.0
    %3669 = vmatprep.subr.mxu0 0.0
    %3670 = vmatpush2.msra.mxu0 0.0
    %3671 = vmatprep.subr.mxu0 0.0
    %3672 = vmatpush2.msra.mxu0 0.0
    %3673 = vmatprep.subr.mxu0 0.0
    %3674 = vmatpush2.msra.mxu0 0.0
    %3675 = vmatprep.subr.mxu0 0.0
    %3676 = vmatpush2.msra.mxu0 0.0
    %3677 = vmatprep.subr.mxu0 0.0
    %3678 = vmatpush2.msra.mxu0 0.0
    %3679 = vmatprep.subr.mxu0 0.0
    %3680 = vmatpush2.msra.mxu0 0.0
    %3681 = vmatprep.subr.mxu0 0.0
    %3682 = vmatpush2.msra.mxu0 0.0
    %3683 = vmatprep.subr.mxu0 0.0
    %3684 = vmatpush2.msra.mxu0 0.0
    %3685 = vmatprep.subr.mxu0 0.0
    %3686 = vmatpush2.msra.mxu0 0.0
    %3687 = vmatprep.subr.mxu0 0.0
    %3688 = vmatpush2.msra.mxu0 0.0
    %3689 = vmatprep.mubr.f32.mxu0 0.0
    %3690 = vmatmul.mubr.f32.gmra.mxu0 %v3608
    %v3691 = vpop.f32.mrf.mxu0
    %v3692 = vadd.f32 0.0, %v3691
    %v3693 = vpop.f32.mrf.mxu0
    %3694 = vmatprep.mubr.f32.mxu0 0.0
    %3695 = vmatmul.mubr.f32.gmra.mxu0 %v3611
    %v3696 = vpop.f32.mrf.mxu0
    %v3697 = vadd.f32 0.0, %v3696
    %v3698 = vpop.f32.mrf.mxu0
    %3699 = vmatprep.mubr.f32.mxu0 0.0
    %3700 = vmatmul.mubr.f32.gmra.mxu0 %v3614
    %v3701 = vpop.f32.mrf.mxu0
    %v3702 = vadd.f32 0.0, %v3701
    %v3703 = vpop.f32.mrf.mxu0
    %3704 = vmatprep.mubr.f32.mxu0 0.0
    %3705 = vmatmul.mubr.f32.gmra.mxu0 %v3617
    %v3706 = vpop.f32.mrf.mxu0
    %v3707 = vadd.f32 0.0, %v3706
    %v3708 = vpop.f32.mrf.mxu0
    %3709 = vmatprep.mubr.f32.mxu0 0.0
    %3710 = vmatmul.mubr.f32.gmra.mxu0 %v3620
    %v3711 = vpop.f32.mrf.mxu0
    %v3712 = vadd.f32 0.0, %v3711
    %v3713 = vpop.f32.mrf.mxu0
    %3714 = vmatprep.mubr.f32.mxu0 0.0
    %3715 = vmatmul.mubr.f32.gmra.mxu0 %v3623
    %v3716 = vpop.f32.mrf.mxu0
    %v3717 = vadd.f32 0.0, %v3716
    %v3718 = vpop.f32.mrf.mxu0
    %3719 = vdwg.mxu0
    %3720 = vrot.lane.b32.xlu0 %v2678, 104
    %v3721 = vpop.permute.xlu0 %3720
    %3722 = vrot.lane.b32.xlu0 %v2683, 104
    %v3723 = vpop.permute.xlu0 %3722
    %3724 = vrot.lane.b32.xlu0 %v2688, 104
    %v3725 = vpop.permute.xlu0 %3724
    %3726 = vrot.lane.b32.xlu0 %v2693, 104
    %v3727 = vpop.permute.xlu0 %3726
    %3728 = vrot.lane.b32.xlu0 %v2698, 104
    %v3729 = vpop.permute.xlu0 %3728
    %3730 = vrot.lane.b32.xlu0 %v2703, 104
    %v3731 = vpop.permute.xlu0 %3730
    %3732 = vrot.lane.b32.xlu0 %v2678, 72
    %v3733 = vpop.permute.xlu0 %3732
    %3734 = vrot.lane.b32.xlu0 %v2683, 72
    %v3735 = vpop.permute.xlu0 %3734
    %3736 = vrot.lane.b32.xlu0 %v2688, 72
    %v3737 = vpop.permute.xlu0 %3736
    %3738 = vrot.lane.b32.xlu0 %v2693, 72
    %v3739 = vpop.permute.xlu0 %3738
    %3740 = vrot.lane.b32.xlu0 %v2698, 72
    %v3741 = vpop.permute.xlu0 %3740
    %3742 = vrot.lane.b32.xlu0 %v2703, 72
    %v3743 = vpop.permute.xlu0 %3742
    %v3744 = vsel %vm531, %v3721, 0
    %v3746 = vsel %vm531, %v3723, 0
    %v3748 = vsel %vm531, %v3725, 0
    %v3750 = vsel %vm531, %v3727, 0
    %v3752 = vsel %vm531, %v3729, 0
    %v3754 = vsel %vm531, %v3731, 0
    %v3756 = vsel %vm531, %v3733, 0
    %v3758 = vsel %vm531, %v3735, 0
    %v3760 = vsel %vm531, %v3737, 0
    %v3762 = vsel %vm531, %v3739, 0
    %v3764 = vsel %vm531, %v3741, 0
    %v3766 = vsel %vm531, %v3743, 0
    %3768 = vmatprep.subr.mxu0 0.0
    %3769 = vmatpush1.xpose.msra.mxu0 0.0
    %3770 = vmatprep.subr.mxu0 0.0
    %3771 = vmatpush1.xpose.msra.mxu0 0.0
    %3772 = vmatprep.subr.mxu0 0.0
    %3773 = vmatpush1.xpose.msra.mxu0 0.0
    %3774 = vmatprep.subr.mxu0 0.0
    %3775 = vmatpush1.xpose.msra.mxu0 0.0
    %3776 = vmatprep.subr.mxu0 0.0
    %3777 = vmatpush1.xpose.msra.mxu0 0.0
    %3778 = vmatprep.subr.mxu0 0.0
    %3779 = vmatpush1.xpose.msra.mxu0 0.0
    %3780 = vmatprep.subr.mxu0 0.0
    %3781 = vmatpush1.xpose.msra.mxu0 0.0
    %3782 = vmatprep.subr.mxu0 0.0
    %3783 = vmatpush1.xpose.msra.mxu0 0.0
    %3784 = vmatprep.subr.mxu0 0.0
    %3785 = vmatpush1.xpose.msra.mxu0 0.0
    %3786 = vmatprep.subr.mxu0 0.0
    %3787 = vmatpush1.xpose.msra.mxu0 0.0
    %3788 = vmatprep.subr.mxu0 0.0
    %3789 = vmatpush1.xpose.msra.mxu0 %v3766
    %3790 = vmatprep.subr.mxu0 0.0
    %3791 = vmatpush1.xpose.msra.mxu0 %v3764
    %3792 = vmatprep.subr.mxu0 0.0
    %3793 = vmatpush1.xpose.msra.mxu0 %v3762
    %3794 = vmatprep.subr.mxu0 0.0
    %3795 = vmatpush1.xpose.msra.mxu0 %v3760
    %3796 = vmatprep.subr.mxu0 0.0
    %3797 = vmatpush1.xpose.msra.mxu0 %v3758
    %3798 = vmatprep.subr.mxu0 0.0
    %3799 = vmatpush1.xpose.msra.mxu0 %v3756
    %3800 = vmatprep.subr.mxu0 0.0
    %3801 = vmatpush2.xpose.msra.mxu0 0.0
    %3802 = vmatprep.subr.mxu0 0.0
    %3803 = vmatpush2.xpose.msra.mxu0 0.0
    %3804 = vmatprep.subr.mxu0 0.0
    %3805 = vmatpush2.xpose.msra.mxu0 0.0
    %3806 = vmatprep.subr.mxu0 0.0
    %3807 = vmatpush2.xpose.msra.mxu0 0.0
    %3808 = vmatprep.subr.mxu0 0.0
    %3809 = vmatpush2.xpose.msra.mxu0 0.0
    %3810 = vmatprep.subr.mxu0 0.0
    %3811 = vmatpush2.xpose.msra.mxu0 0.0
    %3812 = vmatprep.subr.mxu0 0.0
    %3813 = vmatpush2.xpose.msra.mxu0 0.0
    %3814 = vmatprep.subr.mxu0 0.0
    %3815 = vmatpush2.xpose.msra.mxu0 0.0
    %3816 = vmatprep.subr.mxu0 0.0
    %3817 = vmatpush2.xpose.msra.mxu0 0.0
    %3818 = vmatprep.subr.mxu0 0.0
    %3819 = vmatpush2.xpose.msra.mxu0 0.0
    %3820 = vmatprep.subr.mxu0 0.0
    %3821 = vmatpush2.xpose.msra.mxu0 0.0
    %3822 = vmatprep.subr.mxu0 0.0
    %3823 = vmatpush2.xpose.msra.mxu0 0.0
    %3824 = vmatprep.subr.mxu0 0.0
    %3825 = vmatpush2.xpose.msra.mxu0 0.0
    %3826 = vmatprep.subr.mxu0 0.0
    %3827 = vmatpush2.xpose.msra.mxu0 0.0
    %3828 = vmatprep.subr.mxu0 0.0
    %3829 = vmatpush2.xpose.msra.mxu0 0.0
    %3830 = vmatprep.subr.mxu0 0.0
    %3831 = vmatpush2.xpose.msra.mxu0 0.0
    %3832 = vmatprep.mubr.f32.mxu0 0.0
    %3833 = vmatmul.mubr.f32.gmra.mxu0 %v3744
    %v3834 = vpop.f32.mrf.mxu0
    %v3835 = vadd.f32 %v73, %v3834
    %v3836 = vpop.f32.mrf.mxu0
    %3837 = vmatprep.mubr.f32.mxu0 0.0
    %3838 = vmatmul.mubr.f32.gmra.mxu0 %v3746
    %v3839 = vpop.f32.mrf.mxu0
    %v3840 = vadd.f32 %v74, %v3839
    %v3841 = vpop.f32.mrf.mxu0
    %3842 = vmatprep.mubr.f32.mxu0 0.0
    %3843 = vmatmul.mubr.f32.gmra.mxu0 %v3748
    %v3844 = vpop.f32.mrf.mxu0
    %v3845 = vadd.f32 %v75, %v3844
    %v3846 = vpop.f32.mrf.mxu0
    %3847 = vmatprep.mubr.f32.mxu0 0.0
    %3848 = vmatmul.mubr.f32.gmra.mxu0 %v3750
    %v3849 = vpop.f32.mrf.mxu0
    %v3850 = vadd.f32 %v76, %v3849
    %v3851 = vpop.f32.mrf.mxu0
    %3852 = vmatprep.mubr.f32.mxu0 0.0
    %3853 = vmatmul.mubr.f32.gmra.mxu0 %v3752
    %v3854 = vpop.f32.mrf.mxu0
    %v3855 = vadd.f32 %v77, %v3854
    %v3856 = vpop.f32.mrf.mxu0
    %3857 = vmatprep.mubr.f32.mxu0 0.0
    %3858 = vmatmul.mubr.f32.gmra.mxu0 %v3754
    %v3859 = vpop.f32.mrf.mxu0
    %v3860 = vadd.f32 %v78, %v3859
    %v3861 = vpop.f32.mrf.mxu0
    %3862 = vdwg.mxu0
    %v3863 = vsel %vm651, %v3835, -inf
    %3864 = vmax.xlane.f32.xlu0 %v3863
    %v3865 = vpop.xlane.xlu0 %3864
    %v3866 = vsel %vm651, %v3840, -inf
    %3867 = vmax.xlane.f32.xlu0 %v3866
    %v3868 = vpop.xlane.xlu0 %3867
    %v3869 = vsel %vm651, %v3845, -inf
    %3870 = vmax.xlane.f32.xlu0 %v3869
    %v3871 = vpop.xlane.xlu0 %3870
    %v3872 = vsel %vm651, %v3850, -inf
    %3873 = vmax.xlane.f32.xlu0 %v3872
    %v3874 = vpop.xlane.xlu0 %3873
    %v3875 = vsel %vm651, %v3855, -inf
    %3876 = vmax.xlane.f32.xlu0 %v3875
    %v3877 = vpop.xlane.xlu0 %3876
    %v3878 = vsel %vm651, %v3860, -inf
    %3879 = vmax.xlane.f32.xlu0 %v3878
    %v3880 = vpop.xlane.xlu0 %3879
    %v3881 = vsub.f32 %v3835, %v3865
    %v3882 = vsub.f32 %v3840, %v3868
    %v3883 = vsub.f32 %v3845, %v3871
    %v3884 = vsub.f32 %v3850, %v3874
    %v3885 = vsub.f32 %v3855, %v3877
    %v3886 = vsub.f32 %v3860, %v3880
    %v3887 = vmul.f32 %v3881, 1.442695
    %v3888 = vpow.pop %v3887
    %v3889 = vmul.f32 %v3882, 1.442695
    %v3890 = vpow.pop %v3889
    %v3891 = vmul.f32 %v3883, 1.442695
    %v3892 = vpow.pop %v3891
    %v3893 = vmul.f32 %v3884, 1.442695
    %v3894 = vpow.pop %v3893
    %v3895 = vmul.f32 %v3885, 1.442695
    %v3896 = vpow.pop %v3895
    %v3897 = vmul.f32 %v3886, 1.442695
    %v3898 = vpow.pop %v3897
    %v3899 = vsel %vm651, %v3888, 0.0
    %3900 = vadd.xlane.f32.xlu0 %v3899
    %v3901 = vpop.xlane.xlu0 %3900
    %v3902 = vsel %vm651, %v3890, 0.0
    %3903 = vadd.xlane.f32.xlu0 %v3902
    %v3904 = vpop.xlane.xlu0 %3903
    %v3905 = vsel %vm651, %v3892, 0.0
    %3906 = vadd.xlane.f32.xlu0 %v3905
    %v3907 = vpop.xlane.xlu0 %3906
    %v3908 = vsel %vm651, %v3894, 0.0
    %3909 = vadd.xlane.f32.xlu0 %v3908
    %v3910 = vpop.xlane.xlu0 %3909
    %v3911 = vsel %vm651, %v3896, 0.0
    %3912 = vadd.xlane.f32.xlu0 %v3911
    %v3913 = vpop.xlane.xlu0 %3912
    %v3914 = vsel %vm651, %v3898, 0.0
    %3915 = vadd.xlane.f32.xlu0 %v3914
    %v3916 = vpop.xlane.xlu0 %3915
    %v3917 = vrcp.pop %v3901
    %v3918 = vrcp.pop %v3904
    %v3919 = vrcp.pop %v3907
    %v3920 = vrcp.pop %v3910
    %v3921 = vrcp.pop %v3913
    %v3922 = vrcp.pop %v3916
    %v3923 = vmul.f32 %v3888, %v3917
    %v3924 = vmul.f32 %v3890, %v3918
    %v3925 = vmul.f32 %v3892, %v3919
    %v3926 = vmul.f32 %v3894, %v3920
    %v3927 = vmul.f32 %v3896, %v3921
    %v3928 = vmul.f32 %v3898, %v3922
    %3929 = vrot.lane.b32.xlu0 %v2678, 40
    %v3930 = vpop.permute.xlu0 %3929
    %3931 = vrot.lane.b32.xlu0 %v2683, 40
    %v3932 = vpop.permute.xlu0 %3931
    %3933 = vrot.lane.b32.xlu0 %v2688, 40
    %v3934 = vpop.permute.xlu0 %3933
    %3935 = vrot.lane.b32.xlu0 %v2693, 40
    %v3936 = vpop.permute.xlu0 %3935
    %3937 = vrot.lane.b32.xlu0 %v2698, 40
    %v3938 = vpop.permute.xlu0 %3937
    %3939 = vrot.lane.b32.xlu0 %v2703, 40
    %v3940 = vpop.permute.xlu0 %3939
    %v3948 = vsel %vm651, %v3923, 0
    %v3951 = vsel %vm651, %v3924, 0
    %v3954 = vsel %vm651, %v3925, 0
    %v3957 = vsel %vm651, %v3926, 0
    %v3960 = vsel %vm651, %v3927, 0
    %v3963 = vsel %vm651, %v3928, 0
    %3965 = vmatprep.subr.mxu0 0.0
    %3966 = vmatpush1.msra.mxu0 0.0
    %3967 = vmatprep.subr.mxu0 0.0
    %3968 = vmatpush1.msra.mxu0 0.0
    %3969 = vmatprep.subr.mxu0 0.0
    %3970 = vmatpush1.msra.mxu0 0.0
    %3971 = vmatprep.subr.mxu0 0.0
    %3972 = vmatpush1.msra.mxu0 0.0
    %3973 = vmatprep.subr.mxu0 0.0
    %3974 = vmatpush1.msra.mxu0 0.0
    %3975 = vmatprep.subr.mxu0 0.0
    %3976 = vmatpush1.msra.mxu0 0.0
    %3977 = vmatprep.subr.mxu0 0.0
    %3978 = vmatpush1.msra.mxu0 0.0
    %3979 = vmatprep.subr.mxu0 0.0
    %3980 = vmatpush1.msra.mxu0 0.0
    %3981 = vmatprep.subr.mxu0 0.0
    %3982 = vmatpush1.msra.mxu0 0.0
    %3983 = vmatprep.subr.mxu0 0.0
    %3984 = vmatpush1.msra.mxu0 0.0
    %3985 = vmatprep.subr.mxu0 0.0
    %3986 = vmatpush1.msra.mxu0 %v3940
    %3987 = vmatprep.subr.mxu0 0.0
    %3988 = vmatpush1.msra.mxu0 %v3938
    %3989 = vmatprep.subr.mxu0 0.0
    %3990 = vmatpush1.msra.mxu0 %v3936
    %3991 = vmatprep.subr.mxu0 0.0
    %3992 = vmatpush1.msra.mxu0 %v3934
    %3993 = vmatprep.subr.mxu0 0.0
    %3994 = vmatpush1.msra.mxu0 %v3932
    %3995 = vmatprep.subr.mxu0 0.0
    %3996 = vmatpush1.msra.mxu0 %v3930
    %3997 = vmatprep.subr.mxu0 0.0
    %3998 = vmatpush2.msra.mxu0 0.0
    %3999 = vmatprep.subr.mxu0 0.0
    %4000 = vmatpush2.msra.mxu0 0.0
    %4001 = vmatprep.subr.mxu0 0.0
    %4002 = vmatpush2.msra.mxu0 0.0
    %4003 = vmatprep.subr.mxu0 0.0
    %4004 = vmatpush2.msra.mxu0 0.0
    %4005 = vmatprep.subr.mxu0 0.0
    %4006 = vmatpush2.msra.mxu0 0.0
    %4007 = vmatprep.subr.mxu0 0.0
    %4008 = vmatpush2.msra.mxu0 0.0
    %4009 = vmatprep.subr.mxu0 0.0
    %4010 = vmatpush2.msra.mxu0 0.0
    %4011 = vmatprep.subr.mxu0 0.0
    %4012 = vmatpush2.msra.mxu0 0.0
    %4013 = vmatprep.subr.mxu0 0.0
    %4014 = vmatpush2.msra.mxu0 0.0
    %4015 = vmatprep.subr.mxu0 0.0
    %4016 = vmatpush2.msra.mxu0 0.0
    %4017 = vmatprep.subr.mxu0 0.0
    %4018 = vmatpush2.msra.mxu0 0.0
    %4019 = vmatprep.subr.mxu0 0.0
    %4020 = vmatpush2.msra.mxu0 0.0
    %4021 = vmatprep.subr.mxu0 0.0
    %4022 = vmatpush2.msra.mxu0 0.0
    %4023 = vmatprep.subr.mxu0 0.0
    %4024 = vmatpush2.msra.mxu0 0.0
    %4025 = vmatprep.subr.mxu0 0.0
    %4026 = vmatpush2.msra.mxu0 0.0
    %4027 = vmatprep.subr.mxu0 0.0
    %4028 = vmatpush2.msra.mxu0 0.0
    %4029 = vmatprep.mubr.f32.mxu0 0.0
    %4030 = vmatmul.mubr.f32.gmra.mxu0 %v3948
    %v4031 = vpop.f32.mrf.mxu0
    %v4032 = vadd.f32 0.0, %v4031
    %v4033 = vpop.f32.mrf.mxu0
    %4034 = vmatprep.mubr.f32.mxu0 0.0
    %4035 = vmatmul.mubr.f32.gmra.mxu0 %v3951
    %v4036 = vpop.f32.mrf.mxu0
    %v4037 = vadd.f32 0.0, %v4036
    %v4038 = vpop.f32.mrf.mxu0
    %4039 = vmatprep.mubr.f32.mxu0 0.0
    %4040 = vmatmul.mubr.f32.gmra.mxu0 %v3954
    %v4041 = vpop.f32.mrf.mxu0
    %v4042 = vadd.f32 0.0, %v4041
    %v4043 = vpop.f32.mrf.mxu0
    %4044 = vmatprep.mubr.f32.mxu0 0.0
    %4045 = vmatmul.mubr.f32.gmra.mxu0 %v3957
    %v4046 = vpop.f32.mrf.mxu0
    %v4047 = vadd.f32 0.0, %v4046
    %v4048 = vpop.f32.mrf.mxu0
    %4049 = vmatprep.mubr.f32.mxu0 0.0
    %4050 = vmatmul.mubr.f32.gmra.mxu0 %v3960
    %v4051 = vpop.f32.mrf.mxu0
    %v4052 = vadd.f32 0.0, %v4051
    %v4053 = vpop.f32.mrf.mxu0
    %4054 = vmatprep.mubr.f32.mxu0 0.0
    %4055 = vmatmul.mubr.f32.gmra.mxu0 %v3963
    %v4056 = vpop.f32.mrf.mxu0
    %v4057 = vadd.f32 0.0, %v4056
    %v4058 = vpop.f32.mrf.mxu0
    %4059 = vdwg.mxu0
    %4066 = vrot.lane.b32.xlu0 %v3352, 8
    %v4067 = vpop.permute.xlu0 %4066
    %4068 = vrot.lane.b32.xlu0 %v3357, 8
    %v4069 = vpop.permute.xlu0 %4068
    %4070 = vrot.lane.b32.xlu0 %v3362, 8
    %v4071 = vpop.permute.xlu0 %4070
    %4072 = vrot.lane.b32.xlu0 %v3367, 8
    %v4073 = vpop.permute.xlu0 %4072
    %4074 = vrot.lane.b32.xlu0 %v3372, 8
    %v4075 = vpop.permute.xlu0 %4074
    %4076 = vrot.lane.b32.xlu0 %v3377, 8
    %v4077 = vpop.permute.xlu0 %4076
    %4090 = vrot.lane.b32.xlu0 %v3692, 16
    %v4091 = vpop.permute.xlu0 %4090
    %4092 = vrot.lane.b32.xlu0 %v3697, 16
    %v4093 = vpop.permute.xlu0 %4092
    %4094 = vrot.lane.b32.xlu0 %v3702, 16
    %v4095 = vpop.permute.xlu0 %4094
    %4096 = vrot.lane.b32.xlu0 %v3707, 16
    %v4097 = vpop.permute.xlu0 %4096
    %4098 = vrot.lane.b32.xlu0 %v3712, 16
    %v4099 = vpop.permute.xlu0 %4098
    %4100 = vrot.lane.b32.xlu0 %v3717, 16
    %v4101 = vpop.permute.xlu0 %4100
    %4114 = vrot.lane.b32.xlu0 %v4032, 24
    %v4115 = vpop.permute.xlu0 %4114
    %4116 = vrot.lane.b32.xlu0 %v4037, 24
    %v4117 = vpop.permute.xlu0 %4116
    %4118 = vrot.lane.b32.xlu0 %v4042, 24
    %v4119 = vpop.permute.xlu0 %4118
    %4120 = vrot.lane.b32.xlu0 %v4047, 24
    %v4121 = vpop.permute.xlu0 %4120
    %4122 = vrot.lane.b32.xlu0 %v4052, 24
    %v4123 = vpop.permute.xlu0 %4122
    %4124 = vrot.lane.b32.xlu0 %v4057, 24
    %v4125 = vpop.permute.xlu0 %4124
    %v4132 = vsel %vm531, %v3012, %v4067
    %v4133 = vsel %vm531, %v3017, %v4069
    %v4134 = vsel %vm531, %v3022, %v4071
    %v4135 = vsel %vm531, %v3027, %v4073
    %v4136 = vsel %vm531, %v3032, %v4075
    %v4137 = vsel %vm531, %v3037, %v4077
    %v4138 = vsel %vm1947, %v4132, %v4091
    %v4139 = vsel %vm1947, %v4133, %v4093
    %v4140 = vsel %vm1947, %v4134, %v4095
    %v4141 = vsel %vm1947, %v4135, %v4097
    %v4142 = vsel %vm1947, %v4136, %v4099
    %v4143 = vsel %vm1947, %v4137, %v4101
    %v4144 = vsel %vm1954, %v4138, %v4115
    %v4145 = vsel %vm1954, %v4139, %v4117
    %v4146 = vsel %vm1954, %v4140, %v4119
    %v4147 = vsel %vm1954, %v4141, %v4121
    %v4148 = vsel %vm1954, %v4142, %v4123
    %v4149 = vsel %vm1954, %v4143, %v4125
    %s4150 = scalar_lea.vmem %s10, 32
    %v4151 = vld [vmem:[%s4150] sm:$0xff]
    %v4152 = vld [vmem:[%s4150 + $0x8] sm:$0xff]
    %v4153 = vld [vmem:[%s4150 + $0x10] sm:$0xff]
    %v4154 = vld [vmem:[%s4150 + $0x18] sm:$0xff]
    %s4155 = scalar_lea.vmem %s11, 1
    %v4156 = vld [vmem:[%s4155] sm:$0x1]
    %v4158 = vlaneseq
    %v4159 = vshrl.u32 %v4158, 7
    %v4160 = vsub.s32 0, %v4159
    %v4161 = vrot.slane %v4156, %v4160
    %v4164 = vsel %vm1972, %v4144, 0
    %v4167 = vsel %vm1972, %v4145, 0
    %v4170 = vsel %vm1972, %v4146, 0
    %v4173 = vsel %vm1972, %v4147, 0
    %v4176 = vsel %vm1972, %v4148, 0
    %v4179 = vsel %vm1972, %v4149, 0
    %4181 = vmatprep.subr.mxu0 0.0
    %4182 = vmatpush1.msra.mxu0 0.0
    %4183 = vmatprep.subr.mxu0 0.0
    %4184 = vmatpush1.msra.mxu0 0.0
    %4185 = vmatprep.subr.mxu0 0.0
    %4186 = vmatpush1.msra.mxu0 0.0
    %4187 = vmatprep.subr.mxu0 0.0
    %4188 = vmatpush1.msra.mxu0 0.0
    %4189 = vmatprep.subr.mxu0 0.0
    %4190 = vmatpush1.msra.mxu0 0.0
    %4191 = vmatprep.subr.mxu0 0.0
    %4192 = vmatpush1.msra.mxu0 0.0
    %4193 = vmatprep.subr.mxu0 0.0
    %4194 = vmatpush1.msra.mxu0 0.0
    %4195 = vmatprep.subr.mxu0 0.0
    %4196 = vmatpush1.msra.mxu0 0.0
    %4197 = vmatprep.subr.mxu0 0.0
    %4198 = vmatpush1.msra.mxu0 0.0
    %4199 = vmatprep.subr.mxu0 0.0
    %4200 = vmatpush1.msra.mxu0 0.0
    %4201 = vmatprep.subr.mxu0 0.0
    %4202 = vmatpush1.msra.mxu0 0.0
    %4203 = vmatprep.subr.mxu0 0.0
    %4204 = vmatpush1.msra.mxu0 0.0
    %4205 = vmatprep.subr.mxu0 0.0
    %4206 = vmatpush1.msra.mxu0 %v4154
    %4207 = vmatprep.subr.mxu0 0.0
    %4208 = vmatpush1.msra.mxu0 %v4153
    %4209 = vmatprep.subr.mxu0 0.0
    %4210 = vmatpush1.msra.mxu0 %v4152
    %4211 = vmatprep.subr.mxu0 0.0
    %4212 = vmatpush1.msra.mxu0 %v4151
    %4213 = vmatprep.subr.mxu0 0.0
    %4214 = vmatpush2.msra.mxu0 0.0
    %4215 = vmatprep.subr.mxu0 0.0
    %4216 = vmatpush2.msra.mxu0 0.0
    %4217 = vmatprep.subr.mxu0 0.0
    %4218 = vmatpush2.msra.mxu0 0.0
    %4219 = vmatprep.subr.mxu0 0.0
    %4220 = vmatpush2.msra.mxu0 0.0
    %4221 = vmatprep.subr.mxu0 0.0
    %4222 = vmatpush2.msra.mxu0 0.0
    %4223 = vmatprep.subr.mxu0 0.0
    %4224 = vmatpush2.msra.mxu0 0.0
    %4225 = vmatprep.subr.mxu0 0.0
    %4226 = vmatpush2.msra.mxu0 0.0
    %4227 = vmatprep.subr.mxu0 0.0
    %4228 = vmatpush2.msra.mxu0 0.0
    %4229 = vmatprep.subr.mxu0 0.0
    %4230 = vmatpush2.msra.mxu0 0.0
    %4231 = vmatprep.subr.mxu0 0.0
    %4232 = vmatpush2.msra.mxu0 0.0
    %4233 = vmatprep.subr.mxu0 0.0
    %4234 = vmatpush2.msra.mxu0 0.0
    %4235 = vmatprep.subr.mxu0 0.0
    %4236 = vmatpush2.msra.mxu0 0.0
    %4237 = vmatprep.subr.mxu0 0.0
    %4238 = vmatpush2.msra.mxu0 0.0
    %4239 = vmatprep.subr.mxu0 0.0
    %4240 = vmatpush2.msra.mxu0 0.0
    %4241 = vmatprep.subr.mxu0 0.0
    %4242 = vmatpush2.msra.mxu0 0.0
    %4243 = vmatprep.subr.mxu0 0.0
    %4244 = vmatpush2.msra.mxu0 0.0
    %4245 = vmatprep.mubr.f32.mxu0 0.0
    %4246 = vmatmul.mubr.f32.gmra.mxu0 %v4164
    %v4247 = vpop.f32.mrf.mxu0
    %v4248 = vadd.f32 %v4161, %v4247
    %v4249 = vpop.f32.mrf.mxu0
    %4250 = vmatprep.mubr.f32.mxu0 0.0
    %4251 = vmatmul.mubr.f32.gmra.mxu0 %v4167
    %v4252 = vpop.f32.mrf.mxu0
    %v4253 = vadd.f32 %v4161, %v4252
    %v4254 = vpop.f32.mrf.mxu0
    %4255 = vmatprep.mubr.f32.mxu0 0.0
    %4256 = vmatmul.mubr.f32.gmra.mxu0 %v4170
    %v4257 = vpop.f32.mrf.mxu0
    %v4258 = vadd.f32 %v4161, %v4257
    %v4259 = vpop.f32.mrf.mxu0
    %4260 = vmatprep.mubr.f32.mxu0 0.0
    %4261 = vmatmul.mubr.f32.gmra.mxu0 %v4173
    %v4262 = vpop.f32.mrf.mxu0
    %v4263 = vadd.f32 %v4161, %v4262
    %v4264 = vpop.f32.mrf.mxu0
    %4265 = vmatprep.mubr.f32.mxu0 0.0
    %4266 = vmatmul.mubr.f32.gmra.mxu0 %v4176
    %v4267 = vpop.f32.mrf.mxu0
    %v4268 = vadd.f32 %v4161, %v4267
    %v4269 = vpop.f32.mrf.mxu0
    %4270 = vmatprep.mubr.f32.mxu0 0.0
    %4271 = vmatmul.mubr.f32.gmra.mxu0 %v4179
    %v4272 = vpop.f32.mrf.mxu0
    %v4273 = vadd.f32 %v4161, %v4272
    %v4274 = vpop.f32.mrf.mxu0
    %4275 = vdwg.mxu0
    %v4276 = vadd.f32 %v2480, %v4248
    %v4277 = vadd.f32 %v2481, %v4253
    %v4278 = vadd.f32 %v2482, %v4258
    %v4279 = vadd.f32 %v2483, %v4263
    %v4280 = vadd.f32 %v2484, %v4268
    %v4281 = vadd.f32 %v2485, %v4273
    %s4282 = scalar_lea.vmem %s12, 1
    %v4283 = vld [vmem:[%s4282] sm:$0x1]
    %s4284 = scalar_lea.vmem %s13, 1
    %v4285 = vld [vmem:[%s4284] sm:$0x1]
    %4286 = vadd.xlane.f32.xlu0 %v4276
    %v4287 = vpop.xlane.xlu0 %4286
    %4288 = vadd.xlane.f32.xlu0 %v4277
    %v4289 = vpop.xlane.xlu0 %4288
    %4290 = vadd.xlane.f32.xlu0 %v4278
    %v4291 = vpop.xlane.xlu0 %4290
    %4292 = vadd.xlane.f32.xlu0 %v4279
    %v4293 = vpop.xlane.xlu0 %4292
    %4294 = vadd.xlane.f32.xlu0 %v4280
    %v4295 = vpop.xlane.xlu0 %4294
    %4296 = vadd.xlane.f32.xlu0 %v4281
    %v4297 = vpop.xlane.xlu0 %4296
    %v4298 = vmul.f32 %v4287, 0.03125
    %v4299 = vmul.f32 %v4289, 0.03125
    %v4300 = vmul.f32 %v4291, 0.03125
    %v4301 = vmul.f32 %v4293, 0.03125
    %v4302 = vmul.f32 %v4295, 0.03125
    %v4303 = vmul.f32 %v4297, 0.03125
    %v4304 = vsub.f32 %v4276, %v4298
    %v4305 = vsub.f32 %v4277, %v4299
    %v4306 = vsub.f32 %v4278, %v4300
    %v4307 = vsub.f32 %v4279, %v4301
    %v4308 = vsub.f32 %v4280, %v4302
    %v4309 = vsub.f32 %v4281, %v4303
    %v4310 = vmul.f32 %v4304, %v72
    %v4311 = vmul.f32 %v4305, %v72
    %v4312 = vmul.f32 %v4306, %v72
    %v4313 = vmul.f32 %v4307, %v72
    %v4314 = vmul.f32 %v4308, %v72
    %v4315 = vmul.f32 %v4309, %v72
    %v4316 = vmul.f32 %v4310, %v4310
    %v4317 = vmul.f32 %v4311, %v4311
    %v4318 = vmul.f32 %v4312, %v4312
    %v4319 = vmul.f32 %v4313, %v4313
    %v4320 = vmul.f32 %v4314, %v4314
    %v4321 = vmul.f32 %v4315, %v4315
    %4322 = vadd.xlane.f32.xlu0 %v4316
    %v4323 = vpop.xlane.xlu0 %4322
    %4324 = vadd.xlane.f32.xlu0 %v4317
    %v4325 = vpop.xlane.xlu0 %4324
    %4326 = vadd.xlane.f32.xlu0 %v4318
    %v4327 = vpop.xlane.xlu0 %4326
    %4328 = vadd.xlane.f32.xlu0 %v4319
    %v4329 = vpop.xlane.xlu0 %4328
    %4330 = vadd.xlane.f32.xlu0 %v4320
    %v4331 = vpop.xlane.xlu0 %4330
    %4332 = vadd.xlane.f32.xlu0 %v4321
    %v4333 = vpop.xlane.xlu0 %4332
    %v4334 = vmul.f32 %v4323, 0.03125
    %v4335 = vmul.f32 %v4325, 0.03125
    %v4336 = vmul.f32 %v4327, 0.03125
    %v4337 = vmul.f32 %v4329, 0.03125
    %v4338 = vmul.f32 %v4331, 0.03125
    %v4339 = vmul.f32 %v4333, 0.03125
    %v4340 = vadd.f32 %v4334, 1e-05
    %v4341 = vadd.f32 %v4335, 1e-05
    %v4342 = vadd.f32 %v4336, 1e-05
    %v4343 = vadd.f32 %v4337, 1e-05
    %v4344 = vadd.f32 %v4338, 1e-05
    %v4345 = vadd.f32 %v4339, 1e-05
    %v4346 = vrsqrt.pop %v4340
    %v4347 = vrsqrt.pop %v4341
    %v4348 = vrsqrt.pop %v4342
    %v4349 = vrsqrt.pop %v4343
    %v4350 = vrsqrt.pop %v4344
    %v4351 = vrsqrt.pop %v4345
    %v4352 = vmul.f32 %v4310, %v4346
    %v4353 = vmul.f32 %v4311, %v4347
    %v4354 = vmul.f32 %v4312, %v4348
    %v4355 = vmul.f32 %v4313, %v4349
    %v4356 = vmul.f32 %v4314, %v4350
    %v4357 = vmul.f32 %v4315, %v4351
    %v4359 = vlaneseq
    %v4360 = vshrl.u32 %v4359, 7
    %v4361 = vsub.s32 0, %v4360
    %v4362 = vrot.slane %v4283, %v4361
    %v4364 = vmul.f32 %v4352, %v4362
    %v4365 = vmul.f32 %v4353, %v4362
    %v4366 = vmul.f32 %v4354, %v4362
    %v4367 = vmul.f32 %v4355, %v4362
    %v4368 = vmul.f32 %v4356, %v4362
    %v4369 = vmul.f32 %v4357, %v4362
    %v4371 = vlaneseq
    %v4372 = vshrl.u32 %v4371, 7
    %v4373 = vsub.s32 0, %v4372
    %v4374 = vrot.slane %v4285, %v4373
    %v4376 = vadd.f32 %v4364, %v4374
    %v4377 = vadd.f32 %v4365, %v4374
    %v4378 = vadd.f32 %v4366, %v4374
    %v4379 = vadd.f32 %v4367, %v4374
    %v4380 = vadd.f32 %v4368, %v4374
    %v4381 = vadd.f32 %v4369, %v4374
    %s4382 = scalar_lea.vmem %s14, 128
    %v4383 = vld [vmem:[%s4382] sm:$0xff]
    %v4384 = vld [vmem:[%s4382 + $0x8] sm:$0xff]
    %v4385 = vld [vmem:[%s4382 + $0x10] sm:$0xff]
    %v4386 = vld [vmem:[%s4382 + $0x18] sm:$0xff]
    %v4387 = vld [vmem:[%s4382 + $0x20] sm:$0xff]
    %v4388 = vld [vmem:[%s4382 + $0x28] sm:$0xff]
    %v4389 = vld [vmem:[%s4382 + $0x30] sm:$0xff]
    %v4390 = vld [vmem:[%s4382 + $0x38] sm:$0xff]
    %v4391 = vld [vmem:[%s4382 + $0x40] sm:$0xff]
    %v4392 = vld [vmem:[%s4382 + $0x48] sm:$0xff]
    %v4393 = vld [vmem:[%s4382 + $0x50] sm:$0xff]
    %v4394 = vld [vmem:[%s4382 + $0x58] sm:$0xff]
    %v4395 = vld [vmem:[%s4382 + $0x60] sm:$0xff]
    %v4396 = vld [vmem:[%s4382 + $0x68] sm:$0xff]
    %v4397 = vld [vmem:[%s4382 + $0x70] sm:$0xff]
    %v4398 = vld [vmem:[%s4382 + $0x78] sm:$0xff]
    %s4399 = scalar_lea.vmem %s15, 1
    %v4400 = vld [vmem:[%s4399] sm:$0x1]
    %v4402 = vlaneseq
    %v4403 = vshrl.u32 %v4402, 7
    %v4404 = vsub.s32 0, %v4403
    %v4405 = vrot.slane %v4400, %v4404
    %4407 = vmatprep.subr.mxu0 0.0
    %4408 = vmatpush1.msra.mxu0 %v4398
    %4409 = vmatprep.subr.mxu0 0.0
    %4410 = vmatpush1.msra.mxu0 %v4397
    %4411 = vmatprep.subr.mxu0 0.0
    %4412 = vmatpush1.msra.mxu0 %v4396
    %4413 = vmatprep.subr.mxu0 0.0
    %4414 = vmatpush1.msra.mxu0 %v4395
    %4415 = vmatprep.subr.mxu0 0.0
    %4416 = vmatpush1.msra.mxu0 %v4394
    %4417 = vmatprep.subr.mxu0 0.0
    %4418 = vmatpush1.msra.mxu0 %v4393
    %4419 = vmatprep.subr.mxu0 0.0
    %4420 = vmatpush1.msra.mxu0 %v4392
    %4421 = vmatprep.subr.mxu0 0.0
    %4422 = vmatpush1.msra.mxu0 %v4391
    %4423 = vmatprep.subr.mxu0 0.0
    %4424 = vmatpush1.msra.mxu0 %v4390
    %4425 = vmatprep.subr.mxu0 0.0
    %4426 = vmatpush1.msra.mxu0 %v4389
    %4427 = vmatprep.subr.mxu0 0.0
    %4428 = vmatpush1.msra.mxu0 %v4388
    %4429 = vmatprep.subr.mxu0 0.0
    %4430 = vmatpush1.msra.mxu0 %v4387
    %4431 = vmatprep.subr.mxu0 0.0
    %4432 = vmatpush1.msra.mxu0 %v4386
    %4433 = vmatprep.subr.mxu0 0.0
    %4434 = vmatpush1.msra.mxu0 %v4385
    %4435 = vmatprep.subr.mxu0 0.0
    %4436 = vmatpush1.msra.mxu0 %v4384
    %4437 = vmatprep.subr.mxu0 0.0
    %4438 = vmatpush1.msra.mxu0 %v4383
    %4439 = vmatprep.subr.mxu0 0.0
    %4440 = vmatpush2.msra.mxu0 0.0
    %4441 = vmatprep.subr.mxu0 0.0
    %4442 = vmatpush2.msra.mxu0 0.0
    %4443 = vmatprep.subr.mxu0 0.0
    %4444 = vmatpush2.msra.mxu0 0.0
    %4445 = vmatprep.subr.mxu0 0.0
    %4446 = vmatpush2.msra.mxu0 0.0
    %4447 = vmatprep.subr.mxu0 0.0
    %4448 = vmatpush2.msra.mxu0 0.0
    %4449 = vmatprep.subr.mxu0 0.0
    %4450 = vmatpush2.msra.mxu0 0.0
    %4451 = vmatprep.subr.mxu0 0.0
    %4452 = vmatpush2.msra.mxu0 0.0
    %4453 = vmatprep.subr.mxu0 0.0
    %4454 = vmatpush2.msra.mxu0 0.0
    %4455 = vmatprep.subr.mxu0 0.0
    %4456 = vmatpush2.msra.mxu0 0.0
    %4457 = vmatprep.subr.mxu0 0.0
    %4458 = vmatpush2.msra.mxu0 0.0
    %4459 = vmatprep.subr.mxu0 0.0
    %4460 = vmatpush2.msra.mxu0 0.0
    %4461 = vmatprep.subr.mxu0 0.0
    %4462 = vmatpush2.msra.mxu0 0.0
    %4463 = vmatprep.subr.mxu0 0.0
    %4464 = vmatpush2.msra.mxu0 0.0
    %4465 = vmatprep.subr.mxu0 0.0
    %4466 = vmatpush2.msra.mxu0 0.0
    %4467 = vmatprep.subr.mxu0 0.0
    %4468 = vmatpush2.msra.mxu0 0.0
    %4469 = vmatprep.subr.mxu0 0.0
    %4470 = vmatpush2.msra.mxu0 0.0
    %4471 = vmatprep.mubr.f32.mxu0 0.0
    %4472 = vmatmul.mubr.f32.gmra.mxu0 %v4376
    %v4473 = vpop.f32.mrf.mxu0
    %v4474 = vadd.f32 %v4405, %v4473
    %v4475 = vpop.f32.mrf.mxu0
    %4476 = vmatprep.mubr.f32.mxu0 0.0
    %4477 = vmatmul.mubr.f32.gmra.mxu0 %v4377
    %v4478 = vpop.f32.mrf.mxu0
    %v4479 = vadd.f32 %v4405, %v4478
    %v4480 = vpop.f32.mrf.mxu0
    %4481 = vmatprep.mubr.f32.mxu0 0.0
    %4482 = vmatmul.mubr.f32.gmra.mxu0 %v4378
    %v4483 = vpop.f32.mrf.mxu0
    %v4484 = vadd.f32 %v4405, %v4483
    %v4485 = vpop.f32.mrf.mxu0
    %4486 = vmatprep.mubr.f32.mxu0 0.0
    %4487 = vmatmul.mubr.f32.gmra.mxu0 %v4379
    %v4488 = vpop.f32.mrf.mxu0
    %v4489 = vadd.f32 %v4405, %v4488
    %v4490 = vpop.f32.mrf.mxu0
    %4491 = vmatprep.mubr.f32.mxu0 0.0
    %4492 = vmatmul.mubr.f32.gmra.mxu0 %v4380
    %v4493 = vpop.f32.mrf.mxu0
    %v4494 = vadd.f32 %v4405, %v4493
    %v4495 = vpop.f32.mrf.mxu0
    %4496 = vmatprep.mubr.f32.mxu0 0.0
    %4497 = vmatmul.mubr.f32.gmra.mxu0 %v4381
    %v4498 = vpop.f32.mrf.mxu0
    %v4499 = vadd.f32 %v4405, %v4498
    %v4500 = vpop.f32.mrf.mxu0
    %4501 = vdwg.mxu0
    %v4502 = vmul.f32 %v4474, 1.702
    %v4503 = vmul.f32 %v4479, 1.702
    %v4504 = vmul.f32 %v4484, 1.702
    %v4505 = vmul.f32 %v4489, 1.702
    %v4506 = vmul.f32 %v4494, 1.702
    %v4507 = vmul.f32 %v4499, 1.702
    %v4508 = vxor.u32 %v4502, 2147483648
    %v4509 = vxor.u32 %v4503, 2147483648
    %v4510 = vxor.u32 %v4504, 2147483648
    %v4511 = vxor.u32 %v4505, 2147483648
    %v4512 = vxor.u32 %v4506, 2147483648
    %v4513 = vxor.u32 %v4507, 2147483648
    %v4514 = vmul.f32 %v4508, 1.442695
    %v4515 = vpow.pop %v4514
    %v4516 = vmul.f32 %v4509, 1.442695
    %v4517 = vpow.pop %v4516
    %v4518 = vmul.f32 %v4510, 1.442695
    %v4519 = vpow.pop %v4518
    %v4520 = vmul.f32 %v4511, 1.442695
    %v4521 = vpow.pop %v4520
    %v4522 = vmul.f32 %v4512, 1.442695
    %v4523 = vpow.pop %v4522
    %v4524 = vmul.f32 %v4513, 1.442695
    %v4525 = vpow.pop %v4524
    %v4526 = vadd.f32 %v4515, 1.0
    %v4527 = vadd.f32 %v4517, 1.0
    %v4528 = vadd.f32 %v4519, 1.0
    %v4529 = vadd.f32 %v4521, 1.0
    %v4530 = vadd.f32 %v4523, 1.0
    %v4531 = vadd.f32 %v4525, 1.0
    %v4532 = vrcp.pop %v4526
    %v4533 = vmul.f32 1.0, %v4532
    %v4534 = vrcp.pop %v4527
    %v4535 = vmul.f32 1.0, %v4534
    %v4536 = vrcp.pop %v4528
    %v4537 = vmul.f32 1.0, %v4536
    %v4538 = vrcp.pop %v4529
    %v4539 = vmul.f32 1.0, %v4538
    %v4540 = vrcp.pop %v4530
    %v4541 = vmul.f32 1.0, %v4540
    %v4542 = vrcp.pop %v4531
    %v4543 = vmul.f32 1.0, %v4542
    %v4544 = vmul.f32 %v4474, %v4533
    %v4545 = vmul.f32 %v4479, %v4535
    %v4546 = vmul.f32 %v4484, %v4537
    %v4547 = vmul.f32 %v4489, %v4539
    %v4548 = vmul.f32 %v4494, %v4541
    %v4549 = vmul.f32 %v4499, %v4543
    %s4550 = scalar_lea.vmem %s16, 128
    %v4551 = vld [vmem:[%s4550] sm:$0xff]
    %v4552 = vld [vmem:[%s4550 + $0x8] sm:$0xff]
    %v4553 = vld [vmem:[%s4550 + $0x10] sm:$0xff]
    %v4554 = vld [vmem:[%s4550 + $0x18] sm:$0xff]
    %v4555 = vld [vmem:[%s4550 + $0x20] sm:$0xff]
    %v4556 = vld [vmem:[%s4550 + $0x28] sm:$0xff]
    %v4557 = vld [vmem:[%s4550 + $0x30] sm:$0xff]
    %v4558 = vld [vmem:[%s4550 + $0x38] sm:$0xff]
    %v4559 = vld [vmem:[%s4550 + $0x40] sm:$0xff]
    %v4560 = vld [vmem:[%s4550 + $0x48] sm:$0xff]
    %v4561 = vld [vmem:[%s4550 + $0x50] sm:$0xff]
    %v4562 = vld [vmem:[%s4550 + $0x58] sm:$0xff]
    %v4563 = vld [vmem:[%s4550 + $0x60] sm:$0xff]
    %v4564 = vld [vmem:[%s4550 + $0x68] sm:$0xff]
    %v4565 = vld [vmem:[%s4550 + $0x70] sm:$0xff]
    %v4566 = vld [vmem:[%s4550 + $0x78] sm:$0xff]
    %4567 = vmatprep.subr.mxu0 0.0
    %4568 = vmatpush1.msra.mxu0 %v4566
    %4569 = vmatprep.subr.mxu0 0.0
    %4570 = vmatpush1.msra.mxu0 %v4565
    %4571 = vmatprep.subr.mxu0 0.0
    %4572 = vmatpush1.msra.mxu0 %v4564
    %4573 = vmatprep.subr.mxu0 0.0
    %4574 = vmatpush1.msra.mxu0 %v4563
    %4575 = vmatprep.subr.mxu0 0.0
    %4576 = vmatpush1.msra.mxu0 %v4562
    %4577 = vmatprep.subr.mxu0 0.0
    %4578 = vmatpush1.msra.mxu0 %v4561
    %4579 = vmatprep.subr.mxu0 0.0
    %4580 = vmatpush1.msra.mxu0 %v4560
    %4581 = vmatprep.subr.mxu0 0.0
    %4582 = vmatpush1.msra.mxu0 %v4559
    %4583 = vmatprep.subr.mxu0 0.0
    %4584 = vmatpush1.msra.mxu0 %v4558
    %4585 = vmatprep.subr.mxu0 0.0
    %4586 = vmatpush1.msra.mxu0 %v4557
    %4587 = vmatprep.subr.mxu0 0.0
    %4588 = vmatpush1.msra.mxu0 %v4556
    %4589 = vmatprep.subr.mxu0 0.0
    %4590 = vmatpush1.msra.mxu0 %v4555
    %4591 = vmatprep.subr.mxu0 0.0
    %4592 = vmatpush1.msra.mxu0 %v4554
    %4593 = vmatprep.subr.mxu0 0.0
    %4594 = vmatpush1.msra.mxu0 %v4553
    %4595 = vmatprep.subr.mxu0 0.0
    %4596 = vmatpush1.msra.mxu0 %v4552
    %4597 = vmatprep.subr.mxu0 0.0
    %4598 = vmatpush1.msra.mxu0 %v4551
    %4599 = vmatprep.subr.mxu0 0.0
    %4600 = vmatpush2.msra.mxu0 0.0
    %4601 = vmatprep.subr.mxu0 0.0
    %4602 = vmatpush2.msra.mxu0 0.0
    %4603 = vmatprep.subr.mxu0 0.0
    %4604 = vmatpush2.msra.mxu0 0.0
    %4605 = vmatprep.subr.mxu0 0.0
    %4606 = vmatpush2.msra.mxu0 0.0
    %4607 = vmatprep.subr.mxu0 0.0
    %4608 = vmatpush2.msra.mxu0 0.0
    %4609 = vmatprep.subr.mxu0 0.0
    %4610 = vmatpush2.msra.mxu0 0.0
    %4611 = vmatprep.subr.mxu0 0.0
    %4612 = vmatpush2.msra.mxu0 0.0
    %4613 = vmatprep.subr.mxu0 0.0
    %4614 = vmatpush2.msra.mxu0 0.0
    %4615 = vmatprep.subr.mxu0 0.0
    %4616 = vmatpush2.msra.mxu0 0.0
    %4617 = vmatprep.subr.mxu0 0.0
    %4618 = vmatpush2.msra.mxu0 0.0
    %4619 = vmatprep.subr.mxu0 0.0
    %4620 = vmatpush2.msra.mxu0 0.0
    %4621 = vmatprep.subr.mxu0 0.0
    %4622 = vmatpush2.msra.mxu0 0.0
    %4623 = vmatprep.subr.mxu0 0.0
    %4624 = vmatpush2.msra.mxu0 0.0
    %4625 = vmatprep.subr.mxu0 0.0
    %4626 = vmatpush2.msra.mxu0 0.0
    %4627 = vmatprep.subr.mxu0 0.0
    %4628 = vmatpush2.msra.mxu0 0.0
    %4629 = vmatprep.subr.mxu0 0.0
    %4630 = vmatpush2.msra.mxu0 0.0
    %4631 = vmatprep.mubr.f32.mxu0 0.0
    %4632 = vmatmul.mubr.f32.gmra.mxu0 %v4544
    %v4633 = vpop.f32.mrf.mxu0
    %v4634 = vadd.f32 0.0, %v4633
    %v4635 = vpop.f32.mrf.mxu0
    %4636 = vmatprep.mubr.f32.mxu0 0.0
    %4637 = vmatmul.mubr.f32.gmra.mxu0 %v4545
    %v4638 = vpop.f32.mrf.mxu0
    %v4639 = vadd.f32 0.0, %v4638
    %v4640 = vpop.f32.mrf.mxu0
    %4641 = vmatprep.mubr.f32.mxu0 0.0
    %4642 = vmatmul.mubr.f32.gmra.mxu0 %v4546
    %v4643 = vpop.f32.mrf.mxu0
    %v4644 = vadd.f32 0.0, %v4643
    %v4645 = vpop.f32.mrf.mxu0
    %4646 = vmatprep.mubr.f32.mxu0 0.0
    %4647 = vmatmul.mubr.f32.gmra.mxu0 %v4547
    %v4648 = vpop.f32.mrf.mxu0
    %v4649 = vadd.f32 0.0, %v4648
    %v4650 = vpop.f32.mrf.mxu0
    %4651 = vmatprep.mubr.f32.mxu0 0.0
    %4652 = vmatmul.mubr.f32.gmra.mxu0 %v4548
    %v4653 = vpop.f32.mrf.mxu0
    %v4654 = vadd.f32 0.0, %v4653
    %v4655 = vpop.f32.mrf.mxu0
    %4656 = vmatprep.mubr.f32.mxu0 0.0
    %4657 = vmatmul.mubr.f32.gmra.mxu0 %v4549
    %v4658 = vpop.f32.mrf.mxu0
    %v4659 = vadd.f32 0.0, %v4658
    %v4660 = vpop.f32.mrf.mxu0
    %4661 = vdwg.mxu0
    %v4662 = vadd.f32 %v4276, %v4634
    %v4663 = vadd.f32 %v4277, %v4639
    %v4664 = vadd.f32 %v4278, %v4644
    %v4665 = vadd.f32 %v4279, %v4649
    %v4666 = vadd.f32 %v4280, %v4654
    %v4667 = vadd.f32 %v4281, %v4659
    %s4668 = scalar_lea.vmem %s17, 1
    %v4669 = vld [vmem:[%s4668] sm:$0x1]
    %v4671 = vlaneseq
    %v4672 = vshrl.u32 %v4671, 7
    %v4673 = vsub.s32 0, %v4672
    %v4674 = vrot.slane %v4669, %v4673
    %v4676 = vadd.f32 %v4662, %v4674
    %v4677 = vadd.f32 %v4663, %v4674
    %v4678 = vadd.f32 %v4664, %v4674
    %v4679 = vadd.f32 %v4665, %v4674
    %v4680 = vadd.f32 %v4666, %v4674
    %v4681 = vadd.f32 %v4667, %v4674
    %4682 = vst [vmem:[%s20] sm:$0xff] %v4676
    %4683 = vst [vmem:[%s20 + $0x8] sm:$0xff] %v4677
    %4684 = vst [vmem:[%s20 + $0x10] sm:$0xff] %v4678
    %4685 = vst [vmem:[%s20 + $0x18] sm:$0xff] %v4679
    %4686 = vst [vmem:[%s20 + $0x20] sm:$0xff] %v4680
    %4687 = vst [vmem:[%s20 + $0x28] sm:$0xff] %v4681
    %v4688 = vld [vmem:[%s18] sm:$0x1]
    %v4689 = vld [vmem:[%s19] sm:$0x1]
    %vm4690 = vcmask 1040384
    %v4691 = vsel %vm4690, %v4676, 0.0
    %4692 = vadd.xlane.f32.xlu0 %v4691
    %v4693 = vpop.xlane.xlu0 %4692
    %v4694 = vmul.f32 %v4693, 0.03125
    %v4695 = vsub.f32 %v4676, %v4694
    %v4696 = vmul.f32 %v4695, %v72
    %v4697 = vmul.f32 %v4696, %v4696
    %v4698 = vsel %vm4690, %v4697, 0.0
    %4699 = vadd.xlane.f32.xlu0 %v4698
    %v4700 = vpop.xlane.xlu0 %4699
    %v4701 = vmul.f32 %v4700, 0.03125
    %v4702 = vadd.f32 %v4701, 1e-05
    %v4703 = vrsqrt.pop %v4702
    %v4704 = vmul.f32 %v4696, %v4703
    %v4705 = vmul.f32 %v4704, %v4688
    %v4706 = vadd.f32 %v4705, %v4689
    %4707 = vst [vmem:[#allocation2] sm:$0x1] %v4706
    %v4708 = vsel %vm4690, %v4679, 0.0
    %4709 = vadd.xlane.f32.xlu0 %v4708
    %v4710 = vpop.xlane.xlu0 %4709
    %v4711 = vmul.f32 %v4710, 0.03125
    %v4712 = vsub.f32 %v4679, %v4711
    %v4713 = vmul.f32 %v4712, %v72
    %v4714 = vmul.f32 %v4713, %v4713
    %v4715 = vsel %vm4690, %v4714, 0.0
    %4716 = vadd.xlane.f32.xlu0 %v4715
    %v4717 = vpop.xlane.xlu0 %4716
    %v4718 = vmul.f32 %v4717, 0.03125
    %v4719 = vadd.f32 %v4718, 1e-05
    %v4720 = vrsqrt.pop %v4719
    %v4721 = vmul.f32 %v4713, %v4720
    %v4722 = vmul.f32 %v4721, %v4688
    %v4723 = vadd.f32 %v4722, %v4689
    %4724 = vst [vmem:[#allocation2 + $0x1] sm:$0x1] %v4723
    // Predicated region
    $region82: #{_lambda_.1} parent=1 // pred_check
      _
    $region83: #{_lambda_.1} parent=1 // pred_check_branch
      %4726 = sbr.rel (0) target = $region85
    $region84: #{_lambda_.1} parent=1 // pred_region
      _
    $region85: #{_lambda_.1} parent=1 // pred_fallthru
      _
    // Predicated region
    $region86: #{_lambda_.1} parent=1 // pred_check
      _
    $region87: #{_lambda_.1} parent=1 // pred_check_branch
      %4728 = sbr.rel (0) target = $region89
    $region88: #{_lambda_.1} parent=1 // pred_region
      %s4730 = ssub.s32 32, 32
      %4731 = vsyncadd [#allocation3], %s4730
      %s4733 = sshll.u32 [#allocation2], 4
      %s4734 = int_to_ptr.vmem [resolvable:$true] %s4733
      %4736 = dma.vmem_to_hbm [thread:$0]  %s4734, 32, %s21, [#allocation3]
    $region89: #{_lambda_.1} parent=1 // pred_fallthru
      _
    // Predicated region
    $region90: #{_lambda_.1} parent=1 // pred_check
      _
    $region91: #{_lambda_.1} parent=1 // pred_check_branch
      %4738 = sbr.rel (0) target = $region93
    $region92: #{_lambda_.1} parent=1 // pred_region
      _
    $region93: #{_lambda_.1} parent=1 // pred_fallthru
      _
    // Predicated region
    $region94: #{_lambda_.1} parent=1 // pred_check
      _
    $region95: #{_lambda_.1} parent=1 // pred_check_branch
      %4740 = sbr.rel (0) target = $region97
    $region96: #{_lambda_.1} parent=1 // pred_region
      %4741 = dma.done [#allocation3], 32
    $region97: #{_lambda_.1} parent=1 // pred_fallthru
      _
    %4742 = vsyncpa [#allocation3], 1

</llo_original>
